<compile_context>
chip_gen: v5e
topology: v5e:2x2
jax: 0.10.0
libtpu: 0.0.40
codegen_flags: <defaults>
</compile_context>

<pallas_src>
import jax
import jax.numpy as jnp
import numpy as np
from jax.experimental import pallas as pl
from jax.experimental.pallas import tpu as pltpu

KSIZE = 3
BN_EPS = 1e-5
LANE = 128


def _reflect_pad_hw(x):
    """In-VMEM 1-pixel reflection pad of an (H, W, C) tile -> (H+2, W+2, C)."""
    H, W, _ = x.shape
    x = jnp.concatenate([x[1:2], x, x[H - 2:H - 1]], axis=0)         # rows
    x = jnp.concatenate([x[:, 1:2], x, x[:, W - 2:W - 1]], axis=1)   # cols
    return x


def _conv3x3(xp, wmat):
    """Valid 3x3 conv of a halo-padded tile with deepened MXU contraction.

    xp:   (H+2, W+2, C) bf16
    wmat: (3, 3*C, C) bf16 with wmat[dh, dw*C + ci, co] == w_hwio[dh, dw, ci, co]
    Returns an (H*W, C) float32 accumulator (flattened spatial dims).
    """
    Hp, Wp, C = xp.shape
    H, W = Hp - 2, Wp - 2
    # One lane-concat of the three dw-shifted slabs -> K = 3*C per dot
    # (3 dots instead of 9; better fill of the 256-deep v6e/v7x MXU).
    slab = jnp.concatenate([xp[:, dw:dw + W, :] for dw in range(KSIZE)],
                           axis=-1).reshape(Hp * W, KSIZE * C)
    acc = jnp.zeros((H * W, C), jnp.float32)
    for dh in range(KSIZE):
        # Sublane-aligned static row window (offset dh*W; keep W a multiple of
        # 8 to avoid per-tap relayout copies).
        acc = acc + jax.lax.dot_general(
            slab[dh * W:(dh + H) * W, :], wmat[dh],
            (((1,), (0,)), ((), ())),
            preferred_element_type=jnp.float32)
    return acc


def conv1_stats_kernel(x_ref, w_ref, y1_ref, s_ref, ss_ref):
    """Pass 1: in-kernel reflect pad + bias-free conv1 + per-image BN partials."""
    x = x_ref[0]                                      # (H, W, C) bf16
    H, W, C = x.shape
    acc = _conv3x3(_reflect_pad_hw(x), w_ref[...])    # (H*W, C) f32
    y1_ref[0] = acc.astype(y1_ref.dtype).reshape(H, W, C)
    s = jnp.sum(acc, axis=0, keepdims=True)           # (1, C) per-image sum
    mu = s * (1.0 / (H * W))                          # per-image mean shift
    s_ref[0] = s
    ss_ref[0] = jnp.sum(jnp.square(acc - mu), axis=0, keepdims=True)


def bn_relu_conv2_kernel(y1_ref, w_ref, scale_ref, shift_ref, b2_ref, x_ref,
                         o_ref):
    """Pass 2: bf16 BN FMA + ReLU + in-kernel reflect pad + conv2 + residual."""
    y1 = y1_ref[0]                                    # (H, W, C) bf16
    H, W, C = y1.shape
    scale = scale_ref[...].reshape(1, 1, C)           # bf16, hoisted broadcasts
    shift = shift_ref[...].reshape(1, 1, C)
    z = jnp.maximum(y1 * scale + shift, 0.0)          # bf16 FMA + ReLU
    acc = _conv3x3(_reflect_pad_hw(z), w_ref[...])    # (H*W, C) f32
    out = (x_ref[0].astype(jnp.float32)
           + acc.reshape(H, W, C)
           + b2_ref[...].astype(jnp.float32).reshape(1, 1, C))
    o_ref[0] = out.astype(o_ref.dtype)


def _vmem_limit_bytes():
    """Generation-aware scoped-VMEM budget (~half of physical, capped)."""
    try:
        cap = int(pltpu.get_tpu_info().vmem_capacity_bytes)
    except Exception:
        cap = 64 * 1024 * 1024            # conservative fallback (v7x-safe)
    return min(cap // 2, 96 * 1024 * 1024)


@jax.jit
def resnet_block(x_nchw, params):
    """x_nchw: (N, C, H, W) like PyTorch. Returns (N, C, H, W) float32."""
    w1, b1, gamma, beta, w2, b2 = params
    del b1  # conv1 bias cancels exactly under training-mode batch-mean subtraction
    x = jnp.transpose(x_nchw, (0, 2, 3, 1)).astype(jnp.float32)  # NCHW -> NHWC
    N, H, W, C = x.shape

    # Lane-dense channel padding (padded channels are exact zeros everywhere).
    Cp = max(LANE, ((C + LANE - 1) // LANE) * LANE)
    cpad = Cp - C

    def pad_last(a):
        return jnp.pad(a, [(0, 0)] * (a.ndim - 1) + [(0, cpad)]) if cpad else a

    xb = pad_last(x.astype(jnp.bfloat16))             # (N,H,W,Cp) bf16 (conv1 in + residual)

    def pack_w(w):                                    # (3,3,C,C) -> (3, 3*Cp, Cp) bf16
        wp = jnp.pad(w, ((0, 0), (0, 0), (0, cpad), (0, cpad))) if cpad else w
        return wp.reshape(KSIZE, KSIZE * Cp, Cp).astype(jnp.bfloat16)

    w1m, w2m = pack_w(w1), pack_w(w2)
    gamma_p = pad_last(gamma.reshape(1, C)).reshape(Cp)
    beta_p = pad_last(beta.reshape(1, C)).reshape(Cp)
    b2_p = pad_last(b2.reshape(1, C))                 # (1, Cp) f32

    cparams = pltpu.CompilerParams(
        dimension_semantics=("parallel",),            # batch axis across TCs
        vmem_limit_bytes=_vmem_limit_bytes(),
    )
    conv_flops = 2 * KSIZE * KSIZE * H * W * Cp * Cp
    ce1 = pl.CostEstimate(
        flops=N * (conv_flops + 4 * H * W * Cp), transcendentals=0,
        bytes_accessed=(2 * N * H * W * Cp * 2 + KSIZE * KSIZE * Cp * Cp * 2
                        + 2 * N * Cp * 4))
    ce2 = pl.CostEstimate(
        flops=N * (conv_flops + 6 * H * W * Cp), transcendentals=0,
        bytes_accessed=(2 * N * H * W * Cp * 2 + KSIZE * KSIZE * Cp * Cp * 2
                        + 3 * Cp * 4 + N * H * W * Cp * 4))

    # ---- Pass 1: reflect-pad (in-kernel) + conv1 + per-image BN partials -----
    y1, s_part, ss_part = pl.pallas_call(
        conv1_stats_kernel,
        grid=(N,),
        in_specs=[
            pl.BlockSpec((1, H, W, Cp), lambda n: (n, 0, 0, 0)),
            pl.BlockSpec((KSIZE, KSIZE * Cp, Cp), lambda n: (0, 0, 0)),
        ],
        out_specs=[
            pl.BlockSpec((1, H, W, Cp), lambda n: (n, 0, 0, 0)),
            pl.BlockSpec((1, 1, Cp), lambda n: (n, 0, 0)),
            pl.BlockSpec((1, 1, Cp), lambda n: (n, 0, 0)),
        ],
        out_shape=[
            jax.ShapeDtypeStruct((N, H, W, Cp), jnp.bfloat16),
            jax.ShapeDtypeStruct((N, 1, Cp), jnp.float32),
            jax.ShapeDtypeStruct((N, 1, Cp), jnp.float32),
        ],
        compiler_params=cparams,
        cost_estimate=ce1,
    )(xb, w1m)

    # ---- Wrapper: combine per-image partials (mean-shifted), fold BN ---------
    # TODO(synk): PyTorch training-mode BatchNorm2d also updates
    # running_mean/running_var buffers; this forward-only fusion does not.
    cnt_i = float(H * W)
    s_i = s_part[:, 0, :]                             # (N, Cp)
    mu_i = s_i / cnt_i
    mean = jnp.sum(s_i, axis=0) / (N * cnt_i)
    var = (jnp.sum(ss_part[:, 0, :], axis=0)
           + cnt_i * jnp.sum(jnp.square(mu_i - mean), axis=0)) / (N * cnt_i)
    scale = gamma_p * jax.lax.rsqrt(var + BN_EPS)     # (Cp,) f32
    shift = beta_p - mean * scale
    scale_b = scale.reshape(1, Cp).astype(jnp.bfloat16)
    shift_b = shift.reshape(1, Cp).astype(jnp.bfloat16)

    # ---- Pass 2: BN FMA + ReLU + reflect-pad (in-kernel) + conv2 + residual --
    out = pl.pallas_call(
        bn_relu_conv2_kernel,
        grid=(N,),
        in_specs=[
            pl.BlockSpec((1, H, W, Cp), lambda n: (n, 0, 0, 0)),     # y1
            pl.BlockSpec((KSIZE, KSIZE * Cp, Cp), lambda n: (0, 0, 0)),
            pl.BlockSpec((1, Cp), lambda n: (0, 0)),                 # scale
            pl.BlockSpec((1, Cp), lambda n: (0, 0)),                 # shift
            pl.BlockSpec((1, Cp), lambda n: (0, 0)),                 # b2
            pl.BlockSpec((1, H, W, Cp), lambda n: (n, 0, 0, 0)),     # residual x (bf16)
        ],
        out_specs=pl.BlockSpec((1, H, W, Cp), lambda n: (n, 0, 0, 0)),
        out_shape=jax.ShapeDtypeStruct((N, H, W, Cp), jnp.float32),
        compiler_params=cparams,
        cost_estimate=ce2,
    )(y1, w2m, scale_b, shift_b, b2_p, xb)

    # TODO(synk): for images whose per-sample activations exceed the VMEM
    # budget (esp. v7x's 64 MiB physical VMEM), add an H-tiled grid axis with a
    # 1-row halo; the BN statistics path already supports it (per-tile partials
    # are combined in the wrapper, not per tile).  Also pad W (or the H-tile
    # row count) to a multiple of 8 to keep the tap row-windows relayout-free.
    if cpad:
        out = out[..., :C]
    return jnp.transpose(out, (0, 3, 1, 2))           # NHWC -> NCHW


def resnet_block_ref(x_nchw, params):
    """Pure-JAX float32 reference (matches the PyTorch forward semantics)."""
    w1, b1, gamma, beta, w2, b2 = params
    x = jnp.transpose(x_nchw, (0, 2, 3, 1)).astype(jnp.float32)

    def conv(y, w, b):
        yp = jnp.pad(y, ((0, 0), (1, 1), (1, 1), (0, 0)), mode="reflect")
        out = jax.lax.conv_general_dilated(
            yp, w, (1, 1), "VALID",
            dimension_numbers=("NHWC", "HWIO", "NHWC"))
        return out + b.reshape(1, 1, 1, -1)

    y = conv(x, w1, b1)
    mean = jnp.mean(y, axis=(0, 1, 2), keepdims=True)
    var = jnp.mean((y - mean) ** 2, axis=(0, 1, 2), keepdims=True)
    y = (y - mean) * jax.lax.rsqrt(var + BN_EPS) * gamma.reshape(1, 1, 1, -1) \
        + beta.reshape(1, 1, 1, -1)
    y = jnp.maximum(y, 0.0)
    y = conv(y, w2, b2)
    return jnp.transpose(x + y, (0, 3, 1, 2))


def init_params(key, num_filter):
    k1, k2, k3, k4, k5, k6 = jax.random.split(key, 6)
    fan_in = num_filter * KSIZE * KSIZE
    scale = 1.0 / np.sqrt(fan_in)
    w1 = jax.random.normal(k1, (KSIZE, KSIZE, num_filter, num_filter), jnp.float32) * scale
    b1 = jax.random.normal(k2, (1, num_filter), jnp.float32) * scale
    w2 = jax.random.normal(k3, (KSIZE, KSIZE, num_filter, num_filter), jnp.float32) * scale
    b2 = jax.random.normal(k4, (1, num_filter), jnp.float32) * scale
    gamma = 1.0 + 0.1 * jax.random.normal(k5, (1, num_filter), jnp.float32)
    beta = 0.1 * jax.random.normal(k6, (1, num_filter), jnp.float32)
    return (w1, b1, gamma, beta, w2, b2)


if __name__ == "__main__":
    key = jax.random.PRNGKey(0)
    kx, kp = jax.random.split(key)

    N, C, H, W = 2, 4, 16, 16
    x = jax.random.normal(kx, (N, C, H, W), jnp.float32)
    params = init_params(kp, C)

    out = jax.block_until_ready(resnet_block(x, params))
    ref = jax.block_until_ready(resnet_block_ref(x, params))

    # Kernel runs the conv matmuls, BN affine, ReLU, and the residual-x read
    # with bf16 operands (f32 accumulation); the reference is pure f32 ->
    # tolerance reflects bf16 input rounding.
    np.testing.assert_allclose(np.asarray(out), np.asarray(ref),
                               rtol=3e-2, atol=4e-2)
    assert out.shape == (N, C, H, W)
    print("KERNEL_OK")
</pallas_src>

<mosaic_0001>
module attributes {stable_mosaic.version = 11 : i64} {
  func.func @conv1_stats_kernel(%arg0: i32, %arg1: memref<1x16x16x128xbf16, #tpu.memory_space<vmem>>, %arg2: memref<3x384x128xbf16, #tpu.memory_space<vmem>>, %arg3: memref<1x16x16x128xbf16, #tpu.memory_space<vmem>>, %arg4: memref<1x1x128xf32, #tpu.memory_space<vmem>>, %arg5: memref<1x1x128xf32, #tpu.memory_space<vmem>>) attributes {dimension_semantics = [#tpu.dimension_semantics<parallel>], iteration_bounds = array<i64: 2>, scalar_prefetch = 0 : i64, scratch_operands = 0 : i64, tpu.core_type = #tpu.core_type<tc>, window_params = [{transform_indices = @transform_0, window_bounds = array<i64: 1, 16, 16, 128>}, {pipeline_mode = #tpu.pipeline_mode<synchronous>, transform_indices = @transform_1, window_bounds = array<i64: 3, 384, 128>}, {transform_indices = @transform_2, window_bounds = array<i64: 1, 16, 16, 128>}, {transform_indices = @transform_3, window_bounds = array<i64: 1, 1, 128>}, {transform_indices = @transform_4, window_bounds = array<i64: 1, 1, 128>}]} {
    %c0 = arith.constant 0 : index
    %c0_0 = arith.constant 0 : index
    %c0_1 = arith.constant 0 : index
    %c0_2 = arith.constant 0 : index
    %0 = vector.load %arg1[%c0, %c0_0, %c0_1, %c0_2] : memref<1x16x16x128xbf16, #tpu.memory_space<vmem>>, vector<1x16x16x128xbf16>
    %1 = vector.shape_cast %0 : vector<1x16x16x128xbf16> to vector<16x16x128xbf16>
    %2 = vector.extract_strided_slice %1 {offsets = [1, 0, 0], sizes = [1, 16, 128], strides = [1, 1, 1]} : vector<16x16x128xbf16> to vector<1x16x128xbf16>
    %3 = vector.extract_strided_slice %1 {offsets = [14, 0, 0], sizes = [1, 16, 128], strides = [1, 1, 1]} : vector<16x16x128xbf16> to vector<1x16x128xbf16>
    %4 = tpu.concatenate %2, %1, %3 in 0 : vector<1x16x128xbf16>, vector<16x16x128xbf16>, vector<1x16x128xbf16> -> vector<18x16x128xbf16>
    %5 = vector.extract_strided_slice %4 {offsets = [0, 1, 0], sizes = [18, 1, 128], strides = [1, 1, 1]} : vector<18x16x128xbf16> to vector<18x1x128xbf16>
    %6 = vector.extract_strided_slice %4 {offsets = [0, 14, 0], sizes = [18, 1, 128], strides = [1, 1, 1]} : vector<18x16x128xbf16> to vector<18x1x128xbf16>
    %7 = tpu.concatenate %5, %4, %6 in 1 : vector<18x1x128xbf16>, vector<18x16x128xbf16>, vector<18x1x128xbf16> -> vector<18x18x128xbf16>
    %c0_3 = arith.constant 0 : index
    %c0_4 = arith.constant 0 : index
    %c0_5 = arith.constant 0 : index
    %8 = vector.load %arg2[%c0_3, %c0_4, %c0_5] : memref<3x384x128xbf16, #tpu.memory_space<vmem>>, vector<3x384x128xbf16>
    %9 = vector.extract_strided_slice %7 {offsets = [0, 0, 0], sizes = [18, 16, 128], strides = [1, 1, 1]} : vector<18x18x128xbf16> to vector<18x16x128xbf16>
    %10 = vector.extract_strided_slice %7 {offsets = [0, 1, 0], sizes = [18, 16, 128], strides = [1, 1, 1]} : vector<18x18x128xbf16> to vector<18x16x128xbf16>
    %11 = vector.extract_strided_slice %7 {offsets = [0, 2, 0], sizes = [18, 16, 128], strides = [1, 1, 1]} : vector<18x18x128xbf16> to vector<18x16x128xbf16>
    %12 = tpu.concatenate %9, %10, %11 in 2 : vector<18x16x128xbf16>, vector<18x16x128xbf16>, vector<18x16x128xbf16> -> vector<18x16x384xbf16>
    %13 = vector.shape_cast %12 : vector<18x16x384xbf16> to vector<288x384xbf16>
    %cst = arith.constant 0.000000e+00 : f32
    %14 = vector.broadcast %cst : f32 to vector<256x128xf32>
    %15 = vector.extract_strided_slice %13 {offsets = [0, 0], sizes = [256, 384], strides = [1, 1]} : vector<288x384xbf16> to vector<256x384xbf16>
    %16 = vector.extract_strided_slice %8 {offsets = [0, 0, 0], sizes = [1, 384, 128], strides = [1, 1, 1]} : vector<3x384x128xbf16> to vector<1x384x128xbf16>
    %17 = vector.shape_cast %16 : vector<1x384x128xbf16> to vector<384x128xbf16>
    %cst_6 = arith.constant dense<0.000000e+00> : vector<256x128xf32>
    %18 = tpu.matmul %15, %17, %cst_6 {dimension_numbers = #tpu.dot_dimension_numbers<[1], [0], [0], [1], [0, 0, 1, 1], [], []>} : vector<256x384xbf16>, vector<384x128xbf16>, vector<256x128xf32> -> vector<256x128xf32>
    %19 = arith.addf %14, %18 : vector<256x128xf32>
    %20 = vector.extract_strided_slice %13 {offsets = [16, 0], sizes = [256, 384], strides = [1, 1]} : vector<288x384xbf16> to vector<256x384xbf16>
    %21 = vector.extract_strided_slice %8 {offsets = [1, 0, 0], sizes = [1, 384, 128], strides = [1, 1, 1]} : vector<3x384x128xbf16> to vector<1x384x128xbf16>
    %22 = vector.shape_cast %21 : vector<1x384x128xbf16> to vector<384x128xbf16>
    %cst_7 = arith.constant dense<0.000000e+00> : vector<256x128xf32>
    %23 = tpu.matmul %20, %22, %cst_7 {dimension_numbers = #tpu.dot_dimension_numbers<[1], [0], [0], [1], [0, 0, 1, 1], [], []>} : vector<256x384xbf16>, vector<384x128xbf16>, vector<256x128xf32> -> vector<256x128xf32>
    %24 = arith.addf %19, %23 : vector<256x128xf32>
    %25 = vector.extract_strided_slice %13 {offsets = [32, 0], sizes = [256, 384], strides = [1, 1]} : vector<288x384xbf16> to vector<256x384xbf16>
    %26 = vector.extract_strided_slice %8 {offsets = [2, 0, 0], sizes = [1, 384, 128], strides = [1, 1, 1]} : vector<3x384x128xbf16> to vector<1x384x128xbf16>
    %27 = vector.shape_cast %26 : vector<1x384x128xbf16> to vector<384x128xbf16>
    %cst_8 = arith.constant dense<0.000000e+00> : vector<256x128xf32>
    %28 = tpu.matmul %25, %27, %cst_8 {dimension_numbers = #tpu.dot_dimension_numbers<[1], [0], [0], [1], [0, 0, 1, 1], [], []>} : vector<256x384xbf16>, vector<384x128xbf16>, vector<256x128xf32> -> vector<256x128xf32>
    %29 = arith.addf %24, %28 : vector<256x128xf32>
    %30 = arith.truncf %29 : vector<256x128xf32> to vector<256x128xbf16>
    %31 = vector.shape_cast %30 : vector<256x128xbf16> to vector<16x16x128xbf16>
    %c0_9 = arith.constant 0 : index
    %c0_10 = arith.constant 0 : index
    %c0_11 = arith.constant 0 : index
    %c0_12 = arith.constant 0 : index
    %32 = vector.load %arg3[%c0_9, %c0_10, %c0_11, %c0_12] : memref<1x16x16x128xbf16, #tpu.memory_space<vmem>>, vector<1x16x16x128xbf16>
    %33 = vector.shape_cast %32 : vector<1x16x16x128xbf16> to vector<16x16x128xbf16>
    %34 = vector.shape_cast %31 : vector<16x16x128xbf16> to vector<1x16x16x128xbf16>
    tpu.vector_store %arg3[%c0_9, %c0_10, %c0_11, %c0_12], %34 {strides = array<i32>} : memref<1x16x16x128xbf16, #tpu.memory_space<vmem>>, vector<1x16x16x128xbf16>,
    %cst_13 = arith.constant dense<0.000000e+00> : vector<128xf32>
    %35 = vector.multi_reduction <add>, %29, %cst_13 [0] : vector<256x128xf32> to vector<128xf32>
    %36 = vector.shape_cast %35 : vector<128xf32> to vector<1x128xf32>
    %cst_14 = arith.constant 3.906250e-03 : f32
    %37 = vector.broadcast %cst_14 : f32 to vector<1x128xf32>
    %38 = arith.mulf %36, %37 : vector<1x128xf32>
    %c0_15 = arith.constant 0 : index
    %c0_16 = arith.constant 0 : index
    %c0_17 = arith.constant 0 : index
    %39 = vector.load %arg4[%c0_15, %c0_16, %c0_17] : memref<1x1x128xf32, #tpu.memory_space<vmem>>, vector<1x1x128xf32>
    %40 = vector.shape_cast %39 : vector<1x1x128xf32> to vector<1x128xf32>
    %41 = vector.shape_cast %36 : vector<1x128xf32> to vector<1x1x128xf32>
    tpu.vector_store %arg4[%c0_15, %c0_16, %c0_17], %41 {strides = array<i32>} : memref<1x1x128xf32, #tpu.memory_space<vmem>>, vector<1x1x128xf32>,
    %42 = vector.broadcast %38 : vector<1x128xf32> to vector<256x128xf32>
    %43 = arith.subf %29, %42 : vector<256x128xf32>
    %44 = arith.mulf %43, %43 : vector<256x128xf32>
    %cst_18 = arith.constant dense<0.000000e+00> : vector<128xf32>
    %45 = vector.multi_reduction <add>, %44, %cst_18 [0] : vector<256x128xf32> to vector<128xf32>
    %46 = vector.shape_cast %45 : vector<128xf32> to vector<1x128xf32>
    %c0_19 = arith.constant 0 : index
    %c0_20 = arith.constant 0 : index
    %c0_21 = arith.constant 0 : index
    %47 = vector.load %arg5[%c0_19, %c0_20, %c0_21] : memref<1x1x128xf32, #tpu.memory_space<vmem>>, vector<1x1x128xf32>
    %48 = vector.shape_cast %47 : vector<1x1x128xf32> to vector<1x128xf32>
    %49 = vector.shape_cast %46 : vector<1x128xf32> to vector<1x1x128xf32>
    tpu.vector_store %arg5[%c0_19, %c0_20, %c0_21], %49 {strides = array<i32>} : memref<1x1x128xf32, #tpu.memory_space<vmem>>, vector<1x1x128xf32>,
    return
  }
  func.func @transform_0(%arg0: i32) -> (i32, i32, i32, i32) {
    %c0_i32 = arith.constant 0 : i32
    %c0_i32_0 = arith.constant 0 : i32
    %c0_i32_1 = arith.constant 0 : i32
    %c0_i32_2 = arith.constant 0 : i32
    return %arg0, %c0_i32, %c0_i32_0, %c0_i32_1 : i32, i32, i32, i32
  }
  func.func @transform_1(%arg0: i32) -> (i32, i32, i32) {
    %c0_i32 = arith.constant 0 : i32
    %c0_i32_0 = arith.constant 0 : i32
    %c0_i32_1 = arith.constant 0 : i32
    %c0_i32_2 = arith.constant 0 : i32
    return %c0_i32, %c0_i32_0, %c0_i32_1 : i32, i32, i32
  }
  func.func @transform_2(%arg0: i32) -> (i32, i32, i32, i32) {
    %c0_i32 = arith.constant 0 : i32
    %c0_i32_0 = arith.constant 0 : i32
    %c0_i32_1 = arith.constant 0 : i32
    %c0_i32_2 = arith.constant 0 : i32
    return %arg0, %c0_i32, %c0_i32_0, %c0_i32_1 : i32, i32, i32, i32
  }
  func.func @transform_3(%arg0: i32) -> (i32, i32, i32) {
    %c0_i32 = arith.constant 0 : i32
    %c0_i32_0 = arith.constant 0 : i32
    %c0_i32_1 = arith.constant 0 : i32
    return %arg0, %c0_i32, %c0_i32_0 : i32, i32, i32
  }
  func.func @transform_4(%arg0: i32) -> (i32, i32, i32) {
    %c0_i32 = arith.constant 0 : i32
    %c0_i32_0 = arith.constant 0 : i32
    %c0_i32_1 = arith.constant 0 : i32
    return %arg0, %c0_i32, %c0_i32_0 : i32, i32, i32
  }
}

module attributes {stable_mosaic.version = 11 : i64} {
  func.func @bn_relu_conv2_kernel(%arg0: i32, %arg1: memref<1x16x16x128xbf16, #tpu.memory_space<vmem>>, %arg2: memref<3x384x128xbf16, #tpu.memory_space<vmem>>, %arg3: memref<1x128xbf16, #tpu.memory_space<vmem>>, %arg4: memref<1x128xbf16, #tpu.memory_space<vmem>>, %arg5: memref<1x128xf32, #tpu.memory_space<vmem>>, %arg6: memref<1x16x16x128xbf16, #tpu.memory_space<vmem>>, %arg7: memref<1x16x16x128xf32, #tpu.memory_space<vmem>>) attributes {dimension_semantics = [#tpu.dimension_semantics<parallel>], iteration_bounds = array<i64: 2>, scalar_prefetch = 0 : i64, scratch_operands = 0 : i64, tpu.core_type = #tpu.core_type<tc>, window_params = [{transform_indices = @transform_0, window_bounds = array<i64: 1, 16, 16, 128>}, {pipeline_mode = #tpu.pipeline_mode<synchronous>, transform_indices = @transform_1, window_bounds = array<i64: 3, 384, 128>}, {pipeline_mode = #tpu.pipeline_mode<synchronous>, transform_indices = @transform_2, window_bounds = array<i64: 1, 128>}, {pipeline_mode = #tpu.pipeline_mode<synchronous>, transform_indices = @transform_3, window_bounds = array<i64: 1, 128>}, {pipeline_mode = #tpu.pipeline_mode<synchronous>, transform_indices = @transform_4, window_bounds = array<i64: 1, 128>}, {transform_indices = @transform_5, window_bounds = array<i64: 1, 16, 16, 128>}, {transform_indices = @transform_6, window_bounds = array<i64: 1, 16, 16, 128>}]} {
    %c0 = arith.constant 0 : index
    %c0_0 = arith.constant 0 : index
    %c0_1 = arith.constant 0 : index
    %c0_2 = arith.constant 0 : index
    %0 = vector.load %arg1[%c0, %c0_0, %c0_1, %c0_2] : memref<1x16x16x128xbf16, #tpu.memory_space<vmem>>, vector<1x16x16x128xbf16>
    %1 = vector.shape_cast %0 : vector<1x16x16x128xbf16> to vector<16x16x128xbf16>
    %c0_3 = arith.constant 0 : index
    %c0_4 = arith.constant 0 : index
    %2 = vector.load %arg3[%c0_3, %c0_4] : memref<1x128xbf16, #tpu.memory_space<vmem>>, vector<1x128xbf16>
    %3 = vector.shape_cast %2 : vector<1x128xbf16> to vector<1x1x128xbf16>
    %c0_5 = arith.constant 0 : index
    %c0_6 = arith.constant 0 : index
    %4 = vector.load %arg4[%c0_5, %c0_6] : memref<1x128xbf16, #tpu.memory_space<vmem>>, vector<1x128xbf16>
    %5 = vector.shape_cast %4 : vector<1x128xbf16> to vector<1x1x128xbf16>
    %6 = vector.broadcast %3 : vector<1x1x128xbf16> to vector<16x16x128xbf16>
    %7 = arith.mulf %1, %6 : vector<16x16x128xbf16>
    %8 = vector.broadcast %5 : vector<1x1x128xbf16> to vector<16x16x128xbf16>
    %9 = arith.addf %7, %8 : vector<16x16x128xbf16>
    %cst = arith.constant 0.000000e+00 : bf16
    %10 = vector.broadcast %cst : bf16 to vector<16x16x128xbf16>
    %11 = arith.maximumf %9, %10 : vector<16x16x128xbf16>
    %12 = vector.extract_strided_slice %11 {offsets = [1, 0, 0], sizes = [1, 16, 128], strides = [1, 1, 1]} : vector<16x16x128xbf16> to vector<1x16x128xbf16>
    %13 = vector.extract_strided_slice %11 {offsets = [14, 0, 0], sizes = [1, 16, 128], strides = [1, 1, 1]} : vector<16x16x128xbf16> to vector<1x16x128xbf16>
    %14 = tpu.concatenate %12, %11, %13 in 0 : vector<1x16x128xbf16>, vector<16x16x128xbf16>, vector<1x16x128xbf16> -> vector<18x16x128xbf16>
    %15 = vector.extract_strided_slice %14 {offsets = [0, 1, 0], sizes = [18, 1, 128], strides = [1, 1, 1]} : vector<18x16x128xbf16> to vector<18x1x128xbf16>
    %16 = vector.extract_strided_slice %14 {offsets = [0, 14, 0], sizes = [18, 1, 128], strides = [1, 1, 1]} : vector<18x16x128xbf16> to vector<18x1x128xbf16>
    %17 = tpu.concatenate %15, %14, %16 in 1 : vector<18x1x128xbf16>, vector<18x16x128xbf16>, vector<18x1x128xbf16> -> vector<18x18x128xbf16>
    %c0_7 = arith.constant 0 : index
    %c0_8 = arith.constant 0 : index
    %c0_9 = arith.constant 0 : index
    %18 = vector.load %arg2[%c0_7, %c0_8, %c0_9] : memref<3x384x128xbf16, #tpu.memory_space<vmem>>, vector<3x384x128xbf16>
    %19 = vector.extract_strided_slice %17 {offsets = [0, 0, 0], sizes = [18, 16, 128], strides = [1, 1, 1]} : vector<18x18x128xbf16> to vector<18x16x128xbf16>
    %20 = vector.extract_strided_slice %17 {offsets = [0, 1, 0], sizes = [18, 16, 128], strides = [1, 1, 1]} : vector<18x18x128xbf16> to vector<18x16x128xbf16>
    %21 = vector.extract_strided_slice %17 {offsets = [0, 2, 0], sizes = [18, 16, 128], strides = [1, 1, 1]} : vector<18x18x128xbf16> to vector<18x16x128xbf16>
    %22 = tpu.concatenate %19, %20, %21 in 2 : vector<18x16x128xbf16>, vector<18x16x128xbf16>, vector<18x16x128xbf16> -> vector<18x16x384xbf16>
    %23 = vector.shape_cast %22 : vector<18x16x384xbf16> to vector<288x384xbf16>
    %cst_10 = arith.constant 0.000000e+00 : f32
    %24 = vector.broadcast %cst_10 : f32 to vector<256x128xf32>
    %25 = vector.extract_strided_slice %23 {offsets = [0, 0], sizes = [256, 384], strides = [1, 1]} : vector<288x384xbf16> to vector<256x384xbf16>
    %26 = vector.extract_strided_slice %18 {offsets = [0, 0, 0], sizes = [1, 384, 128], strides = [1, 1, 1]} : vector<3x384x128xbf16> to vector<1x384x128xbf16>
    %27 = vector.shape_cast %26 : vector<1x384x128xbf16> to vector<384x128xbf16>
    %cst_11 = arith.constant dense<0.000000e+00> : vector<256x128xf32>
    %28 = tpu.matmul %25, %27, %cst_11 {dimension_numbers = #tpu.dot_dimension_numbers<[1], [0], [0], [1], [0, 0, 1, 1], [], []>} : vector<256x384xbf16>, vector<384x128xbf16>, vector<256x128xf32> -> vector<256x128xf32>
    %29 = arith.addf %24, %28 : vector<256x128xf32>
    %30 = vector.extract_strided_slice %23 {offsets = [16, 0], sizes = [256, 384], strides = [1, 1]} : vector<288x384xbf16> to vector<256x384xbf16>
    %31 = vector.extract_strided_slice %18 {offsets = [1, 0, 0], sizes = [1, 384, 128], strides = [1, 1, 1]} : vector<3x384x128xbf16> to vector<1x384x128xbf16>
    %32 = vector.shape_cast %31 : vector<1x384x128xbf16> to vector<384x128xbf16>
    %cst_12 = arith.constant dense<0.000000e+00> : vector<256x128xf32>
    %33 = tpu.matmul %30, %32, %cst_12 {dimension_numbers = #tpu.dot_dimension_numbers<[1], [0], [0], [1], [0, 0, 1, 1], [], []>} : vector<256x384xbf16>, vector<384x128xbf16>, vector<256x128xf32> -> vector<256x128xf32>
    %34 = arith.addf %29, %33 : vector<256x128xf32>
    %35 = vector.extract_strided_slice %23 {offsets = [32, 0], sizes = [256, 384], strides = [1, 1]} : vector<288x384xbf16> to vector<256x384xbf16>
    %36 = vector.extract_strided_slice %18 {offsets = [2, 0, 0], sizes = [1, 384, 128], strides = [1, 1, 1]} : vector<3x384x128xbf16> to vector<1x384x128xbf16>
    %37 = vector.shape_cast %36 : vector<1x384x128xbf16> to vector<384x128xbf16>
    %cst_13 = arith.constant dense<0.000000e+00> : vector<256x128xf32>
    %38 = tpu.matmul %35, %37, %cst_13 {dimension_numbers = #tpu.dot_dimension_numbers<[1], [0], [0], [1], [0, 0, 1, 1], [], []>} : vector<256x384xbf16>, vector<384x128xbf16>, vector<256x128xf32> -> vector<256x128xf32>
    %39 = arith.addf %34, %38 : vector<256x128xf32>
    %c0_14 = arith.constant 0 : index
    %c0_15 = arith.constant 0 : index
    %c0_16 = arith.constant 0 : index
    %c0_17 = arith.constant 0 : index
    %40 = vector.load %arg6[%c0_14, %c0_15, %c0_16, %c0_17] : memref<1x16x16x128xbf16, #tpu.memory_space<vmem>>, vector<1x16x16x128xbf16>
    %41 = vector.shape_cast %40 : vector<1x16x16x128xbf16> to vector<16x16x128xbf16>
    %42 = arith.extf %41 : vector<16x16x128xbf16> to vector<16x16x128xf32>
    %43 = vector.shape_cast %39 : vector<256x128xf32> to vector<16x16x128xf32>
    %44 = arith.addf %42, %43 : vector<16x16x128xf32>
    %c0_18 = arith.constant 0 : index
    %c0_19 = arith.constant 0 : index
    %45 = vector.load %arg5[%c0_18, %c0_19] : memref<1x128xf32, #tpu.memory_space<vmem>>, vector<1x128xf32>
    %46 = vector.shape_cast %45 : vector<1x128xf32> to vector<1x1x128xf32>
    %47 = vector.broadcast %46 : vector<1x1x128xf32> to vector<16x16x128xf32>
    %48 = arith.addf %44, %47 : vector<16x16x128xf32>
    %c0_20 = arith.constant 0 : index
    %c0_21 = arith.constant 0 : index
    %c0_22 = arith.constant 0 : index
    %c0_23 = arith.constant 0 : index
    %49 = vector.load %arg7[%c0_20, %c0_21, %c0_22, %c0_23] : memref<1x16x16x128xf32, #tpu.memory_space<vmem>>, vector<1x16x16x128xf32>
    %50 = vector.shape_cast %49 : vector<1x16x16x128xf32> to vector<16x16x128xf32>
    %51 = vector.shape_cast %48 : vector<16x16x128xf32> to vector<1x16x16x128xf32>
    tpu.vector_store %arg7[%c0_20, %c0_21, %c0_22, %c0_23], %51 {strides = array<i32>} : memref<1x16x16x128xf32, #tpu.memory_space<vmem>>, vector<1x16x16x128xf32>,
    return
  }
  func.func @transform_0(%arg0: i32) -> (i32, i32, i32, i32) {
    %c0_i32 = arith.constant 0 : i32
    %c0_i32_0 = arith.constant 0 : i32
    %c0_i32_1 = arith.constant 0 : i32
    %c0_i32_2 = arith.constant 0 : i32
    return %arg0, %c0_i32, %c0_i32_0, %c0_i32_1 : i32, i32, i32, i32
  }
  func.func @transform_1(%arg0: i32) -> (i32, i32, i32) {
    %c0_i32 = arith.constant 0 : i32
    %c0_i32_0 = arith.constant 0 : i32
    %c0_i32_1 = arith.constant 0 : i32
    %c0_i32_2 = arith.constant 0 : i32
    return %c0_i32, %c0_i32_0, %c0_i32_1 : i32, i32, i32
  }
  func.func @transform_2(%arg0: i32) -> (i32, i32) {
    %c0_i32 = arith.constant 0 : i32
    %c0_i32_0 = arith.constant 0 : i32
    %c0_i32_1 = arith.constant 0 : i32
    return %c0_i32, %c0_i32_0 : i32, i32
  }
  func.func @transform_3(%arg0: i32) -> (i32, i32) {
    %c0_i32 = arith.constant 0 : i32
    %c0_i32_0 = arith.constant 0 : i32
    %c0_i32_1 = arith.constant 0 : i32
    return %c0_i32, %c0_i32_0 : i32, i32
  }
  func.func @transform_4(%arg0: i32) -> (i32, i32) {
    %c0_i32 = arith.constant 0 : i32
    %c0_i32_0 = arith.constant 0 : i32
    %c0_i32_1 = arith.constant 0 : i32
    return %c0_i32, %c0_i32_0 : i32, i32
  }
  func.func @transform_5(%arg0: i32) -> (i32, i32, i32, i32) {
    %c0_i32 = arith.constant 0 : i32
    %c0_i32_0 = arith.constant 0 : i32
    %c0_i32_1 = arith.constant 0 : i32
    %c0_i32_2 = arith.constant 0 : i32
    return %arg0, %c0_i32, %c0_i32_0, %c0_i32_1 : i32, i32, i32, i32
  }
  func.func @transform_6(%arg0: i32) -> (i32, i32, i32, i32) {
    %c0_i32 = arith.constant 0 : i32
    %c0_i32_0 = arith.constant 0 : i32
    %c0_i32_1 = arith.constant 0 : i32
    %c0_i32_2 = arith.constant 0 : i32
    return %arg0, %c0_i32, %c0_i32_0, %c0_i32_1 : i32, i32, i32, i32
  }
}

</mosaic_0001>

<llo_original>
// kernel: resnet_block.2
$region0: #{resnet_block.2}
  #allocation0 [shape = 'u32[]', space=smem, size = 0x4, offset = 0x4, fixed_abs, tag = 'smem constant byte address 0x4 - core index']
  #allocation1 [shape = 'u32[72,128]{1,0:T(1,128)}', space=vmem, size = 0x9000, scoped, tag = 'internal scratch']
  %s0 = inlined_call_operand.vmem [shape: bf16[2,16,16,128], index: 0, kind: input, shape index: {}]
  %s1 = inlined_call_operand.vmem [shape: bf16[3,384,128], index: 1, kind: input, shape index: {}]
  %s2 = inlined_call_operand.vmem [shape: bf16[2,16,16,128], index: 2, kind: output, shape index: {0}]
  %s3 = inlined_call_operand.vmem [shape: f32[2,1,128], index: 3, kind: output, shape index: {1}]
  %s4 = inlined_call_operand.vmem [shape: f32[2,1,128], index: 4, kind: output, shape index: {2}]
  %5 = xla_tuple %s2, %s3, %s4
  %s6 = sld [smem:[#allocation0]]
  $region57: #{resnet_block.2} parent=0
    _
  %s8 = ssub.s32 1, %s6
  %s9 = scalar_select 0, %s8, %s6
  loop: start=0, step=1, limit=4
  $region2: #{resnet_block.2} parent=0 // loop_pre_header
    _
  $region3: #{resnet_block.2} parent=0 // loop_header
    %s11 = sphi 0, %s15
    %p12 = scmp.ge.s32.totalorder %s11, 4
    %s21 = sphi 0, %s23
    %s24 = sphi 0, %s21
    %s25 = sphi 0, %s24
    %s41 = sphi 0, %s25
    %s45 = sphi 0, %s45
    %s47 = sphi 0, %s45
    %s48 = sphi 0, %s47
    %s62 = sphi 0, %s48
    %s68 = sphi 0, %s70
    %s71 = sphi 0, %s68
    %s72 = sphi 0, %s71
    %s88 = sphi 0, %s72
    %s94 = sphi 0, %s96
    %s97 = sphi 0, %s94
    %s98 = sphi 0, %s97
    %s114 = sphi 0, %s98
    %s120 = sphi 0, %s122
    %s123 = sphi 0, %s120
    %s124 = sphi 0, %s123
    %s140 = sphi 0, %s124
  $region4: #{resnet_block.2} parent=0 // loop_header_branch
    %14 = sbr.rel (%p12) target = $region8
  $region5: #{resnet_block.2} parent=0 // loop_body
    %s16 = ssub.s32 %s11, 1
    %s17 = ssub.s32 %s11, 2
    %s18 = sadd.s32 %s11, 1
    %s19 = ssub.s32 %s11, %s18
    %p20 = scmp.eq.s32.totalorder %s19, 0
    %s22 = sadd.s32 %s21, 1
    %s23 = scalar_select %p20, %s21, %s22
    %p26 = pneg %p20
    %p27 = scmp.eq.s32.totalorder %s11, 1
    %p28 = por %p26, %p27
    %p29 = scmp.ne.s32.totalorder %s21, %s24
    %p30 = scmp.eq.s32.totalorder %s11, 0
    %p31 = por %p29, %p30
    %p32 = scmp.ne.s32.totalorder %s21, %s24
    %p33 = scmp.eq.s32.totalorder %s16, 1
    %p34 = por %p32, %p33
    %p35 = scmp.ne.s32.totalorder %s24, %s25
    %p36 = scmp.eq.s32.totalorder %s16, 0
    %p37 = por %p35, %p36
    %p38 = scmp.ne.s32.totalorder %s24, %s25
    %p39 = scmp.eq.s32.totalorder %s17, 1
    %p40 = por %p38, %p39
    %p42 = scmp.ne.s32.totalorder %s25, %s41
    %p43 = scmp.eq.s32.totalorder %s17, 0
    %p44 = por %p42, %p43
    %s46 = sadd.s32 %s45, 1
    %p49 = scmp.eq.s32.totalorder %s11, 1
    %p50 = scmp.ne.s32.totalorder %s45, %s47
    %p51 = scmp.eq.s32.totalorder %s11, 0
    %p52 = por %p50, %p51
    %p53 = scmp.ne.s32.totalorder %s45, %s47
    %p54 = scmp.eq.s32.totalorder %s16, 1
    %p55 = por %p53, %p54
    %p56 = scmp.ne.s32.totalorder %s47, %s48
    %p57 = scmp.eq.s32.totalorder %s16, 0
    %p58 = por %p56, %p57
    %p59 = scmp.ne.s32.totalorder %s47, %s48
    %p60 = scmp.eq.s32.totalorder %s17, 1
    %p61 = por %p59, %p60
    %p63 = scmp.ne.s32.totalorder %s48, %s62
    %p64 = scmp.eq.s32.totalorder %s17, 0
    %p65 = por %p63, %p64
    %s66 = ssub.s32 %s11, %s18
    %p67 = scmp.eq.s32.totalorder %s66, 0
    %s69 = sadd.s32 %s68, 1
    %s70 = scalar_select %p67, %s68, %s69
    %p73 = pneg %p67
    %p74 = scmp.eq.s32.totalorder %s11, 1
    %p75 = por %p73, %p74
    %p76 = scmp.ne.s32.totalorder %s68, %s71
    %p77 = scmp.eq.s32.totalorder %s11, 0
    %p78 = por %p76, %p77
    %p79 = scmp.ne.s32.totalorder %s68, %s71
    %p80 = scmp.eq.s32.totalorder %s16, 1
    %p81 = por %p79, %p80
    %p82 = scmp.ne.s32.totalorder %s71, %s72
    %p83 = scmp.eq.s32.totalorder %s16, 0
    %p84 = por %p82, %p83
    %p85 = scmp.ne.s32.totalorder %s71, %s72
    %p86 = scmp.eq.s32.totalorder %s17, 1
    %p87 = por %p85, %p86
    %p89 = scmp.ne.s32.totalorder %s72, %s88
    %p90 = scmp.eq.s32.totalorder %s17, 0
    %p91 = por %p89, %p90
    %s92 = ssub.s32 %s11, %s18
    %p93 = scmp.eq.s32.totalorder %s92, 0
    %s95 = sadd.s32 %s94, 1
    %s96 = scalar_select %p93, %s94, %s95
    %p99 = pneg %p93
    %p100 = scmp.eq.s32.totalorder %s11, 1
    %p101 = por %p99, %p100
    %p102 = scmp.ne.s32.totalorder %s94, %s97
    %p103 = scmp.eq.s32.totalorder %s11, 0
    %p104 = por %p102, %p103
    %p105 = scmp.ne.s32.totalorder %s94, %s97
    %p106 = scmp.eq.s32.totalorder %s16, 1
    %p107 = por %p105, %p106
    %p108 = scmp.ne.s32.totalorder %s97, %s98
    %p109 = scmp.eq.s32.totalorder %s16, 0
    %p110 = por %p108, %p109
    %p111 = scmp.ne.s32.totalorder %s97, %s98
    %p112 = scmp.eq.s32.totalorder %s17, 1
    %p113 = por %p111, %p112
    %p115 = scmp.ne.s32.totalorder %s98, %s114
    %p116 = scmp.eq.s32.totalorder %s17, 0
    %p117 = por %p115, %p116
    %s118 = ssub.s32 %s11, %s18
    %p119 = scmp.eq.s32.totalorder %s118, 0
    %s121 = sadd.s32 %s120, 1
    %s122 = scalar_select %p119, %s120, %s121
    %p125 = pneg %p119
    %p126 = scmp.eq.s32.totalorder %s11, 1
    %p127 = por %p125, %p126
    %p128 = scmp.ne.s32.totalorder %s120, %s123
    %p129 = scmp.eq.s32.totalorder %s11, 0
    %p130 = por %p128, %p129
    %p131 = scmp.ne.s32.totalorder %s120, %s123
    %p132 = scmp.eq.s32.totalorder %s16, 1
    %p133 = por %p131, %p132
    %p134 = scmp.ne.s32.totalorder %s123, %s124
    %p135 = scmp.eq.s32.totalorder %s16, 0
    %p136 = por %p134, %p135
    %p137 = scmp.ne.s32.totalorder %s123, %s124
    %p138 = scmp.eq.s32.totalorder %s17, 1
    %p139 = por %p137, %p138
    %p141 = scmp.ne.s32.totalorder %s124, %s140
    %p142 = scmp.eq.s32.totalorder %s17, 0
    %p143 = por %p141, %p142
    %p144 = scmp.le.s32.totalorder 1, %s11
    %p145 = scmp.lt.s32.totalorder %s11, 3
    %p146 = pnand %p144, %p145
    %p147 = pneg %p146
    // Predicated region
    $region9: #{resnet_block.2} parent=5 // pred_check
      _
    $region10: #{resnet_block.2} parent=5 // pred_check_branch
      %149 = sbr.rel (%p146) target = $region12
    $region11: #{resnet_block.2} parent=5 // pred_region
      %s150 = ssub.s32 %s11, 1
      // Predicated region
      $region13: #{resnet_block.2} parent=11 // pred_check
        %p151 = pneg %p58
      $region14: #{resnet_block.2} parent=11 // pred_check_branch
        %153 = sbr.rel (%p151) target = $region16
      $region15: #{resnet_block.2} parent=11 // pred_region
        _
      $region16: #{resnet_block.2} parent=11 // pred_fallthru
        _
    $region12: #{resnet_block.2} parent=5 // pred_fallthru
      _
    %p154 = scmp.lt.s32.totalorder %s11, 2
    // Predicated region
    $region17: #{resnet_block.2} parent=5 // pred_check
      %p155 = pneg %p154
    $region18: #{resnet_block.2} parent=5 // pred_check_branch
      %157 = sbr.rel (%p155) target = $region20
    $region19: #{resnet_block.2} parent=5 // pred_region
      // Predicated region
      $region21: #{resnet_block.2} parent=19 // pred_check
        %p158 = pneg %p31
      $region22: #{resnet_block.2} parent=19 // pred_check_branch
        %160 = sbr.rel (%p158) target = $region24
      $region23: #{resnet_block.2} parent=19 // pred_region
        %p161 = scmp.lt.s32.totalorder %s11, 1
        %s162 = scalar_select %p161, %s11, 1
        %s163 = smul.addr %s162, 32
        %s164 = smul.addr %s163, 4
        %s165 = scalar_lea.vmem %s0, %s164
      $region24: #{resnet_block.2} parent=19 // pred_fallthru
        _
    $region20: #{resnet_block.2} parent=5 // pred_fallthru
      _
    %p166 = scmp.le.s32.totalorder 1, %s11
    %p167 = scmp.lt.s32.totalorder %s11, 3
    %p168 = pnand %p166, %p167
    %p169 = pneg %p168
    // Predicated region
    $region25: #{resnet_block.2} parent=5 // pred_check
      _
    $region26: #{resnet_block.2} parent=5 // pred_check_branch
      %171 = sbr.rel (%p168) target = $region28
    $region27: #{resnet_block.2} parent=5 // pred_region
      %s172 = ssub.s32 %s11, 1
      %p173 = scmp.lt.s32.totalorder %s16, 1
      %s174 = scalar_select %p173, %s16, 1
      %s175 = smul.addr %s174, 32
      %s176 = smul.addr %s175, 4
      %s177 = scalar_lea.vmem %s0, %s176
      %p178 = pneg %p37
      %p179 = pneg %p34
      %p180 = pneg %p58
      %p181 = pneg %p55
      %p182 = pneg %p84
      %p183 = pneg %p81
      %p184 = scmp.lt.s32.totalorder %s16, 1
      %s185 = scalar_select %p184, %s16, 1
      %s186 = smul.addr %s185, 32
      %s187 = smul.addr %s186, 4
      %s188 = scalar_lea.vmem %s2, %s187
      %p189 = pneg %p110
      %p190 = pneg %p107
      %p191 = scmp.lt.s32.totalorder %s16, 1
      %s192 = scalar_select %p191, %s16, 1
      %s193 = scalar_lea.vmem %s3, %s192
      %p194 = pneg %p136
      %p195 = pneg %p133
      %p196 = scmp.lt.s32.totalorder %s16, 1
      %s197 = scalar_select %p196, %s16, 1
      %s198 = scalar_lea.vmem %s4, %s197
      %p199 = scmp.lt.s32.totalorder %s16, 1
      %s200 = scalar_select %p199, %s16, 1
      %s201 = smul.addr %s200, 32
      %s202 = smul.addr %s201, 4
      %s203 = scalar_lea.vmem %s0, %s202
      %p204 = scmp.lt.s32.totalorder %s16, 1
      %s205 = scalar_select %p204, %s16, 1
      %s206 = smul.addr %s205, 32
      %s207 = smul.addr %s206, 4
      %s208 = scalar_lea.vmem %s2, %s207
      %p209 = scmp.lt.s32.totalorder %s16, 1
      %s210 = scalar_select %p209, %s16, 1
      %s211 = scalar_lea.vmem %s3, %s210
      %p212 = scmp.lt.s32.totalorder %s16, 1
      %s213 = scalar_select %p212, %s16, 1
      %s214 = scalar_lea.vmem %s4, %s213
      %v215 = vld [vmem:[%s203] sm:$0xf]
      %v216 = vld [vmem:[%s203 + $0x4] sm:$0xf]
      %v217 = vld [vmem:[%s203 + $0x8] sm:$0xf]
      %v218 = vld [vmem:[%s203 + $0xc] sm:$0xf]
      %v219 = vld [vmem:[%s203 + $0x10] sm:$0xf]
      %v220 = vld [vmem:[%s203 + $0x14] sm:$0xf]
      %v221 = vld [vmem:[%s203 + $0x18] sm:$0xf]
      %v222 = vld [vmem:[%s203 + $0x1c] sm:$0xf]
      %v223 = vld [vmem:[%s203 + $0x20] sm:$0xf]
      %v224 = vld [vmem:[%s203 + $0x24] sm:$0xf]
      %v225 = vld [vmem:[%s203 + $0x28] sm:$0xf]
      %v226 = vld [vmem:[%s203 + $0x2c] sm:$0xf]
      %v227 = vld [vmem:[%s203 + $0x30] sm:$0xf]
      %v228 = vld [vmem:[%s203 + $0x34] sm:$0xf]
      %v229 = vld [vmem:[%s203 + $0x38] sm:$0xf]
      %v230 = vld [vmem:[%s203 + $0x3c] sm:$0xf]
      %v231 = vld [vmem:[%s203 + $0x40] sm:$0xf]
      %v232 = vld [vmem:[%s203 + $0x44] sm:$0xf]
      %v233 = vld [vmem:[%s203 + $0x48] sm:$0xf]
      %v234 = vld [vmem:[%s203 + $0x4c] sm:$0xf]
      %v235 = vld [vmem:[%s203 + $0x50] sm:$0xf]
      %v236 = vld [vmem:[%s203 + $0x54] sm:$0xf]
      %v237 = vld [vmem:[%s203 + $0x58] sm:$0xf]
      %v238 = vld [vmem:[%s203 + $0x5c] sm:$0xf]
      %v239 = vld [vmem:[%s203 + $0x60] sm:$0xf]
      %v240 = vld [vmem:[%s203 + $0x64] sm:$0xf]
      %v241 = vld [vmem:[%s203 + $0x68] sm:$0xf]
      %v242 = vld [vmem:[%s203 + $0x6c] sm:$0xf]
      %v243 = vld [vmem:[%s203 + $0x70] sm:$0xf]
      %v244 = vld [vmem:[%s203 + $0x74] sm:$0xf]
      %v245 = vld [vmem:[%s203 + $0x78] sm:$0xf]
      %v246 = vld [vmem:[%s203 + $0x7c] sm:$0xf]
      %v263 = vunpack.c.l.b16 %v217
      %v264 = vunpack.c.l.b16 %v215
      %v265 = vunpack.c.l.b16 %v219
      %v266 = vunpack.c.l.b16 %v221
      %v267 = vunpack.c.l.b16 %v223
      %v268 = vunpack.c.l.b16 %v225
      %v269 = vunpack.c.l.b16 %v227
      %v270 = vunpack.c.l.b16 %v229
      %v271 = vunpack.c.l.b16 %v231
      %v272 = vunpack.c.l.b16 %v233
      %v273 = vunpack.c.l.b16 %v235
      %v274 = vunpack.c.l.b16 %v237
      %v275 = vunpack.c.l.b16 %v239
      %v276 = vunpack.c.l.b16 %v241
      %v277 = vunpack.c.l.b16 %v243
      %v278 = vunpack.c.l.b16 %v245
      %v279 = vpack.c.b16 %v263, %v263
      %v280 = vpack.c.b16 %v264, %v264
      %v281 = vpack.c.b16 %v265, %v265
      %v282 = vpack.c.b16 %v266, %v266
      %v283 = vpack.c.b16 %v267, %v267
      %v284 = vpack.c.b16 %v268, %v268
      %v285 = vpack.c.b16 %v269, %v269
      %v286 = vpack.c.b16 %v270, %v270
      %v287 = vpack.c.b16 %v271, %v271
      %v288 = vpack.c.b16 %v272, %v272
      %v289 = vpack.c.b16 %v273, %v273
      %v290 = vpack.c.b16 %v274, %v274
      %v291 = vpack.c.b16 %v275, %v275
      %v292 = vpack.c.b16 %v276, %v276
      %v293 = vpack.c.b16 %v277, %v277
      %v294 = vpack.c.b16 %v278, %v278
      %v296 = vshrl.u32 %v279, 16
      %v299 = vshrl.u32 %v280, 16
      %v302 = vshrl.u32 %v281, 16
      %v305 = vshrl.u32 %v282, 16
      %v308 = vshrl.u32 %v283, 16
      %v311 = vshrl.u32 %v284, 16
      %v314 = vshrl.u32 %v285, 16
      %v317 = vshrl.u32 %v286, 16
      %v320 = vshrl.u32 %v287, 16
      %v323 = vshrl.u32 %v288, 16
      %v326 = vshrl.u32 %v289, 16
      %v329 = vshrl.u32 %v290, 16
      %v332 = vshrl.u32 %v291, 16
      %v335 = vshrl.u32 %v292, 16
      %v338 = vshrl.u32 %v293, 16
      %v341 = vshrl.u32 %v294, 16
      %v375 = vunpack.c.l.b16 %v218
      %v376 = vunpack.c.l.b16 %v216
      %v377 = vunpack.c.l.b16 %v220
      %v378 = vunpack.c.l.b16 %v222
      %v379 = vunpack.c.l.b16 %v224
      %v380 = vunpack.c.l.b16 %v226
      %v381 = vunpack.c.l.b16 %v228
      %v382 = vunpack.c.l.b16 %v230
      %v383 = vunpack.c.l.b16 %v232
      %v384 = vunpack.c.l.b16 %v234
      %v385 = vunpack.c.l.b16 %v236
      %v386 = vunpack.c.l.b16 %v238
      %v387 = vunpack.c.l.b16 %v240
      %v388 = vunpack.c.l.b16 %v242
      %v389 = vunpack.c.l.b16 %v244
      %v390 = vunpack.c.l.b16 %v246
      %v391 = vpack.c.b16 %v375, %v263
      %v392 = vpack.c.b16 %v376, %v264
      %v393 = vpack.c.b16 %v377, %v265
      %v394 = vpack.c.b16 %v378, %v266
      %v395 = vpack.c.b16 %v379, %v267
      %v396 = vpack.c.b16 %v380, %v268
      %v397 = vpack.c.b16 %v381, %v269
      %v398 = vpack.c.b16 %v382, %v270
      %v399 = vpack.c.b16 %v383, %v271
      %v400 = vpack.c.b16 %v384, %v272
      %v401 = vpack.c.b16 %v385, %v273
      %v402 = vpack.c.b16 %v386, %v274
      %v403 = vpack.c.b16 %v387, %v275
      %v404 = vpack.c.b16 %v388, %v276
      %v405 = vpack.c.b16 %v389, %v277
      %v406 = vpack.c.b16 %v390, %v278
      %v408 = vshrl.u32 %v391, 16
      %v410 = vrot.slane %v408, 7
      %v411 = vshll.u32 %v391, 16
      %v413 = vor.u32 %v410, %v411
      %v415 = vshrl.u32 %v392, 16
      %v417 = vrot.slane %v415, 7
      %v418 = vshll.u32 %v392, 16
      %v420 = vor.u32 %v417, %v418
      %v422 = vshrl.u32 %v393, 16
      %v424 = vrot.slane %v422, 7
      %v425 = vshll.u32 %v393, 16
      %v427 = vor.u32 %v424, %v425
      %v429 = vshrl.u32 %v394, 16
      %v431 = vrot.slane %v429, 7
      %v432 = vshll.u32 %v394, 16
      %v434 = vor.u32 %v431, %v432
      %v436 = vshrl.u32 %v395, 16
      %v438 = vrot.slane %v436, 7
      %v439 = vshll.u32 %v395, 16
      %v441 = vor.u32 %v438, %v439
      %v443 = vshrl.u32 %v396, 16
      %v445 = vrot.slane %v443, 7
      %v446 = vshll.u32 %v396, 16
      %v448 = vor.u32 %v445, %v446
      %v450 = vshrl.u32 %v397, 16
      %v452 = vrot.slane %v450, 7
      %v453 = vshll.u32 %v397, 16
      %v455 = vor.u32 %v452, %v453
      %v457 = vshrl.u32 %v398, 16
      %v459 = vrot.slane %v457, 7
      %v460 = vshll.u32 %v398, 16
      %v462 = vor.u32 %v459, %v460
      %v464 = vshrl.u32 %v399, 16
      %v466 = vrot.slane %v464, 7
      %v467 = vshll.u32 %v399, 16
      %v469 = vor.u32 %v466, %v467
      %v471 = vshrl.u32 %v400, 16
      %v473 = vrot.slane %v471, 7
      %v474 = vshll.u32 %v400, 16
      %v476 = vor.u32 %v473, %v474
      %v478 = vshrl.u32 %v401, 16
      %v480 = vrot.slane %v478, 7
      %v481 = vshll.u32 %v401, 16
      %v483 = vor.u32 %v480, %v481
      %v485 = vshrl.u32 %v402, 16
      %v487 = vrot.slane %v485, 7
      %v488 = vshll.u32 %v402, 16
      %v490 = vor.u32 %v487, %v488
      %v492 = vshrl.u32 %v403, 16
      %v494 = vrot.slane %v492, 7
      %v495 = vshll.u32 %v403, 16
      %v497 = vor.u32 %v494, %v495
      %v499 = vshrl.u32 %v404, 16
      %v501 = vrot.slane %v499, 7
      %v502 = vshll.u32 %v404, 16
      %v504 = vor.u32 %v501, %v502
      %v506 = vshrl.u32 %v405, 16
      %v508 = vrot.slane %v506, 7
      %v509 = vshll.u32 %v405, 16
      %v511 = vor.u32 %v508, %v509
      %v513 = vshrl.u32 %v406, 16
      %v515 = vrot.slane %v513, 7
      %v516 = vshll.u32 %v406, 16
      %v518 = vor.u32 %v515, %v516
      %v551 = vpack.c.b16 %v375, %v375
      %v552 = vpack.c.b16 %v376, %v376
      %v553 = vpack.c.b16 %v377, %v377
      %v554 = vpack.c.b16 %v378, %v378
      %v555 = vpack.c.b16 %v379, %v379
      %v556 = vpack.c.b16 %v380, %v380
      %v557 = vpack.c.b16 %v381, %v381
      %v558 = vpack.c.b16 %v382, %v382
      %v559 = vpack.c.b16 %v383, %v383
      %v560 = vpack.c.b16 %v384, %v384
      %v561 = vpack.c.b16 %v385, %v385
      %v562 = vpack.c.b16 %v386, %v386
      %v563 = vpack.c.b16 %v387, %v387
      %v564 = vpack.c.b16 %v388, %v388
      %v565 = vpack.c.b16 %v389, %v389
      %v566 = vpack.c.b16 %v390, %v390
      %v568 = vshll.u32 %v551, 16
      %v570 = vrot.slane %v568, 3
      %v572 = vshll.u32 %v552, 16
      %v574 = vrot.slane %v572, 3
      %v576 = vshll.u32 %v553, 16
      %v578 = vrot.slane %v576, 3
      %v580 = vshll.u32 %v554, 16
      %v582 = vrot.slane %v580, 3
      %v584 = vshll.u32 %v555, 16
      %v586 = vrot.slane %v584, 3
      %v588 = vshll.u32 %v556, 16
      %v590 = vrot.slane %v588, 3
      %v592 = vshll.u32 %v557, 16
      %v594 = vrot.slane %v592, 3
      %v596 = vshll.u32 %v558, 16
      %v598 = vrot.slane %v596, 3
      %v600 = vshll.u32 %v559, 16
      %v602 = vrot.slane %v600, 3
      %v604 = vshll.u32 %v560, 16
      %v606 = vrot.slane %v604, 3
      %v608 = vshll.u32 %v561, 16
      %v610 = vrot.slane %v608, 3
      %v612 = vshll.u32 %v562, 16
      %v614 = vrot.slane %v612, 3
      %v616 = vshll.u32 %v563, 16
      %v618 = vrot.slane %v616, 3
      %v620 = vshll.u32 %v564, 16
      %v622 = vrot.slane %v620, 3
      %v624 = vshll.u32 %v565, 16
      %v626 = vrot.slane %v624, 3
      %v628 = vshll.u32 %v566, 16
      %v630 = vrot.slane %v628, 3
      %vm647 = vcmask 1040384
      %vm648 = vsmask.f32 256
      %vm649 = vmand %vm647, %vm648
      %v650 = vsel %vm649, %v296, %v413
      %v651 = vsel %vm649, %v299, %v420
      %v652 = vsel %vm649, %v302, %v427
      %v653 = vsel %vm649, %v305, %v434
      %v654 = vsel %vm649, %v308, %v441
      %v655 = vsel %vm649, %v311, %v448
      %v656 = vsel %vm649, %v314, %v455
      %v657 = vsel %vm649, %v317, %v462
      %v658 = vsel %vm649, %v320, %v469
      %v659 = vsel %vm649, %v323, %v476
      %v660 = vsel %vm649, %v326, %v483
      %v661 = vsel %vm649, %v329, %v490
      %v662 = vsel %vm649, %v332, %v497
      %v663 = vsel %vm649, %v335, %v504
      %v664 = vsel %vm649, %v338, %v511
      %v665 = vsel %vm649, %v341, %v518
      %v666 = vsel %vm649, %v410, %v570
      %v667 = vsel %vm649, %v417, %v574
      %v668 = vsel %vm649, %v424, %v578
      %v669 = vsel %vm649, %v431, %v582
      %v670 = vsel %vm649, %v438, %v586
      %v671 = vsel %vm649, %v445, %v590
      %v672 = vsel %vm649, %v452, %v594
      %v673 = vsel %vm649, %v459, %v598
      %v674 = vsel %vm649, %v466, %v602
      %v675 = vsel %vm649, %v473, %v606
      %v676 = vsel %vm649, %v480, %v610
      %v677 = vsel %vm649, %v487, %v614
      %v678 = vsel %vm649, %v494, %v618
      %v679 = vsel %vm649, %v501, %v622
      %v680 = vsel %vm649, %v508, %v626
      %v681 = vsel %vm649, %v515, %v630
      %v682 = vld [vmem:[%s1] sm:$0xf]
      %v683 = vld [vmem:[%s1 + $0x4] sm:$0xf]
      %v684 = vld [vmem:[%s1 + $0x8] sm:$0xf]
      %v685 = vld [vmem:[%s1 + $0xc] sm:$0xf]
      %v686 = vld [vmem:[%s1 + $0x10] sm:$0xf]
      %v687 = vld [vmem:[%s1 + $0x14] sm:$0xf]
      %v688 = vld [vmem:[%s1 + $0x18] sm:$0xf]
      %v689 = vld [vmem:[%s1 + $0x1c] sm:$0xf]
      %v690 = vld [vmem:[%s1 + $0x20] sm:$0xf]
      %v691 = vld [vmem:[%s1 + $0x24] sm:$0xf]
      %v692 = vld [vmem:[%s1 + $0x28] sm:$0xf]
      %v693 = vld [vmem:[%s1 + $0x2c] sm:$0xf]
      %v694 = vld [vmem:[%s1 + $0x30] sm:$0xf]
      %v695 = vld [vmem:[%s1 + $0x34] sm:$0xf]
      %v696 = vld [vmem:[%s1 + $0x38] sm:$0xf]
      %v697 = vld [vmem:[%s1 + $0x3c] sm:$0xf]
      %v698 = vld [vmem:[%s1 + $0x40] sm:$0xf]
      %v699 = vld [vmem:[%s1 + $0x44] sm:$0xf]
      %v700 = vld [vmem:[%s1 + $0x48] sm:$0xf]
      %v701 = vld [vmem:[%s1 + $0x4c] sm:$0xf]
      %v702 = vld [vmem:[%s1 + $0x50] sm:$0xf]
      %v703 = vld [vmem:[%s1 + $0x54] sm:$0xf]
      %v704 = vld [vmem:[%s1 + $0x58] sm:$0xf]
      %v705 = vld [vmem:[%s1 + $0x5c] sm:$0xf]
      %v706 = vld [vmem:[%s1 + $0x60] sm:$0xf]
      %v707 = vld [vmem:[%s1 + $0x64] sm:$0xf]
      %v708 = vld [vmem:[%s1 + $0x68] sm:$0xf]
      %v709 = vld [vmem:[%s1 + $0x6c] sm:$0xf]
      %v710 = vld [vmem:[%s1 + $0x70] sm:$0xf]
      %v711 = vld [vmem:[%s1 + $0x74] sm:$0xf]
      %v712 = vld [vmem:[%s1 + $0x78] sm:$0xf]
      %v713 = vld [vmem:[%s1 + $0x7c] sm:$0xf]
      %v714 = vld [vmem:[%s1 + $0x80] sm:$0xf]
      %v715 = vld [vmem:[%s1 + $0x84] sm:$0xf]
      %v716 = vld [vmem:[%s1 + $0x88] sm:$0xf]
      %v717 = vld [vmem:[%s1 + $0x8c] sm:$0xf]
      %v718 = vld [vmem:[%s1 + $0x90] sm:$0xf]
      %v719 = vld [vmem:[%s1 + $0x94] sm:$0xf]
      %v720 = vld [vmem:[%s1 + $0x98] sm:$0xf]
      %v721 = vld [vmem:[%s1 + $0x9c] sm:$0xf]
      %v722 = vld [vmem:[%s1 + $0xa0] sm:$0xf]
      %v723 = vld [vmem:[%s1 + $0xa4] sm:$0xf]
      %v724 = vld [vmem:[%s1 + $0xa8] sm:$0xf]
      %v725 = vld [vmem:[%s1 + $0xac] sm:$0xf]
      %v726 = vld [vmem:[%s1 + $0xb0] sm:$0xf]
      %v727 = vld [vmem:[%s1 + $0xb4] sm:$0xf]
      %v728 = vld [vmem:[%s1 + $0xb8] sm:$0xf]
      %v729 = vld [vmem:[%s1 + $0xbc] sm:$0xf]
      %v730 = vld [vmem:[%s1 + $0xc0] sm:$0xf]
      %v731 = vld [vmem:[%s1 + $0xc4] sm:$0xf]
      %v732 = vld [vmem:[%s1 + $0xc8] sm:$0xf]
      %v733 = vld [vmem:[%s1 + $0xcc] sm:$0xf]
      %v734 = vld [vmem:[%s1 + $0xd0] sm:$0xf]
      %v735 = vld [vmem:[%s1 + $0xd4] sm:$0xf]
      %v736 = vld [vmem:[%s1 + $0xd8] sm:$0xf]
      %v737 = vld [vmem:[%s1 + $0xdc] sm:$0xf]
      %v738 = vld [vmem:[%s1 + $0xe0] sm:$0xf]
      %v739 = vld [vmem:[%s1 + $0xe4] sm:$0xf]
      %v740 = vld [vmem:[%s1 + $0xe8] sm:$0xf]
      %v741 = vld [vmem:[%s1 + $0xec] sm:$0xf]
      %v742 = vld [vmem:[%s1 + $0xf0] sm:$0xf]
      %v743 = vld [vmem:[%s1 + $0xf4] sm:$0xf]
      %v744 = vld [vmem:[%s1 + $0xf8] sm:$0xf]
      %v745 = vld [vmem:[%s1 + $0xfc] sm:$0xf]
      %v746 = vld [vmem:[%s1 + $0x100] sm:$0xf]
      %v747 = vld [vmem:[%s1 + $0x104] sm:$0xf]
      %v748 = vld [vmem:[%s1 + $0x108] sm:$0xf]
      %v749 = vld [vmem:[%s1 + $0x10c] sm:$0xf]
      %v750 = vld [vmem:[%s1 + $0x110] sm:$0xf]
      %v751 = vld [vmem:[%s1 + $0x114] sm:$0xf]
      %v752 = vld [vmem:[%s1 + $0x118] sm:$0xf]
      %v753 = vld [vmem:[%s1 + $0x11c] sm:$0xf]
      %v754 = vld [vmem:[%s1 + $0x120] sm:$0xf]
      %v755 = vld [vmem:[%s1 + $0x124] sm:$0xf]
      %v756 = vld [vmem:[%s1 + $0x128] sm:$0xf]
      %v757 = vld [vmem:[%s1 + $0x12c] sm:$0xf]
      %v758 = vld [vmem:[%s1 + $0x130] sm:$0xf]
      %v759 = vld [vmem:[%s1 + $0x134] sm:$0xf]
      %v760 = vld [vmem:[%s1 + $0x138] sm:$0xf]
      %v761 = vld [vmem:[%s1 + $0x13c] sm:$0xf]
      %v762 = vld [vmem:[%s1 + $0x140] sm:$0xf]
      %v763 = vld [vmem:[%s1 + $0x144] sm:$0xf]
      %v764 = vld [vmem:[%s1 + $0x148] sm:$0xf]
      %v765 = vld [vmem:[%s1 + $0x14c] sm:$0xf]
      %v766 = vld [vmem:[%s1 + $0x150] sm:$0xf]
      %v767 = vld [vmem:[%s1 + $0x154] sm:$0xf]
      %v768 = vld [vmem:[%s1 + $0x158] sm:$0xf]
      %v769 = vld [vmem:[%s1 + $0x15c] sm:$0xf]
      %v770 = vld [vmem:[%s1 + $0x160] sm:$0xf]
      %v771 = vld [vmem:[%s1 + $0x164] sm:$0xf]
      %v772 = vld [vmem:[%s1 + $0x168] sm:$0xf]
      %v773 = vld [vmem:[%s1 + $0x16c] sm:$0xf]
      %v774 = vld [vmem:[%s1 + $0x170] sm:$0xf]
      %v775 = vld [vmem:[%s1 + $0x174] sm:$0xf]
      %v776 = vld [vmem:[%s1 + $0x178] sm:$0xf]
      %v777 = vld [vmem:[%s1 + $0x17c] sm:$0xf]
      %v778 = vld [vmem:[%s1 + $0x180] sm:$0xf]
      %v779 = vld [vmem:[%s1 + $0x184] sm:$0xf]
      %v780 = vld [vmem:[%s1 + $0x188] sm:$0xf]
      %v781 = vld [vmem:[%s1 + $0x18c] sm:$0xf]
      %v782 = vld [vmem:[%s1 + $0x190] sm:$0xf]
      %v783 = vld [vmem:[%s1 + $0x194] sm:$0xf]
      %v784 = vld [vmem:[%s1 + $0x198] sm:$0xf]
      %v785 = vld [vmem:[%s1 + $0x19c] sm:$0xf]
      %v786 = vld [vmem:[%s1 + $0x1a0] sm:$0xf]
      %v787 = vld [vmem:[%s1 + $0x1a4] sm:$0xf]
      %v788 = vld [vmem:[%s1 + $0x1a8] sm:$0xf]
      %v789 = vld [vmem:[%s1 + $0x1ac] sm:$0xf]
      %v790 = vld [vmem:[%s1 + $0x1b0] sm:$0xf]
      %v791 = vld [vmem:[%s1 + $0x1b4] sm:$0xf]
      %v792 = vld [vmem:[%s1 + $0x1b8] sm:$0xf]
      %v793 = vld [vmem:[%s1 + $0x1bc] sm:$0xf]
      %v794 = vld [vmem:[%s1 + $0x1c0] sm:$0xf]
      %v795 = vld [vmem:[%s1 + $0x1c4] sm:$0xf]
      %v796 = vld [vmem:[%s1 + $0x1c8] sm:$0xf]
      %v797 = vld [vmem:[%s1 + $0x1cc] sm:$0xf]
      %v798 = vld [vmem:[%s1 + $0x1d0] sm:$0xf]
      %v799 = vld [vmem:[%s1 + $0x1d4] sm:$0xf]
      %v800 = vld [vmem:[%s1 + $0x1d8] sm:$0xf]
      %v801 = vld [vmem:[%s1 + $0x1dc] sm:$0xf]
      %v802 = vld [vmem:[%s1 + $0x1e0] sm:$0xf]
      %v803 = vld [vmem:[%s1 + $0x1e4] sm:$0xf]
      %v804 = vld [vmem:[%s1 + $0x1e8] sm:$0xf]
      %v805 = vld [vmem:[%s1 + $0x1ec] sm:$0xf]
      %v806 = vld [vmem:[%s1 + $0x1f0] sm:$0xf]
      %v807 = vld [vmem:[%s1 + $0x1f4] sm:$0xf]
      %v808 = vld [vmem:[%s1 + $0x1f8] sm:$0xf]
      %v809 = vld [vmem:[%s1 + $0x1fc] sm:$0xf]
      %v810 = vld [vmem:[%s1 + $0x200] sm:$0xf]
      %v811 = vld [vmem:[%s1 + $0x204] sm:$0xf]
      %v812 = vld [vmem:[%s1 + $0x208] sm:$0xf]
      %v813 = vld [vmem:[%s1 + $0x20c] sm:$0xf]
      %v814 = vld [vmem:[%s1 + $0x210] sm:$0xf]
      %v815 = vld [vmem:[%s1 + $0x214] sm:$0xf]
      %v816 = vld [vmem:[%s1 + $0x218] sm:$0xf]
      %v817 = vld [vmem:[%s1 + $0x21c] sm:$0xf]
      %v818 = vld [vmem:[%s1 + $0x220] sm:$0xf]
      %v819 = vld [vmem:[%s1 + $0x224] sm:$0xf]
      %v820 = vld [vmem:[%s1 + $0x228] sm:$0xf]
      %v821 = vld [vmem:[%s1 + $0x22c] sm:$0xf]
      %v822 = vld [vmem:[%s1 + $0x230] sm:$0xf]
      %v823 = vld [vmem:[%s1 + $0x234] sm:$0xf]
      %v824 = vld [vmem:[%s1 + $0x238] sm:$0xf]
      %v825 = vld [vmem:[%s1 + $0x23c] sm:$0xf]
      %vm826 = vsmask.f32 7424
      %v828 = vshrl.u32 %v650, 16
      %v830 = vshll.u32 %v650, 16
      %v832 = vrot.slane %v830, 1
      %v833 = vor.u32 %v828, %v832
      %v835 = vshll.u32 %v666, 16
      %v837 = vrot.slane %v835, 1
      %v838 = vsel %vm826, %v833, %v837
      %v840 = vshrl.u32 %v651, 16
      %v842 = vshll.u32 %v651, 16
      %v844 = vrot.slane %v842, 1
      %v845 = vor.u32 %v840, %v844
      %v847 = vshll.u32 %v667, 16
      %v849 = vrot.slane %v847, 1
      %v850 = vsel %vm826, %v845, %v849
      %v852 = vshrl.u32 %v652, 16
      %v854 = vshll.u32 %v652, 16
      %v856 = vrot.slane %v854, 1
      %v857 = vor.u32 %v852, %v856
      %v859 = vshll.u32 %v668, 16
      %v861 = vrot.slane %v859, 1
      %v862 = vsel %vm826, %v857, %v861
      %v864 = vshrl.u32 %v653, 16
      %v866 = vshll.u32 %v653, 16
      %v868 = vrot.slane %v866, 1
      %v869 = vor.u32 %v864, %v868
      %v871 = vshll.u32 %v669, 16
      %v873 = vrot.slane %v871, 1
      %v874 = vsel %vm826, %v869, %v873
      %v876 = vshrl.u32 %v654, 16
      %v878 = vshll.u32 %v654, 16
      %v880 = vrot.slane %v878, 1
      %v881 = vor.u32 %v876, %v880
      %v883 = vshll.u32 %v670, 16
      %v885 = vrot.slane %v883, 1
      %v886 = vsel %vm826, %v881, %v885
      %v888 = vshrl.u32 %v655, 16
      %v890 = vshll.u32 %v655, 16
      %v892 = vrot.slane %v890, 1
      %v893 = vor.u32 %v888, %v892
      %v895 = vshll.u32 %v671, 16
      %v897 = vrot.slane %v895, 1
      %v898 = vsel %vm826, %v893, %v897
      %v900 = vshrl.u32 %v656, 16
      %v902 = vshll.u32 %v656, 16
      %v904 = vrot.slane %v902, 1
      %v905 = vor.u32 %v900, %v904
      %v907 = vshll.u32 %v672, 16
      %v909 = vrot.slane %v907, 1
      %v910 = vsel %vm826, %v905, %v909
      %v912 = vshrl.u32 %v657, 16
      %v914 = vshll.u32 %v657, 16
      %v916 = vrot.slane %v914, 1
      %v917 = vor.u32 %v912, %v916
      %v919 = vshll.u32 %v673, 16
      %v921 = vrot.slane %v919, 1
      %v922 = vsel %vm826, %v917, %v921
      %v924 = vshrl.u32 %v658, 16
      %v926 = vshll.u32 %v658, 16
      %v928 = vrot.slane %v926, 1
      %v929 = vor.u32 %v924, %v928
      %v931 = vshll.u32 %v674, 16
      %v933 = vrot.slane %v931, 1
      %v934 = vsel %vm826, %v929, %v933
      %v936 = vshrl.u32 %v659, 16
      %v938 = vshll.u32 %v659, 16
      %v940 = vrot.slane %v938, 1
      %v941 = vor.u32 %v936, %v940
      %v943 = vshll.u32 %v675, 16
      %v945 = vrot.slane %v943, 1
      %v946 = vsel %vm826, %v941, %v945
      %v948 = vshrl.u32 %v660, 16
      %v950 = vshll.u32 %v660, 16
      %v952 = vrot.slane %v950, 1
      %v953 = vor.u32 %v948, %v952
      %v955 = vshll.u32 %v676, 16
      %v957 = vrot.slane %v955, 1
      %v958 = vsel %vm826, %v953, %v957
      %v960 = vshrl.u32 %v661, 16
      %v962 = vshll.u32 %v661, 16
      %v964 = vrot.slane %v962, 1
      %v965 = vor.u32 %v960, %v964
      %v967 = vshll.u32 %v677, 16
      %v969 = vrot.slane %v967, 1
      %v970 = vsel %vm826, %v965, %v969
      %v972 = vshrl.u32 %v662, 16
      %v974 = vshll.u32 %v662, 16
      %v976 = vrot.slane %v974, 1
      %v977 = vor.u32 %v972, %v976
      %v979 = vshll.u32 %v678, 16
      %v981 = vrot.slane %v979, 1
      %v982 = vsel %vm826, %v977, %v981
      %v984 = vshrl.u32 %v663, 16
      %v986 = vshll.u32 %v663, 16
      %v988 = vrot.slane %v986, 1
      %v989 = vor.u32 %v984, %v988
      %v991 = vshll.u32 %v679, 16
      %v993 = vrot.slane %v991, 1
      %v994 = vsel %vm826, %v989, %v993
      %v996 = vshrl.u32 %v664, 16
      %v998 = vshll.u32 %v664, 16
      %v1000 = vrot.slane %v998, 1
      %v1001 = vor.u32 %v996, %v1000
      %v1003 = vshll.u32 %v680, 16
      %v1005 = vrot.slane %v1003, 1
      %v1006 = vsel %vm826, %v1001, %v1005
      %v1008 = vshrl.u32 %v665, 16
      %v1010 = vshll.u32 %v665, 16
      %v1012 = vrot.slane %v1010, 1
      %v1013 = vor.u32 %v1008, %v1012
      %v1015 = vshll.u32 %v681, 16
      %v1017 = vrot.slane %v1015, 1
      %v1018 = vsel %vm826, %v1013, %v1017
      %vm1067 = vcmask 1046528
      %v1068 = vrot.slane %v650, 1
      %v1069 = vrot.slane %v666, 1
      %v1070 = vsel %vm1067, %v1068, %v1069
      %v1071 = vrot.slane %v651, 1
      %v1072 = vrot.slane %v667, 1
      %v1073 = vsel %vm1067, %v1071, %v1072
      %v1074 = vrot.slane %v652, 1
      %v1075 = vrot.slane %v668, 1
      %v1076 = vsel %vm1067, %v1074, %v1075
      %v1077 = vrot.slane %v653, 1
      %v1078 = vrot.slane %v669, 1
      %v1079 = vsel %vm1067, %v1077, %v1078
      %v1080 = vrot.slane %v654, 1
      %v1081 = vrot.slane %v670, 1
      %v1082 = vsel %vm1067, %v1080, %v1081
      %v1083 = vrot.slane %v655, 1
      %v1084 = vrot.slane %v671, 1
      %v1085 = vsel %vm1067, %v1083, %v1084
      %v1086 = vrot.slane %v656, 1
      %v1087 = vrot.slane %v672, 1
      %v1088 = vsel %vm1067, %v1086, %v1087
      %v1089 = vrot.slane %v657, 1
      %v1090 = vrot.slane %v673, 1
      %v1091 = vsel %vm1067, %v1089, %v1090
      %v1092 = vrot.slane %v658, 1
      %v1093 = vrot.slane %v674, 1
      %v1094 = vsel %vm1067, %v1092, %v1093
      %v1095 = vrot.slane %v659, 1
      %v1096 = vrot.slane %v675, 1
      %v1097 = vsel %vm1067, %v1095, %v1096
      %v1098 = vrot.slane %v660, 1
      %v1099 = vrot.slane %v676, 1
      %v1100 = vsel %vm1067, %v1098, %v1099
      %v1101 = vrot.slane %v661, 1
      %v1102 = vrot.slane %v677, 1
      %v1103 = vsel %vm1067, %v1101, %v1102
      %v1104 = vrot.slane %v662, 1
      %v1105 = vrot.slane %v678, 1
      %v1106 = vsel %vm1067, %v1104, %v1105
      %v1107 = vrot.slane %v663, 1
      %v1108 = vrot.slane %v679, 1
      %v1109 = vsel %vm1067, %v1107, %v1108
      %v1110 = vrot.slane %v664, 1
      %v1111 = vrot.slane %v680, 1
      %v1112 = vsel %vm1067, %v1110, %v1111
      %v1113 = vrot.slane %v665, 1
      %v1114 = vrot.slane %v681, 1
      %v1115 = vsel %vm1067, %v1113, %v1114
      %v1180 = vunpack.c.l.b16 %v730
      %v1181 = vunpack.c.l.b16 %v731
      %v1182 = vunpack.c.l.b16 %v732
      %v1183 = vunpack.c.l.b16 %v733
      %v1184 = vunpack.c.l.b16 %v734
      %v1185 = vunpack.c.l.b16 %v735
      %v1186 = vunpack.c.l.b16 %v736
      %v1187 = vunpack.c.l.b16 %v737
      %v1188 = vunpack.c.l.b16 %v738
      %v1189 = vunpack.c.l.b16 %v739
      %v1190 = vunpack.c.l.b16 %v740
      %v1191 = vunpack.c.l.b16 %v741
      %v1192 = vunpack.c.l.b16 %v742
      %v1193 = vunpack.c.l.b16 %v743
      %v1194 = vunpack.c.l.b16 %v744
      %v1195 = vunpack.c.l.b16 %v745
      %v1196 = vunpack.c.l.b16 %v746
      %v1197 = vunpack.c.l.b16 %v747
      %v1198 = vunpack.c.l.b16 %v748
      %v1199 = vunpack.c.l.b16 %v749
      %v1200 = vunpack.c.l.b16 %v750
      %v1201 = vunpack.c.l.b16 %v751
      %v1202 = vunpack.c.l.b16 %v752
      %v1203 = vunpack.c.l.b16 %v753
      %v1204 = vunpack.c.l.b16 %v754
      %v1205 = vunpack.c.l.b16 %v755
      %v1206 = vunpack.c.l.b16 %v756
      %v1207 = vunpack.c.l.b16 %v757
      %v1208 = vunpack.c.l.b16 %v758
      %v1209 = vunpack.c.l.b16 %v759
      %v1210 = vunpack.c.l.b16 %v760
      %v1211 = vunpack.c.l.b16 %v761
      %v1212 = vunpack.c.l.b16 %v762
      %v1213 = vunpack.c.l.b16 %v763
      %v1214 = vunpack.c.l.b16 %v764
      %v1215 = vunpack.c.l.b16 %v765
      %v1216 = vunpack.c.l.b16 %v766
      %v1217 = vunpack.c.l.b16 %v767
      %v1218 = vunpack.c.l.b16 %v768
      %v1219 = vunpack.c.l.b16 %v769
      %v1220 = vunpack.c.l.b16 %v770
      %v1221 = vunpack.c.l.b16 %v771
      %v1222 = vunpack.c.l.b16 %v772
      %v1223 = vunpack.c.l.b16 %v773
      %v1224 = vunpack.c.l.b16 %v774
      %v1225 = vunpack.c.l.b16 %v775
      %v1226 = vunpack.c.l.b16 %v776
      %v1227 = vunpack.c.l.b16 %v777
      %v1228 = vpack.c.b16 %v1181, %v1180
      %v1229 = vpack.c.b16 %v1183, %v1182
      %v1230 = vpack.c.b16 %v1185, %v1184
      %v1231 = vpack.c.b16 %v1187, %v1186
      %v1232 = vpack.c.b16 %v1189, %v1188
      %v1233 = vpack.c.b16 %v1191, %v1190
      %v1234 = vpack.c.b16 %v1193, %v1192
      %v1235 = vpack.c.b16 %v1195, %v1194
      %v1236 = vpack.c.b16 %v1197, %v1196
      %v1237 = vpack.c.b16 %v1199, %v1198
      %v1238 = vpack.c.b16 %v1201, %v1200
      %v1239 = vpack.c.b16 %v1203, %v1202
      %v1240 = vpack.c.b16 %v1205, %v1204
      %v1241 = vpack.c.b16 %v1207, %v1206
      %v1242 = vpack.c.b16 %v1209, %v1208
      %v1243 = vpack.c.b16 %v1211, %v1210
      %v1244 = vpack.c.b16 %v1213, %v1212
      %v1245 = vpack.c.b16 %v1215, %v1214
      %v1246 = vpack.c.b16 %v1217, %v1216
      %v1247 = vpack.c.b16 %v1219, %v1218
      %v1248 = vpack.c.b16 %v1221, %v1220
      %v1249 = vpack.c.b16 %v1223, %v1222
      %v1250 = vpack.c.b16 %v1225, %v1224
      %v1251 = vpack.c.b16 %v1227, %v1226
      %1276 = vmatpush.bf16.msra.mxu0 %v1235
      %1277 = vmatpush.bf16.msra.mxu0 %v1234
      %1278 = vmatpush.bf16.msra.mxu0 %v1233
      %1279 = vmatpush.bf16.msra.mxu0 %v1232
      %1280 = vmatpush.bf16.msra.mxu0 %v1231
      %1281 = vmatpush.bf16.msra.mxu0 %v1230
      %1282 = vmatpush.bf16.msra.mxu0 %v1229
      %1283 = vmatpush.bf16.msra.mxu0 %v1228
      %1284 = vmatmul.bf16.gmra.mxu0 %v651
      %v1285 = vpop.f32.mrf.mxu0
      %v1286 = vadd.f32 0.0, %v1285
      %v1287 = vpop.f32.mrf.mxu0
      %v1288 = vadd.f32 0.0, %v1287
      %1289 = vmatmul.bf16.gmra.mxu0 %v650
      %v1290 = vpop.f32.mrf.mxu0
      %v1291 = vadd.f32 0.0, %v1290
      %v1292 = vpop.f32.mrf.mxu0
      %v1293 = vadd.f32 0.0, %v1292
      %1294 = vmatmul.bf16.gmra.mxu0 %v652
      %v1295 = vpop.f32.mrf.mxu0
      %v1296 = vadd.f32 0.0, %v1295
      %v1297 = vpop.f32.mrf.mxu0
      %v1298 = vadd.f32 0.0, %v1297
      %1299 = vmatmul.bf16.gmra.mxu0 %v653
      %v1300 = vpop.f32.mrf.mxu0
      %v1301 = vadd.f32 0.0, %v1300
      %v1302 = vpop.f32.mrf.mxu0
      %v1303 = vadd.f32 0.0, %v1302
      %1304 = vmatmul.bf16.gmra.mxu0 %v654
      %v1305 = vpop.f32.mrf.mxu0
      %v1306 = vadd.f32 0.0, %v1305
      %v1307 = vpop.f32.mrf.mxu0
      %v1308 = vadd.f32 0.0, %v1307
      %1309 = vmatmul.bf16.gmra.mxu0 %v655
      %v1310 = vpop.f32.mrf.mxu0
      %v1311 = vadd.f32 0.0, %v1310
      %v1312 = vpop.f32.mrf.mxu0
      %v1313 = vadd.f32 0.0, %v1312
      %1314 = vmatmul.bf16.gmra.mxu0 %v656
      %v1315 = vpop.f32.mrf.mxu0
      %v1316 = vadd.f32 0.0, %v1315
      %v1317 = vpop.f32.mrf.mxu0
      %v1318 = vadd.f32 0.0, %v1317
      %1319 = vmatmul.bf16.gmra.mxu0 %v657
      %v1320 = vpop.f32.mrf.mxu0
      %v1321 = vadd.f32 0.0, %v1320
      %v1322 = vpop.f32.mrf.mxu0
      %v1323 = vadd.f32 0.0, %v1322
      %1324 = vmatmul.bf16.gmra.mxu0 %v658
      %v1325 = vpop.f32.mrf.mxu0
      %v1326 = vadd.f32 0.0, %v1325
      %v1327 = vpop.f32.mrf.mxu0
      %v1328 = vadd.f32 0.0, %v1327
      %1329 = vmatmul.bf16.gmra.mxu0 %v659
      %v1330 = vpop.f32.mrf.mxu0
      %v1331 = vadd.f32 0.0, %v1330
      %v1332 = vpop.f32.mrf.mxu0
      %v1333 = vadd.f32 0.0, %v1332
      %1334 = vmatmul.bf16.gmra.mxu0 %v660
      %v1335 = vpop.f32.mrf.mxu0
      %v1336 = vadd.f32 0.0, %v1335
      %v1337 = vpop.f32.mrf.mxu0
      %v1338 = vadd.f32 0.0, %v1337
      %1339 = vmatmul.bf16.gmra.mxu0 %v661
      %v1340 = vpop.f32.mrf.mxu0
      %v1341 = vadd.f32 0.0, %v1340
      %v1342 = vpop.f32.mrf.mxu0
      %v1343 = vadd.f32 0.0, %v1342
      %1344 = vmatmul.bf16.gmra.mxu0 %v662
      %v1345 = vpop.f32.mrf.mxu0
      %v1346 = vadd.f32 0.0, %v1345
      %v1347 = vpop.f32.mrf.mxu0
      %v1348 = vadd.f32 0.0, %v1347
      %1349 = vmatmul.bf16.gmra.mxu0 %v663
      %v1350 = vpop.f32.mrf.mxu0
      %v1351 = vadd.f32 0.0, %v1350
      %v1352 = vpop.f32.mrf.mxu0
      %v1353 = vadd.f32 0.0, %v1352
      %1354 = vmatmul.bf16.gmra.mxu0 %v664
      %v1355 = vpop.f32.mrf.mxu0
      %v1356 = vadd.f32 0.0, %v1355
      %v1357 = vpop.f32.mrf.mxu0
      %v1358 = vadd.f32 0.0, %v1357
      %1359 = vmatmul.bf16.gmra.mxu0 %v665
      %v1360 = vpop.f32.mrf.mxu0
      %v1361 = vadd.f32 0.0, %v1360
      %v1362 = vpop.f32.mrf.mxu0
      %v1363 = vadd.f32 0.0, %v1362
      %1364 = vdwg.mxu0
      %1365 = vmatpush.bf16.msra.mxu0 %v1243
      %1366 = vmatpush.bf16.msra.mxu0 %v1242
      %1367 = vmatpush.bf16.msra.mxu0 %v1241
      %1368 = vmatpush.bf16.msra.mxu0 %v1240
      %1369 = vmatpush.bf16.msra.mxu0 %v1239
      %1370 = vmatpush.bf16.msra.mxu0 %v1238
      %1371 = vmatpush.bf16.msra.mxu0 %v1237
      %1372 = vmatpush.bf16.msra.mxu0 %v1236
      %1373 = vmatmul.bf16.gmra.mxu0 %v850
      %v1374 = vpop.f32.mrf.mxu0
      %v1375 = vadd.f32 %v1286, %v1374
      %v1376 = vpop.f32.mrf.mxu0
      %v1377 = vadd.f32 %v1288, %v1376
      %1378 = vmatmul.bf16.gmra.mxu0 %v838
      %v1379 = vpop.f32.mrf.mxu0
      %v1380 = vadd.f32 %v1291, %v1379
      %v1381 = vpop.f32.mrf.mxu0
      %v1382 = vadd.f32 %v1293, %v1381
      %1383 = vmatmul.bf16.gmra.mxu0 %v862
      %v1384 = vpop.f32.mrf.mxu0
      %v1385 = vadd.f32 %v1296, %v1384
      %v1386 = vpop.f32.mrf.mxu0
      %v1387 = vadd.f32 %v1298, %v1386
      %1388 = vmatmul.bf16.gmra.mxu0 %v874
      %v1389 = vpop.f32.mrf.mxu0
      %v1390 = vadd.f32 %v1301, %v1389
      %v1391 = vpop.f32.mrf.mxu0
      %v1392 = vadd.f32 %v1303, %v1391
      %1393 = vmatmul.bf16.gmra.mxu0 %v886
      %v1394 = vpop.f32.mrf.mxu0
      %v1395 = vadd.f32 %v1306, %v1394
      %v1396 = vpop.f32.mrf.mxu0
      %v1397 = vadd.f32 %v1308, %v1396
      %1398 = vmatmul.bf16.gmra.mxu0 %v898
      %v1399 = vpop.f32.mrf.mxu0
      %v1400 = vadd.f32 %v1311, %v1399
      %v1401 = vpop.f32.mrf.mxu0
      %v1402 = vadd.f32 %v1313, %v1401
      %1403 = vmatmul.bf16.gmra.mxu0 %v910
      %v1404 = vpop.f32.mrf.mxu0
      %v1405 = vadd.f32 %v1316, %v1404
      %v1406 = vpop.f32.mrf.mxu0
      %v1407 = vadd.f32 %v1318, %v1406
      %1408 = vmatmul.bf16.gmra.mxu0 %v922
      %v1409 = vpop.f32.mrf.mxu0
      %v1410 = vadd.f32 %v1321, %v1409
      %v1411 = vpop.f32.mrf.mxu0
      %v1412 = vadd.f32 %v1323, %v1411
      %1413 = vmatmul.bf16.gmra.mxu0 %v934
      %v1414 = vpop.f32.mrf.mxu0
      %v1415 = vadd.f32 %v1326, %v1414
      %v1416 = vpop.f32.mrf.mxu0
      %v1417 = vadd.f32 %v1328, %v1416
      %1418 = vmatmul.bf16.gmra.mxu0 %v946
      %v1419 = vpop.f32.mrf.mxu0
      %v1420 = vadd.f32 %v1331, %v1419
      %v1421 = vpop.f32.mrf.mxu0
      %v1422 = vadd.f32 %v1333, %v1421
      %1423 = vmatmul.bf16.gmra.mxu0 %v958
      %v1424 = vpop.f32.mrf.mxu0
      %v1425 = vadd.f32 %v1336, %v1424
      %v1426 = vpop.f32.mrf.mxu0
      %v1427 = vadd.f32 %v1338, %v1426
      %1428 = vmatmul.bf16.gmra.mxu0 %v970
      %v1429 = vpop.f32.mrf.mxu0
      %v1430 = vadd.f32 %v1341, %v1429
      %v1431 = vpop.f32.mrf.mxu0
      %v1432 = vadd.f32 %v1343, %v1431
      %1433 = vmatmul.bf16.gmra.mxu0 %v982
      %v1434 = vpop.f32.mrf.mxu0
      %v1435 = vadd.f32 %v1346, %v1434
      %v1436 = vpop.f32.mrf.mxu0
      %v1437 = vadd.f32 %v1348, %v1436
      %1438 = vmatmul.bf16.gmra.mxu0 %v994
      %v1439 = vpop.f32.mrf.mxu0
      %v1440 = vadd.f32 %v1351, %v1439
      %v1441 = vpop.f32.mrf.mxu0
      %v1442 = vadd.f32 %v1353, %v1441
      %1443 = vmatmul.bf16.gmra.mxu0 %v1006
      %v1444 = vpop.f32.mrf.mxu0
      %v1445 = vadd.f32 %v1356, %v1444
      %v1446 = vpop.f32.mrf.mxu0
      %v1447 = vadd.f32 %v1358, %v1446
      %1448 = vmatmul.bf16.gmra.mxu0 %v1018
      %v1449 = vpop.f32.mrf.mxu0
      %v1450 = vadd.f32 %v1361, %v1449
      %v1451 = vpop.f32.mrf.mxu0
      %v1452 = vadd.f32 %v1363, %v1451
      %1453 = vdwg.mxu0
      %1454 = vmatpush.bf16.msra.mxu0 %v1251
      %1455 = vmatpush.bf16.msra.mxu0 %v1250
      %1456 = vmatpush.bf16.msra.mxu0 %v1249
      %1457 = vmatpush.bf16.msra.mxu0 %v1248
      %1458 = vmatpush.bf16.msra.mxu0 %v1247
      %1459 = vmatpush.bf16.msra.mxu0 %v1246
      %1460 = vmatpush.bf16.msra.mxu0 %v1245
      %1461 = vmatpush.bf16.msra.mxu0 %v1244
      %1462 = vmatmul.bf16.gmra.mxu0 %v1073
      %v1463 = vpop.f32.mrf.mxu0
      %v1464 = vadd.f32 %v1375, %v1463
      %v1465 = vpop.f32.mrf.mxu0
      %v1466 = vadd.f32 %v1377, %v1465
      %1467 = vmatmul.bf16.gmra.mxu0 %v1070
      %v1468 = vpop.f32.mrf.mxu0
      %v1469 = vadd.f32 %v1380, %v1468
      %v1470 = vpop.f32.mrf.mxu0
      %v1471 = vadd.f32 %v1382, %v1470
      %1472 = vmatmul.bf16.gmra.mxu0 %v1076
      %v1473 = vpop.f32.mrf.mxu0
      %v1474 = vadd.f32 %v1385, %v1473
      %v1475 = vpop.f32.mrf.mxu0
      %v1476 = vadd.f32 %v1387, %v1475
      %1477 = vmatmul.bf16.gmra.mxu0 %v1079
      %v1478 = vpop.f32.mrf.mxu0
      %v1479 = vadd.f32 %v1390, %v1478
      %v1480 = vpop.f32.mrf.mxu0
      %v1481 = vadd.f32 %v1392, %v1480
      %1482 = vmatmul.bf16.gmra.mxu0 %v1082
      %v1483 = vpop.f32.mrf.mxu0
      %v1484 = vadd.f32 %v1395, %v1483
      %v1485 = vpop.f32.mrf.mxu0
      %v1486 = vadd.f32 %v1397, %v1485
      %1487 = vmatmul.bf16.gmra.mxu0 %v1085
      %v1488 = vpop.f32.mrf.mxu0
      %v1489 = vadd.f32 %v1400, %v1488
      %v1490 = vpop.f32.mrf.mxu0
      %v1491 = vadd.f32 %v1402, %v1490
      %1492 = vmatmul.bf16.gmra.mxu0 %v1088
      %v1493 = vpop.f32.mrf.mxu0
      %v1494 = vadd.f32 %v1405, %v1493
      %v1495 = vpop.f32.mrf.mxu0
      %v1496 = vadd.f32 %v1407, %v1495
      %1497 = vmatmul.bf16.gmra.mxu0 %v1091
      %v1498 = vpop.f32.mrf.mxu0
      %v1499 = vadd.f32 %v1410, %v1498
      %v1500 = vpop.f32.mrf.mxu0
      %v1501 = vadd.f32 %v1412, %v1500
      %1502 = vmatmul.bf16.gmra.mxu0 %v1094
      %v1503 = vpop.f32.mrf.mxu0
      %v1504 = vadd.f32 %v1415, %v1503
      %v1505 = vpop.f32.mrf.mxu0
      %v1506 = vadd.f32 %v1417, %v1505
      %1507 = vmatmul.bf16.gmra.mxu0 %v1097
      %v1508 = vpop.f32.mrf.mxu0
      %v1509 = vadd.f32 %v1420, %v1508
      %v1510 = vpop.f32.mrf.mxu0
      %v1511 = vadd.f32 %v1422, %v1510
      %1512 = vmatmul.bf16.gmra.mxu0 %v1100
      %v1513 = vpop.f32.mrf.mxu0
      %v1514 = vadd.f32 %v1425, %v1513
      %v1515 = vpop.f32.mrf.mxu0
      %v1516 = vadd.f32 %v1427, %v1515
      %1517 = vmatmul.bf16.gmra.mxu0 %v1103
      %v1518 = vpop.f32.mrf.mxu0
      %v1519 = vadd.f32 %v1430, %v1518
      %v1520 = vpop.f32.mrf.mxu0
      %v1521 = vadd.f32 %v1432, %v1520
      %1522 = vmatmul.bf16.gmra.mxu0 %v1106
      %v1523 = vpop.f32.mrf.mxu0
      %v1524 = vadd.f32 %v1435, %v1523
      %v1525 = vpop.f32.mrf.mxu0
      %v1526 = vadd.f32 %v1437, %v1525
      %1527 = vmatmul.bf16.gmra.mxu0 %v1109
      %v1528 = vpop.f32.mrf.mxu0
      %v1529 = vadd.f32 %v1440, %v1528
      %v1530 = vpop.f32.mrf.mxu0
      %v1531 = vadd.f32 %v1442, %v1530
      %1532 = vmatmul.bf16.gmra.mxu0 %v1112
      %v1533 = vpop.f32.mrf.mxu0
      %v1534 = vadd.f32 %v1445, %v1533
      %v1535 = vpop.f32.mrf.mxu0
      %v1536 = vadd.f32 %v1447, %v1535
      %1537 = vmatmul.bf16.gmra.mxu0 %v1115
      %v1538 = vpop.f32.mrf.mxu0
      %v1539 = vadd.f32 %v1450, %v1538
      %v1540 = vpop.f32.mrf.mxu0
      %v1541 = vadd.f32 %v1452, %v1540
      %1542 = vdwg.mxu0
      %v1591 = vunpack.c.l.b16 %v682
      %v1592 = vunpack.c.l.b16 %v683
      %v1593 = vunpack.c.l.b16 %v684
      %v1594 = vunpack.c.l.b16 %v685
      %v1595 = vunpack.c.l.b16 %v686
      %v1596 = vunpack.c.l.b16 %v687
      %v1597 = vunpack.c.l.b16 %v688
      %v1598 = vunpack.c.l.b16 %v689
      %v1599 = vunpack.c.l.b16 %v690
      %v1600 = vunpack.c.l.b16 %v691
      %v1601 = vunpack.c.l.b16 %v692
      %v1602 = vunpack.c.l.b16 %v693
      %v1603 = vunpack.c.l.b16 %v694
      %v1604 = vunpack.c.l.b16 %v695
      %v1605 = vunpack.c.l.b16 %v696
      %v1606 = vunpack.c.l.b16 %v697
      %v1607 = vunpack.c.l.b16 %v698
      %v1608 = vunpack.c.l.b16 %v699
      %v1609 = vunpack.c.l.b16 %v700
      %v1610 = vunpack.c.l.b16 %v701
      %v1611 = vunpack.c.l.b16 %v702
      %v1612 = vunpack.c.l.b16 %v703
      %v1613 = vunpack.c.l.b16 %v704
      %v1614 = vunpack.c.l.b16 %v705
      %v1615 = vunpack.c.l.b16 %v706
      %v1616 = vunpack.c.l.b16 %v707
      %v1617 = vunpack.c.l.b16 %v708
      %v1618 = vunpack.c.l.b16 %v709
      %v1619 = vunpack.c.l.b16 %v710
      %v1620 = vunpack.c.l.b16 %v711
      %v1621 = vunpack.c.l.b16 %v712
      %v1622 = vunpack.c.l.b16 %v713
      %v1623 = vunpack.c.l.b16 %v714
      %v1624 = vunpack.c.l.b16 %v715
      %v1625 = vunpack.c.l.b16 %v716
      %v1626 = vunpack.c.l.b16 %v717
      %v1627 = vunpack.c.l.b16 %v718
      %v1628 = vunpack.c.l.b16 %v719
      %v1629 = vunpack.c.l.b16 %v720
      %v1630 = vunpack.c.l.b16 %v721
      %v1631 = vunpack.c.l.b16 %v722
      %v1632 = vunpack.c.l.b16 %v723
      %v1633 = vunpack.c.l.b16 %v724
      %v1634 = vunpack.c.l.b16 %v725
      %v1635 = vunpack.c.l.b16 %v726
      %v1636 = vunpack.c.l.b16 %v727
      %v1637 = vunpack.c.l.b16 %v728
      %v1638 = vunpack.c.l.b16 %v729
      %v1639 = vpack.c.b16 %v1592, %v1591
      %v1640 = vpack.c.b16 %v1594, %v1593
      %v1641 = vpack.c.b16 %v1596, %v1595
      %v1642 = vpack.c.b16 %v1598, %v1597
      %v1643 = vpack.c.b16 %v1600, %v1599
      %v1644 = vpack.c.b16 %v1602, %v1601
      %v1645 = vpack.c.b16 %v1604, %v1603
      %v1646 = vpack.c.b16 %v1606, %v1605
      %v1647 = vpack.c.b16 %v1608, %v1607
      %v1648 = vpack.c.b16 %v1610, %v1609
      %v1649 = vpack.c.b16 %v1612, %v1611
      %v1650 = vpack.c.b16 %v1614, %v1613
      %v1651 = vpack.c.b16 %v1616, %v1615
      %v1652 = vpack.c.b16 %v1618, %v1617
      %v1653 = vpack.c.b16 %v1620, %v1619
      %v1654 = vpack.c.b16 %v1622, %v1621
      %v1655 = vpack.c.b16 %v1624, %v1623
      %v1656 = vpack.c.b16 %v1626, %v1625
      %v1657 = vpack.c.b16 %v1628, %v1627
      %v1658 = vpack.c.b16 %v1630, %v1629
      %v1659 = vpack.c.b16 %v1632, %v1631
      %v1660 = vpack.c.b16 %v1634, %v1633
      %v1661 = vpack.c.b16 %v1636, %v1635
      %v1662 = vpack.c.b16 %v1638, %v1637
      %1687 = vmatpush.bf16.msra.mxu0 %v1646
      %1688 = vmatpush.bf16.msra.mxu0 %v1645
      %1689 = vmatpush.bf16.msra.mxu0 %v1644
      %1690 = vmatpush.bf16.msra.mxu0 %v1643
      %1691 = vmatpush.bf16.msra.mxu0 %v1642
      %1692 = vmatpush.bf16.msra.mxu0 %v1641
      %1693 = vmatpush.bf16.msra.mxu0 %v1640
      %1694 = vmatpush.bf16.msra.mxu0 %v1639
      %1695 = vmatmul.bf16.gmra.mxu0 %v650
      %v1696 = vpop.f32.mrf.mxu0
      %v1697 = vadd.f32 %v1464, %v1696
      %v1698 = vpop.f32.mrf.mxu0
      %v1699 = vadd.f32 %v1466, %v1698
      %1700 = vmatmul.bf16.gmra.mxu0 %v651
      %v1701 = vpop.f32.mrf.mxu0
      %v1702 = vadd.f32 %v1469, %v1701
      %v1703 = vpop.f32.mrf.mxu0
      %v1704 = vadd.f32 %v1471, %v1703
      %1705 = vmatmul.bf16.gmra.mxu0 %v650
      %v1706 = vpop.f32.mrf.mxu0
      %v1707 = vadd.f32 %v1474, %v1706
      %v1708 = vpop.f32.mrf.mxu0
      %v1709 = vadd.f32 %v1476, %v1708
      %1710 = vmatmul.bf16.gmra.mxu0 %v652
      %v1711 = vpop.f32.mrf.mxu0
      %v1712 = vadd.f32 %v1479, %v1711
      %v1713 = vpop.f32.mrf.mxu0
      %v1714 = vadd.f32 %v1481, %v1713
      %1715 = vmatmul.bf16.gmra.mxu0 %v653
      %v1716 = vpop.f32.mrf.mxu0
      %v1717 = vadd.f32 %v1484, %v1716
      %v1718 = vpop.f32.mrf.mxu0
      %v1719 = vadd.f32 %v1486, %v1718
      %1720 = vmatmul.bf16.gmra.mxu0 %v654
      %v1721 = vpop.f32.mrf.mxu0
      %v1722 = vadd.f32 %v1489, %v1721
      %v1723 = vpop.f32.mrf.mxu0
      %v1724 = vadd.f32 %v1491, %v1723
      %1725 = vmatmul.bf16.gmra.mxu0 %v655
      %v1726 = vpop.f32.mrf.mxu0
      %v1727 = vadd.f32 %v1494, %v1726
      %v1728 = vpop.f32.mrf.mxu0
      %v1729 = vadd.f32 %v1496, %v1728
      %1730 = vmatmul.bf16.gmra.mxu0 %v656
      %v1731 = vpop.f32.mrf.mxu0
      %v1732 = vadd.f32 %v1499, %v1731
      %v1733 = vpop.f32.mrf.mxu0
      %v1734 = vadd.f32 %v1501, %v1733
      %1735 = vmatmul.bf16.gmra.mxu0 %v657
      %v1736 = vpop.f32.mrf.mxu0
      %v1737 = vadd.f32 %v1504, %v1736
      %v1738 = vpop.f32.mrf.mxu0
      %v1739 = vadd.f32 %v1506, %v1738
      %1740 = vmatmul.bf16.gmra.mxu0 %v658
      %v1741 = vpop.f32.mrf.mxu0
      %v1742 = vadd.f32 %v1509, %v1741
      %v1743 = vpop.f32.mrf.mxu0
      %v1744 = vadd.f32 %v1511, %v1743
      %1745 = vmatmul.bf16.gmra.mxu0 %v659
      %v1746 = vpop.f32.mrf.mxu0
      %v1747 = vadd.f32 %v1514, %v1746
      %v1748 = vpop.f32.mrf.mxu0
      %v1749 = vadd.f32 %v1516, %v1748
      %1750 = vmatmul.bf16.gmra.mxu0 %v660
      %v1751 = vpop.f32.mrf.mxu0
      %v1752 = vadd.f32 %v1519, %v1751
      %v1753 = vpop.f32.mrf.mxu0
      %v1754 = vadd.f32 %v1521, %v1753
      %1755 = vmatmul.bf16.gmra.mxu0 %v661
      %v1756 = vpop.f32.mrf.mxu0
      %v1757 = vadd.f32 %v1524, %v1756
      %v1758 = vpop.f32.mrf.mxu0
      %v1759 = vadd.f32 %v1526, %v1758
      %1760 = vmatmul.bf16.gmra.mxu0 %v662
      %v1761 = vpop.f32.mrf.mxu0
      %v1762 = vadd.f32 %v1529, %v1761
      %v1763 = vpop.f32.mrf.mxu0
      %v1764 = vadd.f32 %v1531, %v1763
      %1765 = vmatmul.bf16.gmra.mxu0 %v663
      %v1766 = vpop.f32.mrf.mxu0
      %v1767 = vadd.f32 %v1534, %v1766
      %v1768 = vpop.f32.mrf.mxu0
      %v1769 = vadd.f32 %v1536, %v1768
      %1770 = vmatmul.bf16.gmra.mxu0 %v664
      %v1771 = vpop.f32.mrf.mxu0
      %v1772 = vadd.f32 %v1539, %v1771
      %v1773 = vpop.f32.mrf.mxu0
      %v1774 = vadd.f32 %v1541, %v1773
      %1775 = vdwg.mxu0
      %1776 = vmatpush.bf16.msra.mxu0 %v1654
      %1777 = vmatpush.bf16.msra.mxu0 %v1653
      %1778 = vmatpush.bf16.msra.mxu0 %v1652
      %1779 = vmatpush.bf16.msra.mxu0 %v1651
      %1780 = vmatpush.bf16.msra.mxu0 %v1650
      %1781 = vmatpush.bf16.msra.mxu0 %v1649
      %1782 = vmatpush.bf16.msra.mxu0 %v1648
      %1783 = vmatpush.bf16.msra.mxu0 %v1647
      %1784 = vmatmul.bf16.gmra.mxu0 %v838
      %v1785 = vpop.f32.mrf.mxu0
      %v1786 = vadd.f32 %v1697, %v1785
      %v1787 = vpop.f32.mrf.mxu0
      %v1788 = vadd.f32 %v1699, %v1787
      %1789 = vmatmul.bf16.gmra.mxu0 %v850
      %v1790 = vpop.f32.mrf.mxu0
      %v1791 = vadd.f32 %v1702, %v1790
      %v1792 = vpop.f32.mrf.mxu0
      %v1793 = vadd.f32 %v1704, %v1792
      %1794 = vmatmul.bf16.gmra.mxu0 %v838
      %v1795 = vpop.f32.mrf.mxu0
      %v1796 = vadd.f32 %v1707, %v1795
      %v1797 = vpop.f32.mrf.mxu0
      %v1798 = vadd.f32 %v1709, %v1797
      %1799 = vmatmul.bf16.gmra.mxu0 %v862
      %v1800 = vpop.f32.mrf.mxu0
      %v1801 = vadd.f32 %v1712, %v1800
      %v1802 = vpop.f32.mrf.mxu0
      %v1803 = vadd.f32 %v1714, %v1802
      %1804 = vmatmul.bf16.gmra.mxu0 %v874
      %v1805 = vpop.f32.mrf.mxu0
      %v1806 = vadd.f32 %v1717, %v1805
      %v1807 = vpop.f32.mrf.mxu0
      %v1808 = vadd.f32 %v1719, %v1807
      %1809 = vmatmul.bf16.gmra.mxu0 %v886
      %v1810 = vpop.f32.mrf.mxu0
      %v1811 = vadd.f32 %v1722, %v1810
      %v1812 = vpop.f32.mrf.mxu0
      %v1813 = vadd.f32 %v1724, %v1812
      %1814 = vmatmul.bf16.gmra.mxu0 %v898
      %v1815 = vpop.f32.mrf.mxu0
      %v1816 = vadd.f32 %v1727, %v1815
      %v1817 = vpop.f32.mrf.mxu0
      %v1818 = vadd.f32 %v1729, %v1817
      %1819 = vmatmul.bf16.gmra.mxu0 %v910
      %v1820 = vpop.f32.mrf.mxu0
      %v1821 = vadd.f32 %v1732, %v1820
      %v1822 = vpop.f32.mrf.mxu0
      %v1823 = vadd.f32 %v1734, %v1822
      %1824 = vmatmul.bf16.gmra.mxu0 %v922
      %v1825 = vpop.f32.mrf.mxu0
      %v1826 = vadd.f32 %v1737, %v1825
      %v1827 = vpop.f32.mrf.mxu0
      %v1828 = vadd.f32 %v1739, %v1827
      %1829 = vmatmul.bf16.gmra.mxu0 %v934
      %v1830 = vpop.f32.mrf.mxu0
      %v1831 = vadd.f32 %v1742, %v1830
      %v1832 = vpop.f32.mrf.mxu0
      %v1833 = vadd.f32 %v1744, %v1832
      %1834 = vmatmul.bf16.gmra.mxu0 %v946
      %v1835 = vpop.f32.mrf.mxu0
      %v1836 = vadd.f32 %v1747, %v1835
      %v1837 = vpop.f32.mrf.mxu0
      %v1838 = vadd.f32 %v1749, %v1837
      %1839 = vmatmul.bf16.gmra.mxu0 %v958
      %v1840 = vpop.f32.mrf.mxu0
      %v1841 = vadd.f32 %v1752, %v1840
      %v1842 = vpop.f32.mrf.mxu0
      %v1843 = vadd.f32 %v1754, %v1842
      %1844 = vmatmul.bf16.gmra.mxu0 %v970
      %v1845 = vpop.f32.mrf.mxu0
      %v1846 = vadd.f32 %v1757, %v1845
      %v1847 = vpop.f32.mrf.mxu0
      %v1848 = vadd.f32 %v1759, %v1847
      %1849 = vmatmul.bf16.gmra.mxu0 %v982
      %v1850 = vpop.f32.mrf.mxu0
      %v1851 = vadd.f32 %v1762, %v1850
      %v1852 = vpop.f32.mrf.mxu0
      %v1853 = vadd.f32 %v1764, %v1852
      %1854 = vmatmul.bf16.gmra.mxu0 %v994
      %v1855 = vpop.f32.mrf.mxu0
      %v1856 = vadd.f32 %v1767, %v1855
      %v1857 = vpop.f32.mrf.mxu0
      %v1858 = vadd.f32 %v1769, %v1857
      %1859 = vmatmul.bf16.gmra.mxu0 %v1006
      %v1860 = vpop.f32.mrf.mxu0
      %v1861 = vadd.f32 %v1772, %v1860
      %v1862 = vpop.f32.mrf.mxu0
      %v1863 = vadd.f32 %v1774, %v1862
      %1864 = vdwg.mxu0
      %1865 = vmatpush.bf16.msra.mxu0 %v1662
      %1866 = vmatpush.bf16.msra.mxu0 %v1661
      %1867 = vmatpush.bf16.msra.mxu0 %v1660
      %1868 = vmatpush.bf16.msra.mxu0 %v1659
      %1869 = vmatpush.bf16.msra.mxu0 %v1658
      %1870 = vmatpush.bf16.msra.mxu0 %v1657
      %1871 = vmatpush.bf16.msra.mxu0 %v1656
      %1872 = vmatpush.bf16.msra.mxu0 %v1655
      %1873 = vmatmul.bf16.gmra.mxu0 %v1070
      %v1874 = vpop.f32.mrf.mxu0
      %v1875 = vadd.f32 %v1786, %v1874
      %v1876 = vpop.f32.mrf.mxu0
      %v1877 = vadd.f32 %v1788, %v1876
      %1878 = vmatmul.bf16.gmra.mxu0 %v1073
      %v1879 = vpop.f32.mrf.mxu0
      %v1880 = vadd.f32 %v1791, %v1879
      %v1881 = vpop.f32.mrf.mxu0
      %v1882 = vadd.f32 %v1793, %v1881
      %1883 = vmatmul.bf16.gmra.mxu0 %v1070
      %v1884 = vpop.f32.mrf.mxu0
      %v1885 = vadd.f32 %v1796, %v1884
      %v1886 = vpop.f32.mrf.mxu0
      %v1887 = vadd.f32 %v1798, %v1886
      %1888 = vmatmul.bf16.gmra.mxu0 %v1076
      %v1889 = vpop.f32.mrf.mxu0
      %v1890 = vadd.f32 %v1801, %v1889
      %v1891 = vpop.f32.mrf.mxu0
      %v1892 = vadd.f32 %v1803, %v1891
      %1893 = vmatmul.bf16.gmra.mxu0 %v1079
      %v1894 = vpop.f32.mrf.mxu0
      %v1895 = vadd.f32 %v1806, %v1894
      %v1896 = vpop.f32.mrf.mxu0
      %v1897 = vadd.f32 %v1808, %v1896
      %1898 = vmatmul.bf16.gmra.mxu0 %v1082
      %v1899 = vpop.f32.mrf.mxu0
      %v1900 = vadd.f32 %v1811, %v1899
      %v1901 = vpop.f32.mrf.mxu0
      %v1902 = vadd.f32 %v1813, %v1901
      %1903 = vmatmul.bf16.gmra.mxu0 %v1085
      %v1904 = vpop.f32.mrf.mxu0
      %v1905 = vadd.f32 %v1816, %v1904
      %v1906 = vpop.f32.mrf.mxu0
      %v1907 = vadd.f32 %v1818, %v1906
      %1908 = vmatmul.bf16.gmra.mxu0 %v1088
      %v1909 = vpop.f32.mrf.mxu0
      %v1910 = vadd.f32 %v1821, %v1909
      %v1911 = vpop.f32.mrf.mxu0
      %v1912 = vadd.f32 %v1823, %v1911
      %1913 = vmatmul.bf16.gmra.mxu0 %v1091
      %v1914 = vpop.f32.mrf.mxu0
      %v1915 = vadd.f32 %v1826, %v1914
      %v1916 = vpop.f32.mrf.mxu0
      %v1917 = vadd.f32 %v1828, %v1916
      %1918 = vmatmul.bf16.gmra.mxu0 %v1094
      %v1919 = vpop.f32.mrf.mxu0
      %v1920 = vadd.f32 %v1831, %v1919
      %v1921 = vpop.f32.mrf.mxu0
      %v1922 = vadd.f32 %v1833, %v1921
      %1923 = vmatmul.bf16.gmra.mxu0 %v1097
      %v1924 = vpop.f32.mrf.mxu0
      %v1925 = vadd.f32 %v1836, %v1924
      %v1926 = vpop.f32.mrf.mxu0
      %v1927 = vadd.f32 %v1838, %v1926
      %1928 = vmatmul.bf16.gmra.mxu0 %v1100
      %v1929 = vpop.f32.mrf.mxu0
      %v1930 = vadd.f32 %v1841, %v1929
      %v1931 = vpop.f32.mrf.mxu0
      %v1932 = vadd.f32 %v1843, %v1931
      %1933 = vmatmul.bf16.gmra.mxu0 %v1103
      %v1934 = vpop.f32.mrf.mxu0
      %v1935 = vadd.f32 %v1846, %v1934
      %v1936 = vpop.f32.mrf.mxu0
      %v1937 = vadd.f32 %v1848, %v1936
      %1938 = vmatmul.bf16.gmra.mxu0 %v1106
      %v1939 = vpop.f32.mrf.mxu0
      %v1940 = vadd.f32 %v1851, %v1939
      %v1941 = vpop.f32.mrf.mxu0
      %v1942 = vadd.f32 %v1853, %v1941
      %1943 = vmatmul.bf16.gmra.mxu0 %v1109
      %v1944 = vpop.f32.mrf.mxu0
      %v1945 = vadd.f32 %v1856, %v1944
      %v1946 = vpop.f32.mrf.mxu0
      %v1947 = vadd.f32 %v1858, %v1946
      %1948 = vmatmul.bf16.gmra.mxu0 %v1112
      %v1949 = vpop.f32.mrf.mxu0
      %v1950 = vadd.f32 %v1861, %v1949
      %v1951 = vpop.f32.mrf.mxu0
      %v1952 = vadd.f32 %v1863, %v1951
      %1953 = vdwg.mxu0
      %v2002 = vunpack.c.l.b16 %v778
      %v2003 = vunpack.c.l.b16 %v779
      %v2004 = vunpack.c.l.b16 %v780
      %v2005 = vunpack.c.l.b16 %v781
      %v2006 = vunpack.c.l.b16 %v782
      %v2007 = vunpack.c.l.b16 %v783
      %v2008 = vunpack.c.l.b16 %v784
      %v2009 = vunpack.c.l.b16 %v785
      %v2010 = vunpack.c.l.b16 %v786
      %v2011 = vunpack.c.l.b16 %v787
      %v2012 = vunpack.c.l.b16 %v788
      %v2013 = vunpack.c.l.b16 %v789
      %v2014 = vunpack.c.l.b16 %v790
      %v2015 = vunpack.c.l.b16 %v791
      %v2016 = vunpack.c.l.b16 %v792
      %v2017 = vunpack.c.l.b16 %v793
      %v2018 = vunpack.c.l.b16 %v794
      %v2019 = vunpack.c.l.b16 %v795
      %v2020 = vunpack.c.l.b16 %v796
      %v2021 = vunpack.c.l.b16 %v797
      %v2022 = vunpack.c.l.b16 %v798
      %v2023 = vunpack.c.l.b16 %v799
      %v2024 = vunpack.c.l.b16 %v800
      %v2025 = vunpack.c.l.b16 %v801
      %v2026 = vunpack.c.l.b16 %v802
      %v2027 = vunpack.c.l.b16 %v803
      %v2028 = vunpack.c.l.b16 %v804
      %v2029 = vunpack.c.l.b16 %v805
      %v2030 = vunpack.c.l.b16 %v806
      %v2031 = vunpack.c.l.b16 %v807
      %v2032 = vunpack.c.l.b16 %v808
      %v2033 = vunpack.c.l.b16 %v809
      %v2034 = vunpack.c.l.b16 %v810
      %v2035 = vunpack.c.l.b16 %v811
      %v2036 = vunpack.c.l.b16 %v812
      %v2037 = vunpack.c.l.b16 %v813
      %v2038 = vunpack.c.l.b16 %v814
      %v2039 = vunpack.c.l.b16 %v815
      %v2040 = vunpack.c.l.b16 %v816
      %v2041 = vunpack.c.l.b16 %v817
      %v2042 = vunpack.c.l.b16 %v818
      %v2043 = vunpack.c.l.b16 %v819
      %v2044 = vunpack.c.l.b16 %v820
      %v2045 = vunpack.c.l.b16 %v821
      %v2046 = vunpack.c.l.b16 %v822
      %v2047 = vunpack.c.l.b16 %v823
      %v2048 = vunpack.c.l.b16 %v824
      %v2049 = vunpack.c.l.b16 %v825
      %v2050 = vpack.c.b16 %v2003, %v2002
      %v2051 = vpack.c.b16 %v2005, %v2004
      %v2052 = vpack.c.b16 %v2007, %v2006
      %v2053 = vpack.c.b16 %v2009, %v2008
      %v2054 = vpack.c.b16 %v2011, %v2010
      %v2055 = vpack.c.b16 %v2013, %v2012
      %v2056 = vpack.c.b16 %v2015, %v2014
      %v2057 = vpack.c.b16 %v2017, %v2016
      %v2058 = vpack.c.b16 %v2019, %v2018
      %v2059 = vpack.c.b16 %v2021, %v2020
      %v2060 = vpack.c.b16 %v2023, %v2022
      %v2061 = vpack.c.b16 %v2025, %v2024
      %v2062 = vpack.c.b16 %v2027, %v2026
      %v2063 = vpack.c.b16 %v2029, %v2028
      %v2064 = vpack.c.b16 %v2031, %v2030
      %v2065 = vpack.c.b16 %v2033, %v2032
      %v2066 = vpack.c.b16 %v2035, %v2034
      %v2067 = vpack.c.b16 %v2037, %v2036
      %v2068 = vpack.c.b16 %v2039, %v2038
      %v2069 = vpack.c.b16 %v2041, %v2040
      %v2070 = vpack.c.b16 %v2043, %v2042
      %v2071 = vpack.c.b16 %v2045, %v2044
      %v2072 = vpack.c.b16 %v2047, %v2046
      %v2073 = vpack.c.b16 %v2049, %v2048
      %2098 = vmatpush.bf16.msra.mxu0 %v2057
      %2099 = vmatpush.bf16.msra.mxu0 %v2056
      %2100 = vmatpush.bf16.msra.mxu0 %v2055
      %2101 = vmatpush.bf16.msra.mxu0 %v2054
      %2102 = vmatpush.bf16.msra.mxu0 %v2053
      %2103 = vmatpush.bf16.msra.mxu0 %v2052
      %2104 = vmatpush.bf16.msra.mxu0 %v2051
      %2105 = vmatpush.bf16.msra.mxu0 %v2050
      %2106 = vmatmul.bf16.gmra.mxu0 %v650
      %v2107 = vpop.f32.mrf.mxu0
      %v2108 = vadd.f32 0.0, %v2107
      %v2109 = vpop.f32.mrf.mxu0
      %v2110 = vadd.f32 0.0, %v2109
      %2111 = vmatmul.bf16.gmra.mxu0 %v652
      %v2112 = vpop.f32.mrf.mxu0
      %v2113 = vadd.f32 0.0, %v2112
      %v2114 = vpop.f32.mrf.mxu0
      %v2115 = vadd.f32 0.0, %v2114
      %2116 = vmatmul.bf16.gmra.mxu0 %v653
      %v2117 = vpop.f32.mrf.mxu0
      %v2118 = vadd.f32 0.0, %v2117
      %v2119 = vpop.f32.mrf.mxu0
      %v2120 = vadd.f32 0.0, %v2119
      %2121 = vmatmul.bf16.gmra.mxu0 %v654
      %v2122 = vpop.f32.mrf.mxu0
      %v2123 = vadd.f32 0.0, %v2122
      %v2124 = vpop.f32.mrf.mxu0
      %v2125 = vadd.f32 0.0, %v2124
      %2126 = vmatmul.bf16.gmra.mxu0 %v655
      %v2127 = vpop.f32.mrf.mxu0
      %v2128 = vadd.f32 0.0, %v2127
      %v2129 = vpop.f32.mrf.mxu0
      %v2130 = vadd.f32 0.0, %v2129
      %2131 = vmatmul.bf16.gmra.mxu0 %v656
      %v2132 = vpop.f32.mrf.mxu0
      %v2133 = vadd.f32 0.0, %v2132
      %v2134 = vpop.f32.mrf.mxu0
      %v2135 = vadd.f32 0.0, %v2134
      %2136 = vmatmul.bf16.gmra.mxu0 %v657
      %v2137 = vpop.f32.mrf.mxu0
      %v2138 = vadd.f32 0.0, %v2137
      %v2139 = vpop.f32.mrf.mxu0
      %v2140 = vadd.f32 0.0, %v2139
      %2141 = vmatmul.bf16.gmra.mxu0 %v658
      %v2142 = vpop.f32.mrf.mxu0
      %v2143 = vadd.f32 0.0, %v2142
      %v2144 = vpop.f32.mrf.mxu0
      %v2145 = vadd.f32 0.0, %v2144
      %2146 = vmatmul.bf16.gmra.mxu0 %v659
      %v2147 = vpop.f32.mrf.mxu0
      %v2148 = vadd.f32 0.0, %v2147
      %v2149 = vpop.f32.mrf.mxu0
      %v2150 = vadd.f32 0.0, %v2149
      %2151 = vmatmul.bf16.gmra.mxu0 %v660
      %v2152 = vpop.f32.mrf.mxu0
      %v2153 = vadd.f32 0.0, %v2152
      %v2154 = vpop.f32.mrf.mxu0
      %v2155 = vadd.f32 0.0, %v2154
      %2156 = vmatmul.bf16.gmra.mxu0 %v661
      %v2157 = vpop.f32.mrf.mxu0
      %v2158 = vadd.f32 0.0, %v2157
      %v2159 = vpop.f32.mrf.mxu0
      %v2160 = vadd.f32 0.0, %v2159
      %2161 = vmatmul.bf16.gmra.mxu0 %v662
      %v2162 = vpop.f32.mrf.mxu0
      %v2163 = vadd.f32 0.0, %v2162
      %v2164 = vpop.f32.mrf.mxu0
      %v2165 = vadd.f32 0.0, %v2164
      %2166 = vmatmul.bf16.gmra.mxu0 %v663
      %v2167 = vpop.f32.mrf.mxu0
      %v2168 = vadd.f32 0.0, %v2167
      %v2169 = vpop.f32.mrf.mxu0
      %v2170 = vadd.f32 0.0, %v2169
      %2171 = vmatmul.bf16.gmra.mxu0 %v664
      %v2172 = vpop.f32.mrf.mxu0
      %v2173 = vadd.f32 0.0, %v2172
      %v2174 = vpop.f32.mrf.mxu0
      %v2175 = vadd.f32 0.0, %v2174
      %2176 = vmatmul.bf16.gmra.mxu0 %v665
      %v2177 = vpop.f32.mrf.mxu0
      %v2178 = vadd.f32 0.0, %v2177
      %v2179 = vpop.f32.mrf.mxu0
      %v2180 = vadd.f32 0.0, %v2179
      %2181 = vmatmul.bf16.gmra.mxu0 %v664
      %v2182 = vpop.f32.mrf.mxu0
      %v2183 = vadd.f32 0.0, %v2182
      %v2184 = vpop.f32.mrf.mxu0
      %v2185 = vadd.f32 0.0, %v2184
      %2186 = vdwg.mxu0
      %2187 = vmatpush.bf16.msra.mxu0 %v2065
      %2188 = vmatpush.bf16.msra.mxu0 %v2064
      %2189 = vmatpush.bf16.msra.mxu0 %v2063
      %2190 = vmatpush.bf16.msra.mxu0 %v2062
      %2191 = vmatpush.bf16.msra.mxu0 %v2061
      %2192 = vmatpush.bf16.msra.mxu0 %v2060
      %2193 = vmatpush.bf16.msra.mxu0 %v2059
      %2194 = vmatpush.bf16.msra.mxu0 %v2058
      %2195 = vmatmul.bf16.gmra.mxu0 %v838
      %v2196 = vpop.f32.mrf.mxu0
      %v2197 = vadd.f32 %v2108, %v2196
      %v2198 = vpop.f32.mrf.mxu0
      %v2199 = vadd.f32 %v2110, %v2198
      %2200 = vmatmul.bf16.gmra.mxu0 %v862
      %v2201 = vpop.f32.mrf.mxu0
      %v2202 = vadd.f32 %v2113, %v2201
      %v2203 = vpop.f32.mrf.mxu0
      %v2204 = vadd.f32 %v2115, %v2203
      %2205 = vmatmul.bf16.gmra.mxu0 %v874
      %v2206 = vpop.f32.mrf.mxu0
      %v2207 = vadd.f32 %v2118, %v2206
      %v2208 = vpop.f32.mrf.mxu0
      %v2209 = vadd.f32 %v2120, %v2208
      %2210 = vmatmul.bf16.gmra.mxu0 %v886
      %v2211 = vpop.f32.mrf.mxu0
      %v2212 = vadd.f32 %v2123, %v2211
      %v2213 = vpop.f32.mrf.mxu0
      %v2214 = vadd.f32 %v2125, %v2213
      %2215 = vmatmul.bf16.gmra.mxu0 %v898
      %v2216 = vpop.f32.mrf.mxu0
      %v2217 = vadd.f32 %v2128, %v2216
      %v2218 = vpop.f32.mrf.mxu0
      %v2219 = vadd.f32 %v2130, %v2218
      %2220 = vmatmul.bf16.gmra.mxu0 %v910
      %v2221 = vpop.f32.mrf.mxu0
      %v2222 = vadd.f32 %v2133, %v2221
      %v2223 = vpop.f32.mrf.mxu0
      %v2224 = vadd.f32 %v2135, %v2223
      %2225 = vmatmul.bf16.gmra.mxu0 %v922
      %v2226 = vpop.f32.mrf.mxu0
      %v2227 = vadd.f32 %v2138, %v2226
      %v2228 = vpop.f32.mrf.mxu0
      %v2229 = vadd.f32 %v2140, %v2228
      %2230 = vmatmul.bf16.gmra.mxu0 %v934
      %v2231 = vpop.f32.mrf.mxu0
      %v2232 = vadd.f32 %v2143, %v2231
      %v2233 = vpop.f32.mrf.mxu0
      %v2234 = vadd.f32 %v2145, %v2233
      %2235 = vmatmul.bf16.gmra.mxu0 %v946
      %v2236 = vpop.f32.mrf.mxu0
      %v2237 = vadd.f32 %v2148, %v2236
      %v2238 = vpop.f32.mrf.mxu0
      %v2239 = vadd.f32 %v2150, %v2238
      %2240 = vmatmul.bf16.gmra.mxu0 %v958
      %v2241 = vpop.f32.mrf.mxu0
      %v2242 = vadd.f32 %v2153, %v2241
      %v2243 = vpop.f32.mrf.mxu0
      %v2244 = vadd.f32 %v2155, %v2243
      %2245 = vmatmul.bf16.gmra.mxu0 %v970
      %v2246 = vpop.f32.mrf.mxu0
      %v2247 = vadd.f32 %v2158, %v2246
      %v2248 = vpop.f32.mrf.mxu0
      %v2249 = vadd.f32 %v2160, %v2248
      %2250 = vmatmul.bf16.gmra.mxu0 %v982
      %v2251 = vpop.f32.mrf.mxu0
      %v2252 = vadd.f32 %v2163, %v2251
      %v2253 = vpop.f32.mrf.mxu0
      %v2254 = vadd.f32 %v2165, %v2253
      %2255 = vmatmul.bf16.gmra.mxu0 %v994
      %v2256 = vpop.f32.mrf.mxu0
      %v2257 = vadd.f32 %v2168, %v2256
      %v2258 = vpop.f32.mrf.mxu0
      %v2259 = vadd.f32 %v2170, %v2258
      %2260 = vmatmul.bf16.gmra.mxu0 %v1006
      %v2261 = vpop.f32.mrf.mxu0
      %v2262 = vadd.f32 %v2173, %v2261
      %v2263 = vpop.f32.mrf.mxu0
      %v2264 = vadd.f32 %v2175, %v2263
      %2265 = vmatmul.bf16.gmra.mxu0 %v1018
      %v2266 = vpop.f32.mrf.mxu0
      %v2267 = vadd.f32 %v2178, %v2266
      %v2268 = vpop.f32.mrf.mxu0
      %v2269 = vadd.f32 %v2180, %v2268
      %2270 = vmatmul.bf16.gmra.mxu0 %v1006
      %v2271 = vpop.f32.mrf.mxu0
      %v2272 = vadd.f32 %v2183, %v2271
      %v2273 = vpop.f32.mrf.mxu0
      %v2274 = vadd.f32 %v2185, %v2273
      %2275 = vdwg.mxu0
      %2276 = vmatpush.bf16.msra.mxu0 %v2073
      %2277 = vmatpush.bf16.msra.mxu0 %v2072
      %2278 = vmatpush.bf16.msra.mxu0 %v2071
      %2279 = vmatpush.bf16.msra.mxu0 %v2070
      %2280 = vmatpush.bf16.msra.mxu0 %v2069
      %2281 = vmatpush.bf16.msra.mxu0 %v2068
      %2282 = vmatpush.bf16.msra.mxu0 %v2067
      %2283 = vmatpush.bf16.msra.mxu0 %v2066
      %2284 = vmatmul.bf16.gmra.mxu0 %v1070
      %v2285 = vpop.f32.mrf.mxu0
      %v2286 = vadd.f32 %v2197, %v2285
      %v2287 = vpop.f32.mrf.mxu0
      %v2288 = vadd.f32 %v2199, %v2287
      %2289 = vmatmul.bf16.gmra.mxu0 %v1076
      %v2290 = vpop.f32.mrf.mxu0
      %v2291 = vadd.f32 %v2202, %v2290
      %v2292 = vpop.f32.mrf.mxu0
      %v2293 = vadd.f32 %v2204, %v2292
      %2294 = vmatmul.bf16.gmra.mxu0 %v1079
      %v2295 = vpop.f32.mrf.mxu0
      %v2296 = vadd.f32 %v2207, %v2295
      %v2297 = vpop.f32.mrf.mxu0
      %v2298 = vadd.f32 %v2209, %v2297
      %2299 = vmatmul.bf16.gmra.mxu0 %v1082
      %v2300 = vpop.f32.mrf.mxu0
      %v2301 = vadd.f32 %v2212, %v2300
      %v2302 = vpop.f32.mrf.mxu0
      %v2303 = vadd.f32 %v2214, %v2302
      %2304 = vmatmul.bf16.gmra.mxu0 %v1085
      %v2305 = vpop.f32.mrf.mxu0
      %v2306 = vadd.f32 %v2217, %v2305
      %v2307 = vpop.f32.mrf.mxu0
      %v2308 = vadd.f32 %v2219, %v2307
      %2309 = vmatmul.bf16.gmra.mxu0 %v1088
      %v2310 = vpop.f32.mrf.mxu0
      %v2311 = vadd.f32 %v2222, %v2310
      %v2312 = vpop.f32.mrf.mxu0
      %v2313 = vadd.f32 %v2224, %v2312
      %2314 = vmatmul.bf16.gmra.mxu0 %v1091
      %v2315 = vpop.f32.mrf.mxu0
      %v2316 = vadd.f32 %v2227, %v2315
      %v2317 = vpop.f32.mrf.mxu0
      %v2318 = vadd.f32 %v2229, %v2317
      %2319 = vmatmul.bf16.gmra.mxu0 %v1094
      %v2320 = vpop.f32.mrf.mxu0
      %v2321 = vadd.f32 %v2232, %v2320
      %v2322 = vpop.f32.mrf.mxu0
      %v2323 = vadd.f32 %v2234, %v2322
      %2324 = vmatmul.bf16.gmra.mxu0 %v1097
      %v2325 = vpop.f32.mrf.mxu0
      %v2326 = vadd.f32 %v2237, %v2325
      %v2327 = vpop.f32.mrf.mxu0
      %v2328 = vadd.f32 %v2239, %v2327
      %2329 = vmatmul.bf16.gmra.mxu0 %v1100
      %v2330 = vpop.f32.mrf.mxu0
      %v2331 = vadd.f32 %v2242, %v2330
      %v2332 = vpop.f32.mrf.mxu0
      %v2333 = vadd.f32 %v2244, %v2332
      %2334 = vmatmul.bf16.gmra.mxu0 %v1103
      %v2335 = vpop.f32.mrf.mxu0
      %v2336 = vadd.f32 %v2247, %v2335
      %v2337 = vpop.f32.mrf.mxu0
      %v2338 = vadd.f32 %v2249, %v2337
      %2339 = vmatmul.bf16.gmra.mxu0 %v1106
      %v2340 = vpop.f32.mrf.mxu0
      %v2341 = vadd.f32 %v2252, %v2340
      %v2342 = vpop.f32.mrf.mxu0
      %v2343 = vadd.f32 %v2254, %v2342
      %2344 = vmatmul.bf16.gmra.mxu0 %v1109
      %v2345 = vpop.f32.mrf.mxu0
      %v2346 = vadd.f32 %v2257, %v2345
      %v2347 = vpop.f32.mrf.mxu0
      %v2348 = vadd.f32 %v2259, %v2347
      %2349 = vmatmul.bf16.gmra.mxu0 %v1112
      %v2350 = vpop.f32.mrf.mxu0
      %v2351 = vadd.f32 %v2262, %v2350
      %v2352 = vpop.f32.mrf.mxu0
      %v2353 = vadd.f32 %v2264, %v2352
      %2354 = vmatmul.bf16.gmra.mxu0 %v1115
      %v2355 = vpop.f32.mrf.mxu0
      %v2356 = vadd.f32 %v2267, %v2355
      %v2357 = vpop.f32.mrf.mxu0
      %v2358 = vadd.f32 %v2269, %v2357
      %2359 = vmatmul.bf16.gmra.mxu0 %v1112
      %v2360 = vpop.f32.mrf.mxu0
      %v2361 = vadd.f32 %v2272, %v2360
      %v2362 = vpop.f32.mrf.mxu0
      %v2363 = vadd.f32 %v2274, %v2362
      %2364 = vdwg.mxu0
      %v2365 = vadd.f32 %v1875, %v2286
      %v2366 = vadd.f32 %v1877, %v2288
      %v2367 = vadd.f32 %v1880, %v2291
      %v2368 = vadd.f32 %v1882, %v2293
      %v2369 = vadd.f32 %v1885, %v2296
      %v2370 = vadd.f32 %v1887, %v2298
      %v2371 = vadd.f32 %v1890, %v2301
      %v2372 = vadd.f32 %v1892, %v2303
      %v2373 = vadd.f32 %v1895, %v2306
      %v2374 = vadd.f32 %v1897, %v2308
      %v2375 = vadd.f32 %v1900, %v2311
      %v2376 = vadd.f32 %v1902, %v2313
      %v2377 = vadd.f32 %v1905, %v2316
      %v2378 = vadd.f32 %v1907, %v2318
      %v2379 = vadd.f32 %v1910, %v2321
      %v2380 = vadd.f32 %v1912, %v2323
      %v2381 = vadd.f32 %v1915, %v2326
      %v2382 = vadd.f32 %v1917, %v2328
      %v2383 = vadd.f32 %v1920, %v2331
      %v2384 = vadd.f32 %v1922, %v2333
      %v2385 = vadd.f32 %v1925, %v2336
      %v2386 = vadd.f32 %v1927, %v2338
      %v2387 = vadd.f32 %v1930, %v2341
      %v2388 = vadd.f32 %v1932, %v2343
      %v2389 = vadd.f32 %v1935, %v2346
      %v2390 = vadd.f32 %v1937, %v2348
      %v2391 = vadd.f32 %v1940, %v2351
      %v2392 = vadd.f32 %v1942, %v2353
      %v2393 = vadd.f32 %v1945, %v2356
      %v2394 = vadd.f32 %v1947, %v2358
      %v2395 = vadd.f32 %v1950, %v2361
      %v2396 = vadd.f32 %v1952, %v2363
      %v2397 = vpack.c.bf16 %v2365, %v2365
      %v2398 = vpack.c.bf16 %v2366, %v2366
      %v2399 = vpack.c.bf16 %v2367, %v2367
      %v2400 = vpack.c.bf16 %v2368, %v2368
      %v2401 = vpack.c.bf16 %v2369, %v2369
      %v2402 = vpack.c.bf16 %v2370, %v2370
      %v2403 = vpack.c.bf16 %v2371, %v2371
      %v2404 = vpack.c.bf16 %v2372, %v2372
      %v2405 = vpack.c.bf16 %v2373, %v2373
      %v2406 = vpack.c.bf16 %v2374, %v2374
      %v2407 = vpack.c.bf16 %v2375, %v2375
      %v2408 = vpack.c.bf16 %v2376, %v2376
      %v2409 = vpack.c.bf16 %v2377, %v2377
      %v2410 = vpack.c.bf16 %v2378, %v2378
      %v2411 = vpack.c.bf16 %v2379, %v2379
      %v2412 = vpack.c.bf16 %v2380, %v2380
      %v2413 = vpack.c.bf16 %v2381, %v2381
      %v2414 = vpack.c.bf16 %v2382, %v2382
      %v2415 = vpack.c.bf16 %v2383, %v2383
      %v2416 = vpack.c.bf16 %v2384, %v2384
      %v2417 = vpack.c.bf16 %v2385, %v2385
      %v2418 = vpack.c.bf16 %v2386, %v2386
      %v2419 = vpack.c.bf16 %v2387, %v2387
      %v2420 = vpack.c.bf16 %v2388, %v2388
      %v2421 = vpack.c.bf16 %v2389, %v2389
      %v2422 = vpack.c.bf16 %v2390, %v2390
      %v2423 = vpack.c.bf16 %v2391, %v2391
      %v2424 = vpack.c.bf16 %v2392, %v2392
      %v2425 = vpack.c.bf16 %v2393, %v2393
      %v2426 = vpack.c.bf16 %v2394, %v2394
      %v2427 = vpack.c.bf16 %v2395, %v2395
      %v2428 = vpack.c.bf16 %v2396, %v2396
      %2429 = vst [vmem:[%s208] sm:$0xf] %v2397
      %2430 = vst [vmem:[%s208 + $0x4] sm:$0xf] %v2398
      %2431 = vst [vmem:[%s208 + $0x8] sm:$0xf] %v2399
      %2432 = vst [vmem:[%s208 + $0xc] sm:$0xf] %v2400
      %2433 = vst [vmem:[%s208 + $0x10] sm:$0xf] %v2401
      %2434 = vst [vmem:[%s208 + $0x14] sm:$0xf] %v2402
      %2435 = vst [vmem:[%s208 + $0x18] sm:$0xf] %v2403
      %2436 = vst [vmem:[%s208 + $0x1c] sm:$0xf] %v2404
      %2437 = vst [vmem:[%s208 + $0x20] sm:$0xf] %v2405
      %2438 = vst [vmem:[%s208 + $0x24] sm:$0xf] %v2406
      %2439 = vst [vmem:[%s208 + $0x28] sm:$0xf] %v2407
      %2440 = vst [vmem:[%s208 + $0x2c] sm:$0xf] %v2408
      %2441 = vst [vmem:[%s208 + $0x30] sm:$0xf] %v2409
      %2442 = vst [vmem:[%s208 + $0x34] sm:$0xf] %v2410
      %2443 = vst [vmem:[%s208 + $0x38] sm:$0xf] %v2411
      %2444 = vst [vmem:[%s208 + $0x3c] sm:$0xf] %v2412
      %2445 = vst [vmem:[%s208 + $0x40] sm:$0xf] %v2413
      %2446 = vst [vmem:[%s208 + $0x44] sm:$0xf] %v2414
      %2447 = vst [vmem:[%s208 + $0x48] sm:$0xf] %v2415
      %2448 = vst [vmem:[%s208 + $0x4c] sm:$0xf] %v2416
      %2449 = vst [vmem:[%s208 + $0x50] sm:$0xf] %v2417
      %2450 = vst [vmem:[%s208 + $0x54] sm:$0xf] %v2418
      %2451 = vst [vmem:[%s208 + $0x58] sm:$0xf] %v2419
      %2452 = vst [vmem:[%s208 + $0x5c] sm:$0xf] %v2420
      %2453 = vst [vmem:[%s208 + $0x60] sm:$0xf] %v2421
      %2454 = vst [vmem:[%s208 + $0x64] sm:$0xf] %v2422
      %2455 = vst [vmem:[%s208 + $0x68] sm:$0xf] %v2423
      %2456 = vst [vmem:[%s208 + $0x6c] sm:$0xf] %v2424
      %2457 = vst [vmem:[%s208 + $0x70] sm:$0xf] %v2425
      %2458 = vst [vmem:[%s208 + $0x74] sm:$0xf] %v2426
      %2459 = vst [vmem:[%s208 + $0x78] sm:$0xf] %v2427
      %2460 = vst [vmem:[%s208 + $0x7c] sm:$0xf] %v2428
      %v2461 = vadd.f32 %v2365, %v2366
      %v2462 = vadd.f32 %v2461, %v2367
      %v2463 = vadd.f32 %v2462, %v2368
      %v2464 = vadd.f32 %v2463, %v2369
      %v2465 = vadd.f32 %v2464, %v2370
      %v2466 = vadd.f32 %v2465, %v2371
      %v2467 = vadd.f32 %v2466, %v2372
      %v2468 = vadd.f32 %v2467, %v2373
      %v2469 = vadd.f32 %v2468, %v2374
      %v2470 = vadd.f32 %v2469, %v2375
      %v2471 = vadd.f32 %v2470, %v2376
      %v2472 = vadd.f32 %v2471, %v2377
      %v2473 = vadd.f32 %v2472, %v2378
      %v2474 = vadd.f32 %v2473, %v2379
      %v2475 = vadd.f32 %v2474, %v2380
      %v2476 = vadd.f32 %v2475, %v2381
      %v2477 = vadd.f32 %v2476, %v2382
      %v2478 = vadd.f32 %v2477, %v2383
      %v2479 = vadd.f32 %v2478, %v2384
      %v2480 = vadd.f32 %v2479, %v2385
      %v2481 = vadd.f32 %v2480, %v2386
      %v2482 = vadd.f32 %v2481, %v2387
      %v2483 = vadd.f32 %v2482, %v2388
      %v2484 = vadd.f32 %v2483, %v2389
      %v2485 = vadd.f32 %v2484, %v2390
      %v2486 = vadd.f32 %v2485, %v2391
      %v2487 = vadd.f32 %v2486, %v2392
      %v2488 = vadd.f32 %v2487, %v2393
      %v2489 = vadd.f32 %v2488, %v2394
      %v2490 = vadd.f32 %v2489, %v2395
      %v2491 = vadd.f32 %v2490, %v2396
      %v2492 = vrot.slane %v2491, 4
      %v2493 = vadd.f32 %v2491, %v2492
      %v2494 = vrot.slane %v2493, 2
      %v2495 = vadd.f32 %v2493, %v2494
      %v2496 = vrot.slane %v2495, 1
      %v2497 = vadd.f32 %v2495, %v2496
      %v2498 = vmul.f32 %v2497, 0.00390625
      %2499 = vst [vmem:[%s211] sm:$0x1] %v2497
      %v2500 = vsub.f32 %v2365, %v2498
      %v2501 = vsub.f32 %v2366, %v2498
      %v2502 = vsub.f32 %v2367, %v2498
      %v2503 = vsub.f32 %v2368, %v2498
      %v2504 = vsub.f32 %v2369, %v2498
      %v2505 = vsub.f32 %v2370, %v2498
      %v2506 = vsub.f32 %v2371, %v2498
      %v2507 = vsub.f32 %v2372, %v2498
      %v2508 = vsub.f32 %v2373, %v2498
      %v2509 = vsub.f32 %v2374, %v2498
      %v2510 = vsub.f32 %v2375, %v2498
      %v2511 = vsub.f32 %v2376, %v2498
      %v2512 = vsub.f32 %v2377, %v2498
      %v2513 = vsub.f32 %v2378, %v2498
      %v2514 = vsub.f32 %v2379, %v2498
      %v2515 = vsub.f32 %v2380, %v2498
      %v2516 = vsub.f32 %v2381, %v2498
      %v2517 = vsub.f32 %v2382, %v2498
      %v2518 = vsub.f32 %v2383, %v2498
      %v2519 = vsub.f32 %v2384, %v2498
      %v2520 = vsub.f32 %v2385, %v2498
      %v2521 = vsub.f32 %v2386, %v2498
      %v2522 = vsub.f32 %v2387, %v2498
      %v2523 = vsub.f32 %v2388, %v2498
      %v2524 = vsub.f32 %v2389, %v2498
      %v2525 = vsub.f32 %v2390, %v2498
      %v2526 = vsub.f32 %v2391, %v2498
      %v2527 = vsub.f32 %v2392, %v2498
      %v2528 = vsub.f32 %v2393, %v2498
      %v2529 = vsub.f32 %v2394, %v2498
      %v2530 = vsub.f32 %v2395, %v2498
      %v2531 = vsub.f32 %v2396, %v2498
      %v2532 = vmul.f32 %v2500, %v2500
      %v2533 = vmul.f32 %v2501, %v2501
      %v2534 = vmul.f32 %v2502, %v2502
      %v2535 = vmul.f32 %v2503, %v2503
      %v2536 = vmul.f32 %v2504, %v2504
      %v2537 = vmul.f32 %v2505, %v2505
      %v2538 = vmul.f32 %v2506, %v2506
      %v2539 = vmul.f32 %v2507, %v2507
      %v2540 = vmul.f32 %v2508, %v2508
      %v2541 = vmul.f32 %v2509, %v2509
      %v2542 = vmul.f32 %v2510, %v2510
      %v2543 = vmul.f32 %v2511, %v2511
      %v2544 = vmul.f32 %v2512, %v2512
      %v2545 = vmul.f32 %v2513, %v2513
      %v2546 = vmul.f32 %v2514, %v2514
      %v2547 = vmul.f32 %v2515, %v2515
      %v2548 = vmul.f32 %v2516, %v2516
      %v2549 = vmul.f32 %v2517, %v2517
      %v2550 = vmul.f32 %v2518, %v2518
      %v2551 = vmul.f32 %v2519, %v2519
      %v2552 = vmul.f32 %v2520, %v2520
      %v2553 = vmul.f32 %v2521, %v2521
      %v2554 = vmul.f32 %v2522, %v2522
      %v2555 = vmul.f32 %v2523, %v2523
      %v2556 = vmul.f32 %v2524, %v2524
      %v2557 = vmul.f32 %v2525, %v2525
      %v2558 = vmul.f32 %v2526, %v2526
      %v2559 = vmul.f32 %v2527, %v2527
      %v2560 = vmul.f32 %v2528, %v2528
      %v2561 = vmul.f32 %v2529, %v2529
      %v2562 = vmul.f32 %v2530, %v2530
      %v2563 = vmul.f32 %v2531, %v2531
      %v2564 = vadd.f32 %v2532, %v2533
      %v2565 = vadd.f32 %v2564, %v2534
      %v2566 = vadd.f32 %v2565, %v2535
      %v2567 = vadd.f32 %v2566, %v2536
      %v2568 = vadd.f32 %v2567, %v2537
      %v2569 = vadd.f32 %v2568, %v2538
      %v2570 = vadd.f32 %v2569, %v2539
      %v2571 = vadd.f32 %v2570, %v2540
      %v2572 = vadd.f32 %v2571, %v2541
      %v2573 = vadd.f32 %v2572, %v2542
      %v2574 = vadd.f32 %v2573, %v2543
      %v2575 = vadd.f32 %v2574, %v2544
      %v2576 = vadd.f32 %v2575, %v2545
      %v2577 = vadd.f32 %v2576, %v2546
      %v2578 = vadd.f32 %v2577, %v2547
      %v2579 = vadd.f32 %v2578, %v2548
      %v2580 = vadd.f32 %v2579, %v2549
      %v2581 = vadd.f32 %v2580, %v2550
      %v2582 = vadd.f32 %v2581, %v2551
      %v2583 = vadd.f32 %v2582, %v2552
      %v2584 = vadd.f32 %v2583, %v2553
      %v2585 = vadd.f32 %v2584, %v2554
      %v2586 = vadd.f32 %v2585, %v2555
      %v2587 = vadd.f32 %v2586, %v2556
      %v2588 = vadd.f32 %v2587, %v2557
      %v2589 = vadd.f32 %v2588, %v2558
      %v2590 = vadd.f32 %v2589, %v2559
      %v2591 = vadd.f32 %v2590, %v2560
      %v2592 = vadd.f32 %v2591, %v2561
      %v2593 = vadd.f32 %v2592, %v2562
      %v2594 = vadd.f32 %v2593, %v2563
      %v2595 = vrot.slane %v2594, 4
      %v2596 = vadd.f32 %v2594, %v2595
      %v2597 = vrot.slane %v2596, 2
      %v2598 = vadd.f32 %v2596, %v2597
      %v2599 = vrot.slane %v2598, 1
      %v2600 = vadd.f32 %v2598, %v2599
      %2601 = vst [vmem:[%s214] sm:$0x1] %v2600
      %p2602 = scmp.lt.s32.totalorder %s16, 1
      %s2603 = scalar_select %p2602, %s16, 1
      %s2604 = smul.addr %s2603, 32
      %s2605 = smul.addr %s2604, 4
      %s2606 = scalar_lea.vmem %s2, %s2605
      %p2607 = scmp.lt.s32.totalorder %s16, 1
      %s2608 = scalar_select %p2607, %s16, 1
      %s2609 = scalar_lea.vmem %s3, %s2608
      %p2610 = scmp.lt.s32.totalorder %s16, 1
      %s2611 = scalar_select %p2610, %s16, 1
      %s2612 = scalar_lea.vmem %s4, %s2611
      // Predicated region
      $region29: #{resnet_block.2} parent=27 // pred_check
        %p2613 = pneg %p81
      $region30: #{resnet_block.2} parent=27 // pred_check_branch
        %2615 = sbr.rel (%p2613) target = $region32
      $region31: #{resnet_block.2} parent=27 // pred_region
        _
      $region32: #{resnet_block.2} parent=27 // pred_fallthru
        _
      // Predicated region
      $region33: #{resnet_block.2} parent=27 // pred_check
        %p2616 = pneg %p107
      $region34: #{resnet_block.2} parent=27 // pred_check_branch
        %2618 = sbr.rel (%p2616) target = $region36
      $region35: #{resnet_block.2} parent=27 // pred_region
        _
      $region36: #{resnet_block.2} parent=27 // pred_fallthru
        _
      // Predicated region
      $region37: #{resnet_block.2} parent=27 // pred_check
        %p2619 = pneg %p133
      $region38: #{resnet_block.2} parent=27 // pred_check_branch
        %2621 = sbr.rel (%p2619) target = $region40
      $region39: #{resnet_block.2} parent=27 // pred_region
        _
      $region40: #{resnet_block.2} parent=27 // pred_fallthru
        _
    $region28: #{resnet_block.2} parent=5 // pred_fallthru
      _
    %p2622 = scmp.le.s32.totalorder 2, %s11
    // Predicated region
    $region41: #{resnet_block.2} parent=5 // pred_check
      %p2623 = pneg %p2622
    $region42: #{resnet_block.2} parent=5 // pred_check_branch
      %2625 = sbr.rel (%p2623) target = $region44
    $region43: #{resnet_block.2} parent=5 // pred_region
      %s2626 = ssub.s32 %s11, 2
      // Predicated region
      $region45: #{resnet_block.2} parent=43 // pred_check
        %p2627 = pneg %p87
      $region46: #{resnet_block.2} parent=43 // pred_check_branch
        %2629 = sbr.rel (%p2627) target = $region48
      $region47: #{resnet_block.2} parent=43 // pred_region
        %p2630 = scmp.lt.s32.totalorder %s17, 1
        %s2631 = scalar_select %p2630, %s17, 1
        %s2632 = smul.addr %s2631, 32
        %s2633 = smul.addr %s2632, 4
        %s2634 = scalar_lea.vmem %s2, %s2633
      $region48: #{resnet_block.2} parent=43 // pred_fallthru
        _
      // Predicated region
      $region49: #{resnet_block.2} parent=43 // pred_check
        %p2635 = pneg %p113
      $region50: #{resnet_block.2} parent=43 // pred_check_branch
        %2637 = sbr.rel (%p2635) target = $region52
      $region51: #{resnet_block.2} parent=43 // pred_region
        %p2638 = scmp.lt.s32.totalorder %s17, 1
        %s2639 = scalar_select %p2638, %s17, 1
        %s2640 = scalar_lea.vmem %s3, %s2639
      $region52: #{resnet_block.2} parent=43 // pred_fallthru
        _
      // Predicated region
      $region53: #{resnet_block.2} parent=43 // pred_check
        %p2641 = pneg %p139
      $region54: #{resnet_block.2} parent=43 // pred_check_branch
        %2643 = sbr.rel (%p2641) target = $region56
      $region55: #{resnet_block.2} parent=43 // pred_region
        %p2644 = scmp.lt.s32.totalorder %s17, 1
        %s2645 = scalar_select %p2644, %s17, 1
        %s2646 = scalar_lea.vmem %s4, %s2645
      $region56: #{resnet_block.2} parent=43 // pred_fallthru
        _
    $region44: #{resnet_block.2} parent=5 // pred_fallthru
      _
  $region6: #{resnet_block.2} parent=0 // loop_footer
    %s15 = sadd.s32 1, %s11
  $region7: #{resnet_block.2} parent=0 // loop_footer_branch
    %10 = sbr.rel target = $region3
  $region8: #{resnet_block.2} parent=0 // loop_exit
    _

// kernel: resnet_block.3
$region0: #{resnet_block.3}
  #allocation0 [shape = 'u32[]', space=smem, size = 0x4, offset = 0x4, fixed_abs, tag = 'smem constant byte address 0x4 - core index']
  #allocation1 [shape = 'u32[72,128]{1,0:T(1,128)}', space=vmem, size = 0x9000, scoped, tag = 'internal scratch']
  %s0 = inlined_call_operand.vmem [shape: bf16[2,16,16,128], index: 0, kind: input, shape index: {}]
  %s1 = inlined_call_operand.vmem [shape: bf16[3,384,128], index: 1, kind: input, shape index: {}]
  %s2 = inlined_call_operand.vmem [shape: bf16[1,128], index: 2, kind: input, shape index: {}]
  %s3 = inlined_call_operand.vmem [shape: bf16[1,128], index: 3, kind: input, shape index: {}]
  %s4 = inlined_call_operand.vmem [shape: f32[1,128], index: 4, kind: input, shape index: {}]
  %s5 = inlined_call_operand.vmem [shape: bf16[2,16,16,128], index: 5, kind: input, shape index: {}]
  %s6 = inlined_call_operand.vmem [shape: f32[2,16,16,128], index: 6, kind: output, shape index: {}]
  %s7 = sld [smem:[#allocation0]]
  $region57: #{resnet_block.3} parent=0
    _
  %s9 = ssub.s32 1, %s7
  %s10 = scalar_select 0, %s9, %s7
  loop: start=0, step=1, limit=4
  $region2: #{resnet_block.3} parent=0 // loop_pre_header
    _
  $region3: #{resnet_block.3} parent=0 // loop_header
    %s12 = sphi 0, %s16
    %p13 = scmp.ge.s32.totalorder %s12, 4
    %s22 = sphi 0, %s24
    %s25 = sphi 0, %s22
    %s26 = sphi 0, %s25
    %s42 = sphi 0, %s26
    %s46 = sphi 0, %s46
    %s48 = sphi 0, %s46
    %s49 = sphi 0, %s48
    %s63 = sphi 0, %s49
    %s67 = sphi 0, %s67
    %s69 = sphi 0, %s67
    %s70 = sphi 0, %s69
    %s84 = sphi 0, %s70
    %s88 = sphi 0, %s88
    %s90 = sphi 0, %s88
    %s91 = sphi 0, %s90
    %s105 = sphi 0, %s91
    %s109 = sphi 0, %s109
    %s111 = sphi 0, %s109
    %s112 = sphi 0, %s111
    %s126 = sphi 0, %s112
    %s132 = sphi 0, %s134
    %s135 = sphi 0, %s132
    %s136 = sphi 0, %s135
    %s152 = sphi 0, %s136
    %s158 = sphi 0, %s160
    %s161 = sphi 0, %s158
    %s162 = sphi 0, %s161
    %s178 = sphi 0, %s162
  $region4: #{resnet_block.3} parent=0 // loop_header_branch
    %15 = sbr.rel (%p13) target = $region8
  $region5: #{resnet_block.3} parent=0 // loop_body
    %s17 = ssub.s32 %s12, 1
    %s18 = ssub.s32 %s12, 2
    %s19 = sadd.s32 %s12, 1
    %s20 = ssub.s32 %s12, %s19
    %p21 = scmp.eq.s32.totalorder %s20, 0
    %s23 = sadd.s32 %s22, 1
    %s24 = scalar_select %p21, %s22, %s23
    %p27 = pneg %p21
    %p28 = scmp.eq.s32.totalorder %s12, 1
    %p29 = por %p27, %p28
    %p30 = scmp.ne.s32.totalorder %s22, %s25
    %p31 = scmp.eq.s32.totalorder %s12, 0
    %p32 = por %p30, %p31
    %p33 = scmp.ne.s32.totalorder %s22, %s25
    %p34 = scmp.eq.s32.totalorder %s17, 1
    %p35 = por %p33, %p34
    %p36 = scmp.ne.s32.totalorder %s25, %s26
    %p37 = scmp.eq.s32.totalorder %s17, 0
    %p38 = por %p36, %p37
    %p39 = scmp.ne.s32.totalorder %s25, %s26
    %p40 = scmp.eq.s32.totalorder %s18, 1
    %p41 = por %p39, %p40
    %p43 = scmp.ne.s32.totalorder %s26, %s42
    %p44 = scmp.eq.s32.totalorder %s18, 0
    %p45 = por %p43, %p44
    %s47 = sadd.s32 %s46, 1
    %p50 = scmp.eq.s32.totalorder %s12, 1
    %p51 = scmp.ne.s32.totalorder %s46, %s48
    %p52 = scmp.eq.s32.totalorder %s12, 0
    %p53 = por %p51, %p52
    %p54 = scmp.ne.s32.totalorder %s46, %s48
    %p55 = scmp.eq.s32.totalorder %s17, 1
    %p56 = por %p54, %p55
    %p57 = scmp.ne.s32.totalorder %s48, %s49
    %p58 = scmp.eq.s32.totalorder %s17, 0
    %p59 = por %p57, %p58
    %p60 = scmp.ne.s32.totalorder %s48, %s49
    %p61 = scmp.eq.s32.totalorder %s18, 1
    %p62 = por %p60, %p61
    %p64 = scmp.ne.s32.totalorder %s49, %s63
    %p65 = scmp.eq.s32.totalorder %s18, 0
    %p66 = por %p64, %p65
    %s68 = sadd.s32 %s67, 1
    %p71 = scmp.eq.s32.totalorder %s12, 1
    %p72 = scmp.ne.s32.totalorder %s67, %s69
    %p73 = scmp.eq.s32.totalorder %s12, 0
    %p74 = por %p72, %p73
    %p75 = scmp.ne.s32.totalorder %s67, %s69
    %p76 = scmp.eq.s32.totalorder %s17, 1
    %p77 = por %p75, %p76
    %p78 = scmp.ne.s32.totalorder %s69, %s70
    %p79 = scmp.eq.s32.totalorder %s17, 0
    %p80 = por %p78, %p79
    %p81 = scmp.ne.s32.totalorder %s69, %s70
    %p82 = scmp.eq.s32.totalorder %s18, 1
    %p83 = por %p81, %p82
    %p85 = scmp.ne.s32.totalorder %s70, %s84
    %p86 = scmp.eq.s32.totalorder %s18, 0
    %p87 = por %p85, %p86
    %s89 = sadd.s32 %s88, 1
    %p92 = scmp.eq.s32.totalorder %s12, 1
    %p93 = scmp.ne.s32.totalorder %s88, %s90
    %p94 = scmp.eq.s32.totalorder %s12, 0
    %p95 = por %p93, %p94
    %p96 = scmp.ne.s32.totalorder %s88, %s90
    %p97 = scmp.eq.s32.totalorder %s17, 1
    %p98 = por %p96, %p97
    %p99 = scmp.ne.s32.totalorder %s90, %s91
    %p100 = scmp.eq.s32.totalorder %s17, 0
    %p101 = por %p99, %p100
    %p102 = scmp.ne.s32.totalorder %s90, %s91
    %p103 = scmp.eq.s32.totalorder %s18, 1
    %p104 = por %p102, %p103
    %p106 = scmp.ne.s32.totalorder %s91, %s105
    %p107 = scmp.eq.s32.totalorder %s18, 0
    %p108 = por %p106, %p107
    %s110 = sadd.s32 %s109, 1
    %p113 = scmp.eq.s32.totalorder %s12, 1
    %p114 = scmp.ne.s32.totalorder %s109, %s111
    %p115 = scmp.eq.s32.totalorder %s12, 0
    %p116 = por %p114, %p115
    %p117 = scmp.ne.s32.totalorder %s109, %s111
    %p118 = scmp.eq.s32.totalorder %s17, 1
    %p119 = por %p117, %p118
    %p120 = scmp.ne.s32.totalorder %s111, %s112
    %p121 = scmp.eq.s32.totalorder %s17, 0
    %p122 = por %p120, %p121
    %p123 = scmp.ne.s32.totalorder %s111, %s112
    %p124 = scmp.eq.s32.totalorder %s18, 1
    %p125 = por %p123, %p124
    %p127 = scmp.ne.s32.totalorder %s112, %s126
    %p128 = scmp.eq.s32.totalorder %s18, 0
    %p129 = por %p127, %p128
    %s130 = ssub.s32 %s12, %s19
    %p131 = scmp.eq.s32.totalorder %s130, 0
    %s133 = sadd.s32 %s132, 1
    %s134 = scalar_select %p131, %s132, %s133
    %p137 = pneg %p131
    %p138 = scmp.eq.s32.totalorder %s12, 1
    %p139 = por %p137, %p138
    %p140 = scmp.ne.s32.totalorder %s132, %s135
    %p141 = scmp.eq.s32.totalorder %s12, 0
    %p142 = por %p140, %p141
    %p143 = scmp.ne.s32.totalorder %s132, %s135
    %p144 = scmp.eq.s32.totalorder %s17, 1
    %p145 = por %p143, %p144
    %p146 = scmp.ne.s32.totalorder %s135, %s136
    %p147 = scmp.eq.s32.totalorder %s17, 0
    %p148 = por %p146, %p147
    %p149 = scmp.ne.s32.totalorder %s135, %s136
    %p150 = scmp.eq.s32.totalorder %s18, 1
    %p151 = por %p149, %p150
    %p153 = scmp.ne.s32.totalorder %s136, %s152
    %p154 = scmp.eq.s32.totalorder %s18, 0
    %p155 = por %p153, %p154
    %s156 = ssub.s32 %s12, %s19
    %p157 = scmp.eq.s32.totalorder %s156, 0
    %s159 = sadd.s32 %s158, 1
    %s160 = scalar_select %p157, %s158, %s159
    %p163 = pneg %p157
    %p164 = scmp.eq.s32.totalorder %s12, 1
    %p165 = por %p163, %p164
    %p166 = scmp.ne.s32.totalorder %s158, %s161
    %p167 = scmp.eq.s32.totalorder %s12, 0
    %p168 = por %p166, %p167
    %p169 = scmp.ne.s32.totalorder %s158, %s161
    %p170 = scmp.eq.s32.totalorder %s17, 1
    %p171 = por %p169, %p170
    %p172 = scmp.ne.s32.totalorder %s161, %s162
    %p173 = scmp.eq.s32.totalorder %s17, 0
    %p174 = por %p172, %p173
    %p175 = scmp.ne.s32.totalorder %s161, %s162
    %p176 = scmp.eq.s32.totalorder %s18, 1
    %p177 = por %p175, %p176
    %p179 = scmp.ne.s32.totalorder %s162, %s178
    %p180 = scmp.eq.s32.totalorder %s18, 0
    %p181 = por %p179, %p180
    %p182 = scmp.le.s32.totalorder 1, %s12
    %p183 = scmp.lt.s32.totalorder %s12, 3
    %p184 = pnand %p182, %p183
    %p185 = pneg %p184
    // Predicated region
    $region9: #{resnet_block.3} parent=5 // pred_check
      _
    $region10: #{resnet_block.3} parent=5 // pred_check_branch
      %187 = sbr.rel (%p184) target = $region12
    $region11: #{resnet_block.3} parent=5 // pred_region
      %s188 = ssub.s32 %s12, 1
      // Predicated region
      $region13: #{resnet_block.3} parent=11 // pred_check
        %p189 = pneg %p59
      $region14: #{resnet_block.3} parent=11 // pred_check_branch
        %191 = sbr.rel (%p189) target = $region16
      $region15: #{resnet_block.3} parent=11 // pred_region
        _
      $region16: #{resnet_block.3} parent=11 // pred_fallthru
        _
      // Predicated region
      $region17: #{resnet_block.3} parent=11 // pred_check
        %p192 = pneg %p80
      $region18: #{resnet_block.3} parent=11 // pred_check_branch
        %194 = sbr.rel (%p192) target = $region20
      $region19: #{resnet_block.3} parent=11 // pred_region
        _
      $region20: #{resnet_block.3} parent=11 // pred_fallthru
        _
      // Predicated region
      $region21: #{resnet_block.3} parent=11 // pred_check
        %p195 = pneg %p101
      $region22: #{resnet_block.3} parent=11 // pred_check_branch
        %197 = sbr.rel (%p195) target = $region24
      $region23: #{resnet_block.3} parent=11 // pred_region
        _
      $region24: #{resnet_block.3} parent=11 // pred_fallthru
        _
      // Predicated region
      $region25: #{resnet_block.3} parent=11 // pred_check
        %p198 = pneg %p122
      $region26: #{resnet_block.3} parent=11 // pred_check_branch
        %200 = sbr.rel (%p198) target = $region28
      $region27: #{resnet_block.3} parent=11 // pred_region
        _
      $region28: #{resnet_block.3} parent=11 // pred_fallthru
        _
    $region12: #{resnet_block.3} parent=5 // pred_fallthru
      _
    %p201 = scmp.lt.s32.totalorder %s12, 2
    // Predicated region
    $region29: #{resnet_block.3} parent=5 // pred_check
      %p202 = pneg %p201
    $region30: #{resnet_block.3} parent=5 // pred_check_branch
      %204 = sbr.rel (%p202) target = $region32
    $region31: #{resnet_block.3} parent=5 // pred_region
      // Predicated region
      $region33: #{resnet_block.3} parent=31 // pred_check
        %p205 = pneg %p32
      $region34: #{resnet_block.3} parent=31 // pred_check_branch
        %207 = sbr.rel (%p205) target = $region36
      $region35: #{resnet_block.3} parent=31 // pred_region
        %p208 = scmp.lt.s32.totalorder %s12, 1
        %s209 = scalar_select %p208, %s12, 1
        %s210 = smul.addr %s209, 32
        %s211 = smul.addr %s210, 4
        %s212 = scalar_lea.vmem %s0, %s211
      $region36: #{resnet_block.3} parent=31 // pred_fallthru
        _
      // Predicated region
      $region37: #{resnet_block.3} parent=31 // pred_check
        %p213 = pneg %p142
      $region38: #{resnet_block.3} parent=31 // pred_check_branch
        %215 = sbr.rel (%p213) target = $region40
      $region39: #{resnet_block.3} parent=31 // pred_region
        %p216 = scmp.lt.s32.totalorder %s12, 1
        %s217 = scalar_select %p216, %s12, 1
        %s218 = smul.addr %s217, 32
        %s219 = smul.addr %s218, 4
        %s220 = scalar_lea.vmem %s5, %s219
      $region40: #{resnet_block.3} parent=31 // pred_fallthru
        _
    $region32: #{resnet_block.3} parent=5 // pred_fallthru
      _
    %p221 = scmp.le.s32.totalorder 1, %s12
    %p222 = scmp.lt.s32.totalorder %s12, 3
    %p223 = pnand %p221, %p222
    %p224 = pneg %p223
    // Predicated region
    $region41: #{resnet_block.3} parent=5 // pred_check
      _
    $region42: #{resnet_block.3} parent=5 // pred_check_branch
      %226 = sbr.rel (%p223) target = $region44
    $region43: #{resnet_block.3} parent=5 // pred_region
      %s227 = ssub.s32 %s12, 1
      %p228 = scmp.lt.s32.totalorder %s17, 1
      %s229 = scalar_select %p228, %s17, 1
      %s230 = smul.addr %s229, 32
      %s231 = smul.addr %s230, 4
      %s232 = scalar_lea.vmem %s0, %s231
      %p233 = pneg %p38
      %p234 = pneg %p35
      %p235 = pneg %p59
      %p236 = pneg %p56
      %p237 = pneg %p80
      %p238 = pneg %p77
      %p239 = pneg %p101
      %p240 = pneg %p98
      %p241 = pneg %p122
      %p242 = pneg %p119
      %p243 = scmp.lt.s32.totalorder %s17, 1
      %s244 = scalar_select %p243, %s17, 1
      %s245 = smul.addr %s244, 32
      %s246 = smul.addr %s245, 4
      %s247 = scalar_lea.vmem %s5, %s246
      %p248 = pneg %p148
      %p249 = pneg %p145
      %p250 = pneg %p174
      %p251 = pneg %p171
      %p252 = scmp.lt.s32.totalorder %s17, 1
      %s253 = scalar_select %p252, %s17, 1
      %s254 = smul.addr %s253, 32
      %s255 = smul.addr %s254, 8
      %s256 = scalar_lea.vmem %s6, %s255
      %p257 = scmp.lt.s32.totalorder %s17, 1
      %s258 = scalar_select %p257, %s17, 1
      %s259 = smul.addr %s258, 32
      %s260 = smul.addr %s259, 4
      %s261 = scalar_lea.vmem %s0, %s260
      %p262 = scmp.lt.s32.totalorder %s17, 1
      %s263 = scalar_select %p262, %s17, 1
      %s264 = smul.addr %s263, 32
      %s265 = smul.addr %s264, 4
      %s266 = scalar_lea.vmem %s5, %s265
      %p267 = scmp.lt.s32.totalorder %s17, 1
      %s268 = scalar_select %p267, %s17, 1
      %s269 = smul.addr %s268, 32
      %s270 = smul.addr %s269, 8
      %s271 = scalar_lea.vmem %s6, %s270
      %v272 = vld [vmem:[%s261] sm:$0xf]
      %v273 = vld [vmem:[%s261 + $0x4] sm:$0xf]
      %v274 = vld [vmem:[%s261 + $0x8] sm:$0xf]
      %v275 = vld [vmem:[%s261 + $0xc] sm:$0xf]
      %v276 = vld [vmem:[%s261 + $0x10] sm:$0xf]
      %v277 = vld [vmem:[%s261 + $0x14] sm:$0xf]
      %v278 = vld [vmem:[%s261 + $0x18] sm:$0xf]
      %v279 = vld [vmem:[%s261 + $0x1c] sm:$0xf]
      %v280 = vld [vmem:[%s261 + $0x20] sm:$0xf]
      %v281 = vld [vmem:[%s261 + $0x24] sm:$0xf]
      %v282 = vld [vmem:[%s261 + $0x28] sm:$0xf]
      %v283 = vld [vmem:[%s261 + $0x2c] sm:$0xf]
      %v284 = vld [vmem:[%s261 + $0x30] sm:$0xf]
      %v285 = vld [vmem:[%s261 + $0x34] sm:$0xf]
      %v286 = vld [vmem:[%s261 + $0x38] sm:$0xf]
      %v287 = vld [vmem:[%s261 + $0x3c] sm:$0xf]
      %v288 = vld [vmem:[%s261 + $0x40] sm:$0xf]
      %v289 = vld [vmem:[%s261 + $0x44] sm:$0xf]
      %v290 = vld [vmem:[%s261 + $0x48] sm:$0xf]
      %v291 = vld [vmem:[%s261 + $0x4c] sm:$0xf]
      %v292 = vld [vmem:[%s261 + $0x50] sm:$0xf]
      %v293 = vld [vmem:[%s261 + $0x54] sm:$0xf]
      %v294 = vld [vmem:[%s261 + $0x58] sm:$0xf]
      %v295 = vld [vmem:[%s261 + $0x5c] sm:$0xf]
      %v296 = vld [vmem:[%s261 + $0x60] sm:$0xf]
      %v297 = vld [vmem:[%s261 + $0x64] sm:$0xf]
      %v298 = vld [vmem:[%s261 + $0x68] sm:$0xf]
      %v299 = vld [vmem:[%s261 + $0x6c] sm:$0xf]
      %v300 = vld [vmem:[%s261 + $0x70] sm:$0xf]
      %v301 = vld [vmem:[%s261 + $0x74] sm:$0xf]
      %v302 = vld [vmem:[%s261 + $0x78] sm:$0xf]
      %v303 = vld [vmem:[%s261 + $0x7c] sm:$0xf]
      %v304 = vld [vmem:[%s2] sm:$0x1]
      %v305 = vld [vmem:[%s3] sm:$0x1]
      %v307 = vpack.i.b16 %v304, %v304
      %v309 = vperm.slane %v307, 0
      %v310 = vunpack.c.l.bf16 %v272
      %v311 = vunpack.c.l.bf16 %v273
      %v312 = vunpack.c.l.bf16 %v274
      %v313 = vunpack.c.l.bf16 %v275
      %v314 = vunpack.c.l.bf16 %v276
      %v315 = vunpack.c.l.bf16 %v277
      %v316 = vunpack.c.l.bf16 %v278
      %v317 = vunpack.c.l.bf16 %v279
      %v318 = vunpack.c.l.bf16 %v280
      %v319 = vunpack.c.l.bf16 %v281
      %v320 = vunpack.c.l.bf16 %v282
      %v321 = vunpack.c.l.bf16 %v283
      %v322 = vunpack.c.l.bf16 %v284
      %v323 = vunpack.c.l.bf16 %v285
      %v324 = vunpack.c.l.bf16 %v286
      %v325 = vunpack.c.l.bf16 %v287
      %v326 = vunpack.c.l.bf16 %v288
      %v327 = vunpack.c.l.bf16 %v289
      %v328 = vunpack.c.l.bf16 %v290
      %v329 = vunpack.c.l.bf16 %v291
      %v330 = vunpack.c.l.bf16 %v292
      %v331 = vunpack.c.l.bf16 %v293
      %v332 = vunpack.c.l.bf16 %v294
      %v333 = vunpack.c.l.bf16 %v295
      %v334 = vunpack.c.l.bf16 %v296
      %v335 = vunpack.c.l.bf16 %v297
      %v336 = vunpack.c.l.bf16 %v298
      %v337 = vunpack.c.l.bf16 %v299
      %v338 = vunpack.c.l.bf16 %v300
      %v339 = vunpack.c.l.bf16 %v301
      %v340 = vunpack.c.l.bf16 %v302
      %v341 = vunpack.c.l.bf16 %v303
      %v342 = vunpack.c.l.bf16 %v309
      %v343 = vmul.f32 %v310, %v342
      %v344 = vmul.f32 %v311, %v342
      %v345 = vmul.f32 %v312, %v342
      %v346 = vmul.f32 %v313, %v342
      %v347 = vmul.f32 %v314, %v342
      %v348 = vmul.f32 %v315, %v342
      %v349 = vmul.f32 %v316, %v342
      %v350 = vmul.f32 %v317, %v342
      %v351 = vmul.f32 %v318, %v342
      %v352 = vmul.f32 %v319, %v342
      %v353 = vmul.f32 %v320, %v342
      %v354 = vmul.f32 %v321, %v342
      %v355 = vmul.f32 %v322, %v342
      %v356 = vmul.f32 %v323, %v342
      %v357 = vmul.f32 %v324, %v342
      %v358 = vmul.f32 %v325, %v342
      %v359 = vmul.f32 %v326, %v342
      %v360 = vmul.f32 %v327, %v342
      %v361 = vmul.f32 %v328, %v342
      %v362 = vmul.f32 %v329, %v342
      %v363 = vmul.f32 %v330, %v342
      %v364 = vmul.f32 %v331, %v342
      %v365 = vmul.f32 %v332, %v342
      %v366 = vmul.f32 %v333, %v342
      %v367 = vmul.f32 %v334, %v342
      %v368 = vmul.f32 %v335, %v342
      %v369 = vmul.f32 %v336, %v342
      %v370 = vmul.f32 %v337, %v342
      %v371 = vmul.f32 %v338, %v342
      %v372 = vmul.f32 %v339, %v342
      %v373 = vmul.f32 %v340, %v342
      %v374 = vmul.f32 %v341, %v342
      %v375 = vpack.c.bf16 %v343, %v343
      %v376 = vpack.c.bf16 %v344, %v344
      %v377 = vpack.c.bf16 %v345, %v345
      %v378 = vpack.c.bf16 %v346, %v346
      %v379 = vpack.c.bf16 %v347, %v347
      %v380 = vpack.c.bf16 %v348, %v348
      %v381 = vpack.c.bf16 %v349, %v349
      %v382 = vpack.c.bf16 %v350, %v350
      %v383 = vpack.c.bf16 %v351, %v351
      %v384 = vpack.c.bf16 %v352, %v352
      %v385 = vpack.c.bf16 %v353, %v353
      %v386 = vpack.c.bf16 %v354, %v354
      %v387 = vpack.c.bf16 %v355, %v355
      %v388 = vpack.c.bf16 %v356, %v356
      %v389 = vpack.c.bf16 %v357, %v357
      %v390 = vpack.c.bf16 %v358, %v358
      %v391 = vpack.c.bf16 %v359, %v359
      %v392 = vpack.c.bf16 %v360, %v360
      %v393 = vpack.c.bf16 %v361, %v361
      %v394 = vpack.c.bf16 %v362, %v362
      %v395 = vpack.c.bf16 %v363, %v363
      %v396 = vpack.c.bf16 %v364, %v364
      %v397 = vpack.c.bf16 %v365, %v365
      %v398 = vpack.c.bf16 %v366, %v366
      %v399 = vpack.c.bf16 %v367, %v367
      %v400 = vpack.c.bf16 %v368, %v368
      %v401 = vpack.c.bf16 %v369, %v369
      %v402 = vpack.c.bf16 %v370, %v370
      %v403 = vpack.c.bf16 %v371, %v371
      %v404 = vpack.c.bf16 %v372, %v372
      %v405 = vpack.c.bf16 %v373, %v373
      %v406 = vpack.c.bf16 %v374, %v374
      %v408 = vpack.i.b16 %v305, %v305
      %v410 = vperm.slane %v408, 0
      %v411 = vunpack.c.l.bf16 %v375
      %v412 = vunpack.c.l.bf16 %v376
      %v413 = vunpack.c.l.bf16 %v377
      %v414 = vunpack.c.l.bf16 %v378
      %v415 = vunpack.c.l.bf16 %v379
      %v416 = vunpack.c.l.bf16 %v380
      %v417 = vunpack.c.l.bf16 %v381
      %v418 = vunpack.c.l.bf16 %v382
      %v419 = vunpack.c.l.bf16 %v383
      %v420 = vunpack.c.l.bf16 %v384
      %v421 = vunpack.c.l.bf16 %v385
      %v422 = vunpack.c.l.bf16 %v386
      %v423 = vunpack.c.l.bf16 %v387
      %v424 = vunpack.c.l.bf16 %v388
      %v425 = vunpack.c.l.bf16 %v389
      %v426 = vunpack.c.l.bf16 %v390
      %v427 = vunpack.c.l.bf16 %v391
      %v428 = vunpack.c.l.bf16 %v392
      %v429 = vunpack.c.l.bf16 %v393
      %v430 = vunpack.c.l.bf16 %v394
      %v431 = vunpack.c.l.bf16 %v395
      %v432 = vunpack.c.l.bf16 %v396
      %v433 = vunpack.c.l.bf16 %v397
      %v434 = vunpack.c.l.bf16 %v398
      %v435 = vunpack.c.l.bf16 %v399
      %v436 = vunpack.c.l.bf16 %v400
      %v437 = vunpack.c.l.bf16 %v401
      %v438 = vunpack.c.l.bf16 %v402
      %v439 = vunpack.c.l.bf16 %v403
      %v440 = vunpack.c.l.bf16 %v404
      %v441 = vunpack.c.l.bf16 %v405
      %v442 = vunpack.c.l.bf16 %v406
      %v443 = vunpack.c.l.bf16 %v410
      %v444 = vadd.f32 %v411, %v443
      %v445 = vadd.f32 %v412, %v443
      %v446 = vadd.f32 %v413, %v443
      %v447 = vadd.f32 %v414, %v443
      %v448 = vadd.f32 %v415, %v443
      %v449 = vadd.f32 %v416, %v443
      %v450 = vadd.f32 %v417, %v443
      %v451 = vadd.f32 %v418, %v443
      %v452 = vadd.f32 %v419, %v443
      %v453 = vadd.f32 %v420, %v443
      %v454 = vadd.f32 %v421, %v443
      %v455 = vadd.f32 %v422, %v443
      %v456 = vadd.f32 %v423, %v443
      %v457 = vadd.f32 %v424, %v443
      %v458 = vadd.f32 %v425, %v443
      %v459 = vadd.f32 %v426, %v443
      %v460 = vadd.f32 %v427, %v443
      %v461 = vadd.f32 %v428, %v443
      %v462 = vadd.f32 %v429, %v443
      %v463 = vadd.f32 %v430, %v443
      %v464 = vadd.f32 %v431, %v443
      %v465 = vadd.f32 %v432, %v443
      %v466 = vadd.f32 %v433, %v443
      %v467 = vadd.f32 %v434, %v443
      %v468 = vadd.f32 %v435, %v443
      %v469 = vadd.f32 %v436, %v443
      %v470 = vadd.f32 %v437, %v443
      %v471 = vadd.f32 %v438, %v443
      %v472 = vadd.f32 %v439, %v443
      %v473 = vadd.f32 %v440, %v443
      %v474 = vadd.f32 %v441, %v443
      %v475 = vadd.f32 %v442, %v443
      %v476 = vpack.c.bf16 %v444, %v444
      %v477 = vpack.c.bf16 %v445, %v445
      %v478 = vpack.c.bf16 %v446, %v446
      %v479 = vpack.c.bf16 %v447, %v447
      %v480 = vpack.c.bf16 %v448, %v448
      %v481 = vpack.c.bf16 %v449, %v449
      %v482 = vpack.c.bf16 %v450, %v450
      %v483 = vpack.c.bf16 %v451, %v451
      %v484 = vpack.c.bf16 %v452, %v452
      %v485 = vpack.c.bf16 %v453, %v453
      %v486 = vpack.c.bf16 %v454, %v454
      %v487 = vpack.c.bf16 %v455, %v455
      %v488 = vpack.c.bf16 %v456, %v456
      %v489 = vpack.c.bf16 %v457, %v457
      %v490 = vpack.c.bf16 %v458, %v458
      %v491 = vpack.c.bf16 %v459, %v459
      %v492 = vpack.c.bf16 %v460, %v460
      %v493 = vpack.c.bf16 %v461, %v461
      %v494 = vpack.c.bf16 %v462, %v462
      %v495 = vpack.c.bf16 %v463, %v463
      %v496 = vpack.c.bf16 %v464, %v464
      %v497 = vpack.c.bf16 %v465, %v465
      %v498 = vpack.c.bf16 %v466, %v466
      %v499 = vpack.c.bf16 %v467, %v467
      %v500 = vpack.c.bf16 %v468, %v468
      %v501 = vpack.c.bf16 %v469, %v469
      %v502 = vpack.c.bf16 %v470, %v470
      %v503 = vpack.c.bf16 %v471, %v471
      %v504 = vpack.c.bf16 %v472, %v472
      %v505 = vpack.c.bf16 %v473, %v473
      %v506 = vpack.c.bf16 %v474, %v474
      %v507 = vpack.c.bf16 %v475, %v475
      %v508 = vunpack.c.l.bf16 %v476
      %v509 = vunpack.c.l.bf16 %v477
      %v510 = vunpack.c.l.bf16 %v478
      %v511 = vunpack.c.l.bf16 %v479
      %v512 = vunpack.c.l.bf16 %v480
      %v513 = vunpack.c.l.bf16 %v481
      %v514 = vunpack.c.l.bf16 %v482
      %v515 = vunpack.c.l.bf16 %v483
      %v516 = vunpack.c.l.bf16 %v484
      %v517 = vunpack.c.l.bf16 %v485
      %v518 = vunpack.c.l.bf16 %v486
      %v519 = vunpack.c.l.bf16 %v487
      %v520 = vunpack.c.l.bf16 %v488
      %v521 = vunpack.c.l.bf16 %v489
      %v522 = vunpack.c.l.bf16 %v490
      %v523 = vunpack.c.l.bf16 %v491
      %v524 = vunpack.c.l.bf16 %v492
      %v525 = vunpack.c.l.bf16 %v493
      %v526 = vunpack.c.l.bf16 %v494
      %v527 = vunpack.c.l.bf16 %v495
      %v528 = vunpack.c.l.bf16 %v496
      %v529 = vunpack.c.l.bf16 %v497
      %v530 = vunpack.c.l.bf16 %v498
      %v531 = vunpack.c.l.bf16 %v499
      %v532 = vunpack.c.l.bf16 %v500
      %v533 = vunpack.c.l.bf16 %v501
      %v534 = vunpack.c.l.bf16 %v502
      %v535 = vunpack.c.l.bf16 %v503
      %v536 = vunpack.c.l.bf16 %v504
      %v537 = vunpack.c.l.bf16 %v505
      %v538 = vunpack.c.l.bf16 %v506
      %v539 = vunpack.c.l.bf16 %v507
      %v540 = vmax.f32 %v508, 0.0
      %v541 = vmax.f32 %v509, 0.0
      %v542 = vmax.f32 %v510, 0.0
      %v543 = vmax.f32 %v511, 0.0
      %v544 = vmax.f32 %v512, 0.0
      %v545 = vmax.f32 %v513, 0.0
      %v546 = vmax.f32 %v514, 0.0
      %v547 = vmax.f32 %v515, 0.0
      %v548 = vmax.f32 %v516, 0.0
      %v549 = vmax.f32 %v517, 0.0
      %v550 = vmax.f32 %v518, 0.0
      %v551 = vmax.f32 %v519, 0.0
      %v552 = vmax.f32 %v520, 0.0
      %v553 = vmax.f32 %v521, 0.0
      %v554 = vmax.f32 %v522, 0.0
      %v555 = vmax.f32 %v523, 0.0
      %v556 = vmax.f32 %v524, 0.0
      %v557 = vmax.f32 %v525, 0.0
      %v558 = vmax.f32 %v526, 0.0
      %v559 = vmax.f32 %v527, 0.0
      %v560 = vmax.f32 %v528, 0.0
      %v561 = vmax.f32 %v529, 0.0
      %v562 = vmax.f32 %v530, 0.0
      %v563 = vmax.f32 %v531, 0.0
      %v564 = vmax.f32 %v532, 0.0
      %v565 = vmax.f32 %v533, 0.0
      %v566 = vmax.f32 %v534, 0.0
      %v567 = vmax.f32 %v535, 0.0
      %v568 = vmax.f32 %v536, 0.0
      %v569 = vmax.f32 %v537, 0.0
      %v570 = vmax.f32 %v538, 0.0
      %v571 = vmax.f32 %v539, 0.0
      %v572 = vpack.c.bf16 %v540, %v540
      %v573 = vpack.c.bf16 %v541, %v541
      %v574 = vpack.c.bf16 %v542, %v542
      %v575 = vpack.c.bf16 %v543, %v543
      %v576 = vpack.c.bf16 %v544, %v544
      %v577 = vpack.c.bf16 %v545, %v545
      %v578 = vpack.c.bf16 %v546, %v546
      %v579 = vpack.c.bf16 %v547, %v547
      %v580 = vpack.c.bf16 %v548, %v548
      %v581 = vpack.c.bf16 %v549, %v549
      %v582 = vpack.c.bf16 %v550, %v550
      %v583 = vpack.c.bf16 %v551, %v551
      %v584 = vpack.c.bf16 %v552, %v552
      %v585 = vpack.c.bf16 %v553, %v553
      %v586 = vpack.c.bf16 %v554, %v554
      %v587 = vpack.c.bf16 %v555, %v555
      %v588 = vpack.c.bf16 %v556, %v556
      %v589 = vpack.c.bf16 %v557, %v557
      %v590 = vpack.c.bf16 %v558, %v558
      %v591 = vpack.c.bf16 %v559, %v559
      %v592 = vpack.c.bf16 %v560, %v560
      %v593 = vpack.c.bf16 %v561, %v561
      %v594 = vpack.c.bf16 %v562, %v562
      %v595 = vpack.c.bf16 %v563, %v563
      %v596 = vpack.c.bf16 %v564, %v564
      %v597 = vpack.c.bf16 %v565, %v565
      %v598 = vpack.c.bf16 %v566, %v566
      %v599 = vpack.c.bf16 %v567, %v567
      %v600 = vpack.c.bf16 %v568, %v568
      %v601 = vpack.c.bf16 %v569, %v569
      %v602 = vpack.c.bf16 %v570, %v570
      %v603 = vpack.c.bf16 %v571, %v571
      %v620 = vunpack.c.l.b16 %v574
      %v621 = vunpack.c.l.b16 %v572
      %v622 = vunpack.c.l.b16 %v576
      %v623 = vunpack.c.l.b16 %v578
      %v624 = vunpack.c.l.b16 %v580
      %v625 = vunpack.c.l.b16 %v582
      %v626 = vunpack.c.l.b16 %v584
      %v627 = vunpack.c.l.b16 %v586
      %v628 = vunpack.c.l.b16 %v588
      %v629 = vunpack.c.l.b16 %v590
      %v630 = vunpack.c.l.b16 %v592
      %v631 = vunpack.c.l.b16 %v594
      %v632 = vunpack.c.l.b16 %v596
      %v633 = vunpack.c.l.b16 %v598
      %v634 = vunpack.c.l.b16 %v600
      %v635 = vunpack.c.l.b16 %v602
      %v636 = vpack.c.b16 %v620, %v620
      %v637 = vpack.c.b16 %v621, %v621
      %v638 = vpack.c.b16 %v622, %v622
      %v639 = vpack.c.b16 %v623, %v623
      %v640 = vpack.c.b16 %v624, %v624
      %v641 = vpack.c.b16 %v625, %v625
      %v642 = vpack.c.b16 %v626, %v626
      %v643 = vpack.c.b16 %v627, %v627
      %v644 = vpack.c.b16 %v628, %v628
      %v645 = vpack.c.b16 %v629, %v629
      %v646 = vpack.c.b16 %v630, %v630
      %v647 = vpack.c.b16 %v631, %v631
      %v648 = vpack.c.b16 %v632, %v632
      %v649 = vpack.c.b16 %v633, %v633
      %v650 = vpack.c.b16 %v634, %v634
      %v651 = vpack.c.b16 %v635, %v635
      %v653 = vshrl.u32 %v636, 16
      %v656 = vshrl.u32 %v637, 16
      %v659 = vshrl.u32 %v638, 16
      %v662 = vshrl.u32 %v639, 16
      %v665 = vshrl.u32 %v640, 16
      %v668 = vshrl.u32 %v641, 16
      %v671 = vshrl.u32 %v642, 16
      %v674 = vshrl.u32 %v643, 16
      %v677 = vshrl.u32 %v644, 16
      %v680 = vshrl.u32 %v645, 16
      %v683 = vshrl.u32 %v646, 16
      %v686 = vshrl.u32 %v647, 16
      %v689 = vshrl.u32 %v648, 16
      %v692 = vshrl.u32 %v649, 16
      %v695 = vshrl.u32 %v650, 16
      %v698 = vshrl.u32 %v651, 16
      %v732 = vunpack.c.l.b16 %v575
      %v733 = vunpack.c.l.b16 %v573
      %v734 = vunpack.c.l.b16 %v577
      %v735 = vunpack.c.l.b16 %v579
      %v736 = vunpack.c.l.b16 %v581
      %v737 = vunpack.c.l.b16 %v583
      %v738 = vunpack.c.l.b16 %v585
      %v739 = vunpack.c.l.b16 %v587
      %v740 = vunpack.c.l.b16 %v589
      %v741 = vunpack.c.l.b16 %v591
      %v742 = vunpack.c.l.b16 %v593
      %v743 = vunpack.c.l.b16 %v595
      %v744 = vunpack.c.l.b16 %v597
      %v745 = vunpack.c.l.b16 %v599
      %v746 = vunpack.c.l.b16 %v601
      %v747 = vunpack.c.l.b16 %v603
      %v748 = vpack.c.b16 %v732, %v620
      %v749 = vpack.c.b16 %v733, %v621
      %v750 = vpack.c.b16 %v734, %v622
      %v751 = vpack.c.b16 %v735, %v623
      %v752 = vpack.c.b16 %v736, %v624
      %v753 = vpack.c.b16 %v737, %v625
      %v754 = vpack.c.b16 %v738, %v626
      %v755 = vpack.c.b16 %v739, %v627
      %v756 = vpack.c.b16 %v740, %v628
      %v757 = vpack.c.b16 %v741, %v629
      %v758 = vpack.c.b16 %v742, %v630
      %v759 = vpack.c.b16 %v743, %v631
      %v760 = vpack.c.b16 %v744, %v632
      %v761 = vpack.c.b16 %v745, %v633
      %v762 = vpack.c.b16 %v746, %v634
      %v763 = vpack.c.b16 %v747, %v635
      %v765 = vshrl.u32 %v748, 16
      %v767 = vrot.slane %v765, 7
      %v768 = vshll.u32 %v748, 16
      %v770 = vor.u32 %v767, %v768
      %v772 = vshrl.u32 %v749, 16
      %v774 = vrot.slane %v772, 7
      %v775 = vshll.u32 %v749, 16
      %v777 = vor.u32 %v774, %v775
      %v779 = vshrl.u32 %v750, 16
      %v781 = vrot.slane %v779, 7
      %v782 = vshll.u32 %v750, 16
      %v784 = vor.u32 %v781, %v782
      %v786 = vshrl.u32 %v751, 16
      %v788 = vrot.slane %v786, 7
      %v789 = vshll.u32 %v751, 16
      %v791 = vor.u32 %v788, %v789
      %v793 = vshrl.u32 %v752, 16
      %v795 = vrot.slane %v793, 7
      %v796 = vshll.u32 %v752, 16
      %v798 = vor.u32 %v795, %v796
      %v800 = vshrl.u32 %v753, 16
      %v802 = vrot.slane %v800, 7
      %v803 = vshll.u32 %v753, 16
      %v805 = vor.u32 %v802, %v803
      %v807 = vshrl.u32 %v754, 16
      %v809 = vrot.slane %v807, 7
      %v810 = vshll.u32 %v754, 16
      %v812 = vor.u32 %v809, %v810
      %v814 = vshrl.u32 %v755, 16
      %v816 = vrot.slane %v814, 7
      %v817 = vshll.u32 %v755, 16
      %v819 = vor.u32 %v816, %v817
      %v821 = vshrl.u32 %v756, 16
      %v823 = vrot.slane %v821, 7
      %v824 = vshll.u32 %v756, 16
      %v826 = vor.u32 %v823, %v824
      %v828 = vshrl.u32 %v757, 16
      %v830 = vrot.slane %v828, 7
      %v831 = vshll.u32 %v757, 16
      %v833 = vor.u32 %v830, %v831
      %v835 = vshrl.u32 %v758, 16
      %v837 = vrot.slane %v835, 7
      %v838 = vshll.u32 %v758, 16
      %v840 = vor.u32 %v837, %v838
      %v842 = vshrl.u32 %v759, 16
      %v844 = vrot.slane %v842, 7
      %v845 = vshll.u32 %v759, 16
      %v847 = vor.u32 %v844, %v845
      %v849 = vshrl.u32 %v760, 16
      %v851 = vrot.slane %v849, 7
      %v852 = vshll.u32 %v760, 16
      %v854 = vor.u32 %v851, %v852
      %v856 = vshrl.u32 %v761, 16
      %v858 = vrot.slane %v856, 7
      %v859 = vshll.u32 %v761, 16
      %v861 = vor.u32 %v858, %v859
      %v863 = vshrl.u32 %v762, 16
      %v865 = vrot.slane %v863, 7
      %v866 = vshll.u32 %v762, 16
      %v868 = vor.u32 %v865, %v866
      %v870 = vshrl.u32 %v763, 16
      %v872 = vrot.slane %v870, 7
      %v873 = vshll.u32 %v763, 16
      %v875 = vor.u32 %v872, %v873
      %v908 = vpack.c.b16 %v732, %v732
      %v909 = vpack.c.b16 %v733, %v733
      %v910 = vpack.c.b16 %v734, %v734
      %v911 = vpack.c.b16 %v735, %v735
      %v912 = vpack.c.b16 %v736, %v736
      %v913 = vpack.c.b16 %v737, %v737
      %v914 = vpack.c.b16 %v738, %v738
      %v915 = vpack.c.b16 %v739, %v739
      %v916 = vpack.c.b16 %v740, %v740
      %v917 = vpack.c.b16 %v741, %v741
      %v918 = vpack.c.b16 %v742, %v742
      %v919 = vpack.c.b16 %v743, %v743
      %v920 = vpack.c.b16 %v744, %v744
      %v921 = vpack.c.b16 %v745, %v745
      %v922 = vpack.c.b16 %v746, %v746
      %v923 = vpack.c.b16 %v747, %v747
      %v925 = vshll.u32 %v908, 16
      %v927 = vrot.slane %v925, 3
      %v929 = vshll.u32 %v909, 16
      %v931 = vrot.slane %v929, 3
      %v933 = vshll.u32 %v910, 16
      %v935 = vrot.slane %v933, 3
      %v937 = vshll.u32 %v911, 16
      %v939 = vrot.slane %v937, 3
      %v941 = vshll.u32 %v912, 16
      %v943 = vrot.slane %v941, 3
      %v945 = vshll.u32 %v913, 16
      %v947 = vrot.slane %v945, 3
      %v949 = vshll.u32 %v914, 16
      %v951 = vrot.slane %v949, 3
      %v953 = vshll.u32 %v915, 16
      %v955 = vrot.slane %v953, 3
      %v957 = vshll.u32 %v916, 16
      %v959 = vrot.slane %v957, 3
      %v961 = vshll.u32 %v917, 16
      %v963 = vrot.slane %v961, 3
      %v965 = vshll.u32 %v918, 16
      %v967 = vrot.slane %v965, 3
      %v969 = vshll.u32 %v919, 16
      %v971 = vrot.slane %v969, 3
      %v973 = vshll.u32 %v920, 16
      %v975 = vrot.slane %v973, 3
      %v977 = vshll.u32 %v921, 16
      %v979 = vrot.slane %v977, 3
      %v981 = vshll.u32 %v922, 16
      %v983 = vrot.slane %v981, 3
      %v985 = vshll.u32 %v923, 16
      %v987 = vrot.slane %v985, 3
      %vm1004 = vcmask 1040384
      %vm1005 = vsmask.f32 256
      %vm1006 = vmand %vm1004, %vm1005
      %v1007 = vsel %vm1006, %v653, %v770
      %v1008 = vsel %vm1006, %v656, %v777
      %v1009 = vsel %vm1006, %v659, %v784
      %v1010 = vsel %vm1006, %v662, %v791
      %v1011 = vsel %vm1006, %v665, %v798
      %v1012 = vsel %vm1006, %v668, %v805
      %v1013 = vsel %vm1006, %v671, %v812
      %v1014 = vsel %vm1006, %v674, %v819
      %v1015 = vsel %vm1006, %v677, %v826
      %v1016 = vsel %vm1006, %v680, %v833
      %v1017 = vsel %vm1006, %v683, %v840
      %v1018 = vsel %vm1006, %v686, %v847
      %v1019 = vsel %vm1006, %v689, %v854
      %v1020 = vsel %vm1006, %v692, %v861
      %v1021 = vsel %vm1006, %v695, %v868
      %v1022 = vsel %vm1006, %v698, %v875
      %v1023 = vsel %vm1006, %v767, %v927
      %v1024 = vsel %vm1006, %v774, %v931
      %v1025 = vsel %vm1006, %v781, %v935
      %v1026 = vsel %vm1006, %v788, %v939
      %v1027 = vsel %vm1006, %v795, %v943
      %v1028 = vsel %vm1006, %v802, %v947
      %v1029 = vsel %vm1006, %v809, %v951
      %v1030 = vsel %vm1006, %v816, %v955
      %v1031 = vsel %vm1006, %v823, %v959
      %v1032 = vsel %vm1006, %v830, %v963
      %v1033 = vsel %vm1006, %v837, %v967
      %v1034 = vsel %vm1006, %v844, %v971
      %v1035 = vsel %vm1006, %v851, %v975
      %v1036 = vsel %vm1006, %v858, %v979
      %v1037 = vsel %vm1006, %v865, %v983
      %v1038 = vsel %vm1006, %v872, %v987
      %v1039 = vld [vmem:[%s1] sm:$0xf]
      %v1040 = vld [vmem:[%s1 + $0x4] sm:$0xf]
      %v1041 = vld [vmem:[%s1 + $0x8] sm:$0xf]
      %v1042 = vld [vmem:[%s1 + $0xc] sm:$0xf]
      %v1043 = vld [vmem:[%s1 + $0x10] sm:$0xf]
      %v1044 = vld [vmem:[%s1 + $0x14] sm:$0xf]
      %v1045 = vld [vmem:[%s1 + $0x18] sm:$0xf]
      %v1046 = vld [vmem:[%s1 + $0x1c] sm:$0xf]
      %v1047 = vld [vmem:[%s1 + $0x20] sm:$0xf]
      %v1048 = vld [vmem:[%s1 + $0x24] sm:$0xf]
      %v1049 = vld [vmem:[%s1 + $0x28] sm:$0xf]
      %v1050 = vld [vmem:[%s1 + $0x2c] sm:$0xf]
      %v1051 = vld [vmem:[%s1 + $0x30] sm:$0xf]
      %v1052 = vld [vmem:[%s1 + $0x34] sm:$0xf]
      %v1053 = vld [vmem:[%s1 + $0x38] sm:$0xf]
      %v1054 = vld [vmem:[%s1 + $0x3c] sm:$0xf]
      %v1055 = vld [vmem:[%s1 + $0x40] sm:$0xf]
      %v1056 = vld [vmem:[%s1 + $0x44] sm:$0xf]
      %v1057 = vld [vmem:[%s1 + $0x48] sm:$0xf]
      %v1058 = vld [vmem:[%s1 + $0x4c] sm:$0xf]
      %v1059 = vld [vmem:[%s1 + $0x50] sm:$0xf]
      %v1060 = vld [vmem:[%s1 + $0x54] sm:$0xf]
      %v1061 = vld [vmem:[%s1 + $0x58] sm:$0xf]
      %v1062 = vld [vmem:[%s1 + $0x5c] sm:$0xf]
      %v1063 = vld [vmem:[%s1 + $0x60] sm:$0xf]
      %v1064 = vld [vmem:[%s1 + $0x64] sm:$0xf]
      %v1065 = vld [vmem:[%s1 + $0x68] sm:$0xf]
      %v1066 = vld [vmem:[%s1 + $0x6c] sm:$0xf]
      %v1067 = vld [vmem:[%s1 + $0x70] sm:$0xf]
      %v1068 = vld [vmem:[%s1 + $0x74] sm:$0xf]
      %v1069 = vld [vmem:[%s1 + $0x78] sm:$0xf]
      %v1070 = vld [vmem:[%s1 + $0x7c] sm:$0xf]
      %v1071 = vld [vmem:[%s1 + $0x80] sm:$0xf]
      %v1072 = vld [vmem:[%s1 + $0x84] sm:$0xf]
      %v1073 = vld [vmem:[%s1 + $0x88] sm:$0xf]
      %v1074 = vld [vmem:[%s1 + $0x8c] sm:$0xf]
      %v1075 = vld [vmem:[%s1 + $0x90] sm:$0xf]
      %v1076 = vld [vmem:[%s1 + $0x94] sm:$0xf]
      %v1077 = vld [vmem:[%s1 + $0x98] sm:$0xf]
      %v1078 = vld [vmem:[%s1 + $0x9c] sm:$0xf]
      %v1079 = vld [vmem:[%s1 + $0xa0] sm:$0xf]
      %v1080 = vld [vmem:[%s1 + $0xa4] sm:$0xf]
      %v1081 = vld [vmem:[%s1 + $0xa8] sm:$0xf]
      %v1082 = vld [vmem:[%s1 + $0xac] sm:$0xf]
      %v1083 = vld [vmem:[%s1 + $0xb0] sm:$0xf]
      %v1084 = vld [vmem:[%s1 + $0xb4] sm:$0xf]
      %v1085 = vld [vmem:[%s1 + $0xb8] sm:$0xf]
      %v1086 = vld [vmem:[%s1 + $0xbc] sm:$0xf]
      %v1087 = vld [vmem:[%s1 + $0xc0] sm:$0xf]
      %v1088 = vld [vmem:[%s1 + $0xc4] sm:$0xf]
      %v1089 = vld [vmem:[%s1 + $0xc8] sm:$0xf]
      %v1090 = vld [vmem:[%s1 + $0xcc] sm:$0xf]
      %v1091 = vld [vmem:[%s1 + $0xd0] sm:$0xf]
      %v1092 = vld [vmem:[%s1 + $0xd4] sm:$0xf]
      %v1093 = vld [vmem:[%s1 + $0xd8] sm:$0xf]
      %v1094 = vld [vmem:[%s1 + $0xdc] sm:$0xf]
      %v1095 = vld [vmem:[%s1 + $0xe0] sm:$0xf]
      %v1096 = vld [vmem:[%s1 + $0xe4] sm:$0xf]
      %v1097 = vld [vmem:[%s1 + $0xe8] sm:$0xf]
      %v1098 = vld [vmem:[%s1 + $0xec] sm:$0xf]
      %v1099 = vld [vmem:[%s1 + $0xf0] sm:$0xf]
      %v1100 = vld [vmem:[%s1 + $0xf4] sm:$0xf]
      %v1101 = vld [vmem:[%s1 + $0xf8] sm:$0xf]
      %v1102 = vld [vmem:[%s1 + $0xfc] sm:$0xf]
      %v1103 = vld [vmem:[%s1 + $0x100] sm:$0xf]
      %v1104 = vld [vmem:[%s1 + $0x104] sm:$0xf]
      %v1105 = vld [vmem:[%s1 + $0x108] sm:$0xf]
      %v1106 = vld [vmem:[%s1 + $0x10c] sm:$0xf]
      %v1107 = vld [vmem:[%s1 + $0x110] sm:$0xf]
      %v1108 = vld [vmem:[%s1 + $0x114] sm:$0xf]
      %v1109 = vld [vmem:[%s1 + $0x118] sm:$0xf]
      %v1110 = vld [vmem:[%s1 + $0x11c] sm:$0xf]
      %v1111 = vld [vmem:[%s1 + $0x120] sm:$0xf]
      %v1112 = vld [vmem:[%s1 + $0x124] sm:$0xf]
      %v1113 = vld [vmem:[%s1 + $0x128] sm:$0xf]
      %v1114 = vld [vmem:[%s1 + $0x12c] sm:$0xf]
      %v1115 = vld [vmem:[%s1 + $0x130] sm:$0xf]
      %v1116 = vld [vmem:[%s1 + $0x134] sm:$0xf]
      %v1117 = vld [vmem:[%s1 + $0x138] sm:$0xf]
      %v1118 = vld [vmem:[%s1 + $0x13c] sm:$0xf]
      %v1119 = vld [vmem:[%s1 + $0x140] sm:$0xf]
      %v1120 = vld [vmem:[%s1 + $0x144] sm:$0xf]
      %v1121 = vld [vmem:[%s1 + $0x148] sm:$0xf]
      %v1122 = vld [vmem:[%s1 + $0x14c] sm:$0xf]
      %v1123 = vld [vmem:[%s1 + $0x150] sm:$0xf]
      %v1124 = vld [vmem:[%s1 + $0x154] sm:$0xf]
      %v1125 = vld [vmem:[%s1 + $0x158] sm:$0xf]
      %v1126 = vld [vmem:[%s1 + $0x15c] sm:$0xf]
      %v1127 = vld [vmem:[%s1 + $0x160] sm:$0xf]
      %v1128 = vld [vmem:[%s1 + $0x164] sm:$0xf]
      %v1129 = vld [vmem:[%s1 + $0x168] sm:$0xf]
      %v1130 = vld [vmem:[%s1 + $0x16c] sm:$0xf]
      %v1131 = vld [vmem:[%s1 + $0x170] sm:$0xf]
      %v1132 = vld [vmem:[%s1 + $0x174] sm:$0xf]
      %v1133 = vld [vmem:[%s1 + $0x178] sm:$0xf]
      %v1134 = vld [vmem:[%s1 + $0x17c] sm:$0xf]
      %v1135 = vld [vmem:[%s1 + $0x180] sm:$0xf]
      %v1136 = vld [vmem:[%s1 + $0x184] sm:$0xf]
      %v1137 = vld [vmem:[%s1 + $0x188] sm:$0xf]
      %v1138 = vld [vmem:[%s1 + $0x18c] sm:$0xf]
      %v1139 = vld [vmem:[%s1 + $0x190] sm:$0xf]
      %v1140 = vld [vmem:[%s1 + $0x194] sm:$0xf]
      %v1141 = vld [vmem:[%s1 + $0x198] sm:$0xf]
      %v1142 = vld [vmem:[%s1 + $0x19c] sm:$0xf]
      %v1143 = vld [vmem:[%s1 + $0x1a0] sm:$0xf]
      %v1144 = vld [vmem:[%s1 + $0x1a4] sm:$0xf]
      %v1145 = vld [vmem:[%s1 + $0x1a8] sm:$0xf]
      %v1146 = vld [vmem:[%s1 + $0x1ac] sm:$0xf]
      %v1147 = vld [vmem:[%s1 + $0x1b0] sm:$0xf]
      %v1148 = vld [vmem:[%s1 + $0x1b4] sm:$0xf]
      %v1149 = vld [vmem:[%s1 + $0x1b8] sm:$0xf]
      %v1150 = vld [vmem:[%s1 + $0x1bc] sm:$0xf]
      %v1151 = vld [vmem:[%s1 + $0x1c0] sm:$0xf]
      %v1152 = vld [vmem:[%s1 + $0x1c4] sm:$0xf]
      %v1153 = vld [vmem:[%s1 + $0x1c8] sm:$0xf]
      %v1154 = vld [vmem:[%s1 + $0x1cc] sm:$0xf]
      %v1155 = vld [vmem:[%s1 + $0x1d0] sm:$0xf]
      %v1156 = vld [vmem:[%s1 + $0x1d4] sm:$0xf]
      %v1157 = vld [vmem:[%s1 + $0x1d8] sm:$0xf]
      %v1158 = vld [vmem:[%s1 + $0x1dc] sm:$0xf]
      %v1159 = vld [vmem:[%s1 + $0x1e0] sm:$0xf]
      %v1160 = vld [vmem:[%s1 + $0x1e4] sm:$0xf]
      %v1161 = vld [vmem:[%s1 + $0x1e8] sm:$0xf]
      %v1162 = vld [vmem:[%s1 + $0x1ec] sm:$0xf]
      %v1163 = vld [vmem:[%s1 + $0x1f0] sm:$0xf]
      %v1164 = vld [vmem:[%s1 + $0x1f4] sm:$0xf]
      %v1165 = vld [vmem:[%s1 + $0x1f8] sm:$0xf]
      %v1166 = vld [vmem:[%s1 + $0x1fc] sm:$0xf]
      %v1167 = vld [vmem:[%s1 + $0x200] sm:$0xf]
      %v1168 = vld [vmem:[%s1 + $0x204] sm:$0xf]
      %v1169 = vld [vmem:[%s1 + $0x208] sm:$0xf]
      %v1170 = vld [vmem:[%s1 + $0x20c] sm:$0xf]
      %v1171 = vld [vmem:[%s1 + $0x210] sm:$0xf]
      %v1172 = vld [vmem:[%s1 + $0x214] sm:$0xf]
      %v1173 = vld [vmem:[%s1 + $0x218] sm:$0xf]
      %v1174 = vld [vmem:[%s1 + $0x21c] sm:$0xf]
      %v1175 = vld [vmem:[%s1 + $0x220] sm:$0xf]
      %v1176 = vld [vmem:[%s1 + $0x224] sm:$0xf]
      %v1177 = vld [vmem:[%s1 + $0x228] sm:$0xf]
      %v1178 = vld [vmem:[%s1 + $0x22c] sm:$0xf]
      %v1179 = vld [vmem:[%s1 + $0x230] sm:$0xf]
      %v1180 = vld [vmem:[%s1 + $0x234] sm:$0xf]
      %v1181 = vld [vmem:[%s1 + $0x238] sm:$0xf]
      %v1182 = vld [vmem:[%s1 + $0x23c] sm:$0xf]
      %vm1183 = vsmask.f32 7424
      %v1185 = vshrl.u32 %v1007, 16
      %v1187 = vshll.u32 %v1007, 16
      %v1189 = vrot.slane %v1187, 1
      %v1190 = vor.u32 %v1185, %v1189
      %v1192 = vshll.u32 %v1023, 16
      %v1194 = vrot.slane %v1192, 1
      %v1195 = vsel %vm1183, %v1190, %v1194
      %v1197 = vshrl.u32 %v1008, 16
      %v1199 = vshll.u32 %v1008, 16
      %v1201 = vrot.slane %v1199, 1
      %v1202 = vor.u32 %v1197, %v1201
      %v1204 = vshll.u32 %v1024, 16
      %v1206 = vrot.slane %v1204, 1
      %v1207 = vsel %vm1183, %v1202, %v1206
      %v1209 = vshrl.u32 %v1009, 16
      %v1211 = vshll.u32 %v1009, 16
      %v1213 = vrot.slane %v1211, 1
      %v1214 = vor.u32 %v1209, %v1213
      %v1216 = vshll.u32 %v1025, 16
      %v1218 = vrot.slane %v1216, 1
      %v1219 = vsel %vm1183, %v1214, %v1218
      %v1221 = vshrl.u32 %v1010, 16
      %v1223 = vshll.u32 %v1010, 16
      %v1225 = vrot.slane %v1223, 1
      %v1226 = vor.u32 %v1221, %v1225
      %v1228 = vshll.u32 %v1026, 16
      %v1230 = vrot.slane %v1228, 1
      %v1231 = vsel %vm1183, %v1226, %v1230
      %v1233 = vshrl.u32 %v1011, 16
      %v1235 = vshll.u32 %v1011, 16
      %v1237 = vrot.slane %v1235, 1
      %v1238 = vor.u32 %v1233, %v1237
      %v1240 = vshll.u32 %v1027, 16
      %v1242 = vrot.slane %v1240, 1
      %v1243 = vsel %vm1183, %v1238, %v1242
      %v1245 = vshrl.u32 %v1012, 16
      %v1247 = vshll.u32 %v1012, 16
      %v1249 = vrot.slane %v1247, 1
      %v1250 = vor.u32 %v1245, %v1249
      %v1252 = vshll.u32 %v1028, 16
      %v1254 = vrot.slane %v1252, 1
      %v1255 = vsel %vm1183, %v1250, %v1254
      %v1257 = vshrl.u32 %v1013, 16
      %v1259 = vshll.u32 %v1013, 16
      %v1261 = vrot.slane %v1259, 1
      %v1262 = vor.u32 %v1257, %v1261
      %v1264 = vshll.u32 %v1029, 16
      %v1266 = vrot.slane %v1264, 1
      %v1267 = vsel %vm1183, %v1262, %v1266
      %v1269 = vshrl.u32 %v1014, 16
      %v1271 = vshll.u32 %v1014, 16
      %v1273 = vrot.slane %v1271, 1
      %v1274 = vor.u32 %v1269, %v1273
      %v1276 = vshll.u32 %v1030, 16
      %v1278 = vrot.slane %v1276, 1
      %v1279 = vsel %vm1183, %v1274, %v1278
      %v1281 = vshrl.u32 %v1015, 16
      %v1283 = vshll.u32 %v1015, 16
      %v1285 = vrot.slane %v1283, 1
      %v1286 = vor.u32 %v1281, %v1285
      %v1288 = vshll.u32 %v1031, 16
      %v1290 = vrot.slane %v1288, 1
      %v1291 = vsel %vm1183, %v1286, %v1290
      %v1293 = vshrl.u32 %v1016, 16
      %v1295 = vshll.u32 %v1016, 16
      %v1297 = vrot.slane %v1295, 1
      %v1298 = vor.u32 %v1293, %v1297
      %v1300 = vshll.u32 %v1032, 16
      %v1302 = vrot.slane %v1300, 1
      %v1303 = vsel %vm1183, %v1298, %v1302
      %v1305 = vshrl.u32 %v1017, 16
      %v1307 = vshll.u32 %v1017, 16
      %v1309 = vrot.slane %v1307, 1
      %v1310 = vor.u32 %v1305, %v1309
      %v1312 = vshll.u32 %v1033, 16
      %v1314 = vrot.slane %v1312, 1
      %v1315 = vsel %vm1183, %v1310, %v1314
      %v1317 = vshrl.u32 %v1018, 16
      %v1319 = vshll.u32 %v1018, 16
      %v1321 = vrot.slane %v1319, 1
      %v1322 = vor.u32 %v1317, %v1321
      %v1324 = vshll.u32 %v1034, 16
      %v1326 = vrot.slane %v1324, 1
      %v1327 = vsel %vm1183, %v1322, %v1326
      %v1329 = vshrl.u32 %v1019, 16
      %v1331 = vshll.u32 %v1019, 16
      %v1333 = vrot.slane %v1331, 1
      %v1334 = vor.u32 %v1329, %v1333
      %v1336 = vshll.u32 %v1035, 16
      %v1338 = vrot.slane %v1336, 1
      %v1339 = vsel %vm1183, %v1334, %v1338
      %v1341 = vshrl.u32 %v1020, 16
      %v1343 = vshll.u32 %v1020, 16
      %v1345 = vrot.slane %v1343, 1
      %v1346 = vor.u32 %v1341, %v1345
      %v1348 = vshll.u32 %v1036, 16
      %v1350 = vrot.slane %v1348, 1
      %v1351 = vsel %vm1183, %v1346, %v1350
      %v1353 = vshrl.u32 %v1021, 16
      %v1355 = vshll.u32 %v1021, 16
      %v1357 = vrot.slane %v1355, 1
      %v1358 = vor.u32 %v1353, %v1357
      %v1360 = vshll.u32 %v1037, 16
      %v1362 = vrot.slane %v1360, 1
      %v1363 = vsel %vm1183, %v1358, %v1362
      %v1365 = vshrl.u32 %v1022, 16
      %v1367 = vshll.u32 %v1022, 16
      %v1369 = vrot.slane %v1367, 1
      %v1370 = vor.u32 %v1365, %v1369
      %v1372 = vshll.u32 %v1038, 16
      %v1374 = vrot.slane %v1372, 1
      %v1375 = vsel %vm1183, %v1370, %v1374
      %vm1424 = vcmask 1046528
      %v1425 = vrot.slane %v1007, 1
      %v1426 = vrot.slane %v1023, 1
      %v1427 = vsel %vm1424, %v1425, %v1426
      %v1428 = vrot.slane %v1008, 1
      %v1429 = vrot.slane %v1024, 1
      %v1430 = vsel %vm1424, %v1428, %v1429
      %v1431 = vrot.slane %v1009, 1
      %v1432 = vrot.slane %v1025, 1
      %v1433 = vsel %vm1424, %v1431, %v1432
      %v1434 = vrot.slane %v1010, 1
      %v1435 = vrot.slane %v1026, 1
      %v1436 = vsel %vm1424, %v1434, %v1435
      %v1437 = vrot.slane %v1011, 1
      %v1438 = vrot.slane %v1027, 1
      %v1439 = vsel %vm1424, %v1437, %v1438
      %v1440 = vrot.slane %v1012, 1
      %v1441 = vrot.slane %v1028, 1
      %v1442 = vsel %vm1424, %v1440, %v1441
      %v1443 = vrot.slane %v1013, 1
      %v1444 = vrot.slane %v1029, 1
      %v1445 = vsel %vm1424, %v1443, %v1444
      %v1446 = vrot.slane %v1014, 1
      %v1447 = vrot.slane %v1030, 1
      %v1448 = vsel %vm1424, %v1446, %v1447
      %v1449 = vrot.slane %v1015, 1
      %v1450 = vrot.slane %v1031, 1
      %v1451 = vsel %vm1424, %v1449, %v1450
      %v1452 = vrot.slane %v1016, 1
      %v1453 = vrot.slane %v1032, 1
      %v1454 = vsel %vm1424, %v1452, %v1453
      %v1455 = vrot.slane %v1017, 1
      %v1456 = vrot.slane %v1033, 1
      %v1457 = vsel %vm1424, %v1455, %v1456
      %v1458 = vrot.slane %v1018, 1
      %v1459 = vrot.slane %v1034, 1
      %v1460 = vsel %vm1424, %v1458, %v1459
      %v1461 = vrot.slane %v1019, 1
      %v1462 = vrot.slane %v1035, 1
      %v1463 = vsel %vm1424, %v1461, %v1462
      %v1464 = vrot.slane %v1020, 1
      %v1465 = vrot.slane %v1036, 1
      %v1466 = vsel %vm1424, %v1464, %v1465
      %v1467 = vrot.slane %v1021, 1
      %v1468 = vrot.slane %v1037, 1
      %v1469 = vsel %vm1424, %v1467, %v1468
      %v1470 = vrot.slane %v1022, 1
      %v1471 = vrot.slane %v1038, 1
      %v1472 = vsel %vm1424, %v1470, %v1471
      %v1537 = vunpack.c.l.b16 %v1087
      %v1538 = vunpack.c.l.b16 %v1088
      %v1539 = vunpack.c.l.b16 %v1089
      %v1540 = vunpack.c.l.b16 %v1090
      %v1541 = vunpack.c.l.b16 %v1091
      %v1542 = vunpack.c.l.b16 %v1092
      %v1543 = vunpack.c.l.b16 %v1093
      %v1544 = vunpack.c.l.b16 %v1094
      %v1545 = vunpack.c.l.b16 %v1095
      %v1546 = vunpack.c.l.b16 %v1096
      %v1547 = vunpack.c.l.b16 %v1097
      %v1548 = vunpack.c.l.b16 %v1098
      %v1549 = vunpack.c.l.b16 %v1099
      %v1550 = vunpack.c.l.b16 %v1100
      %v1551 = vunpack.c.l.b16 %v1101
      %v1552 = vunpack.c.l.b16 %v1102
      %v1553 = vunpack.c.l.b16 %v1103
      %v1554 = vunpack.c.l.b16 %v1104
      %v1555 = vunpack.c.l.b16 %v1105
      %v1556 = vunpack.c.l.b16 %v1106
      %v1557 = vunpack.c.l.b16 %v1107
      %v1558 = vunpack.c.l.b16 %v1108
      %v1559 = vunpack.c.l.b16 %v1109
      %v1560 = vunpack.c.l.b16 %v1110
      %v1561 = vunpack.c.l.b16 %v1111
      %v1562 = vunpack.c.l.b16 %v1112
      %v1563 = vunpack.c.l.b16 %v1113
      %v1564 = vunpack.c.l.b16 %v1114
      %v1565 = vunpack.c.l.b16 %v1115
      %v1566 = vunpack.c.l.b16 %v1116
      %v1567 = vunpack.c.l.b16 %v1117
      %v1568 = vunpack.c.l.b16 %v1118
      %v1569 = vunpack.c.l.b16 %v1119
      %v1570 = vunpack.c.l.b16 %v1120
      %v1571 = vunpack.c.l.b16 %v1121
      %v1572 = vunpack.c.l.b16 %v1122
      %v1573 = vunpack.c.l.b16 %v1123
      %v1574 = vunpack.c.l.b16 %v1124
      %v1575 = vunpack.c.l.b16 %v1125
      %v1576 = vunpack.c.l.b16 %v1126
      %v1577 = vunpack.c.l.b16 %v1127
      %v1578 = vunpack.c.l.b16 %v1128
      %v1579 = vunpack.c.l.b16 %v1129
      %v1580 = vunpack.c.l.b16 %v1130
      %v1581 = vunpack.c.l.b16 %v1131
      %v1582 = vunpack.c.l.b16 %v1132
      %v1583 = vunpack.c.l.b16 %v1133
      %v1584 = vunpack.c.l.b16 %v1134
      %v1585 = vpack.c.b16 %v1538, %v1537
      %v1586 = vpack.c.b16 %v1540, %v1539
      %v1587 = vpack.c.b16 %v1542, %v1541
      %v1588 = vpack.c.b16 %v1544, %v1543
      %v1589 = vpack.c.b16 %v1546, %v1545
      %v1590 = vpack.c.b16 %v1548, %v1547
      %v1591 = vpack.c.b16 %v1550, %v1549
      %v1592 = vpack.c.b16 %v1552, %v1551
      %v1593 = vpack.c.b16 %v1554, %v1553
      %v1594 = vpack.c.b16 %v1556, %v1555
      %v1595 = vpack.c.b16 %v1558, %v1557
      %v1596 = vpack.c.b16 %v1560, %v1559
      %v1597 = vpack.c.b16 %v1562, %v1561
      %v1598 = vpack.c.b16 %v1564, %v1563
      %v1599 = vpack.c.b16 %v1566, %v1565
      %v1600 = vpack.c.b16 %v1568, %v1567
      %v1601 = vpack.c.b16 %v1570, %v1569
      %v1602 = vpack.c.b16 %v1572, %v1571
      %v1603 = vpack.c.b16 %v1574, %v1573
      %v1604 = vpack.c.b16 %v1576, %v1575
      %v1605 = vpack.c.b16 %v1578, %v1577
      %v1606 = vpack.c.b16 %v1580, %v1579
      %v1607 = vpack.c.b16 %v1582, %v1581
      %v1608 = vpack.c.b16 %v1584, %v1583
      %1633 = vmatpush.bf16.msra.mxu0 %v1592
      %1634 = vmatpush.bf16.msra.mxu0 %v1591
      %1635 = vmatpush.bf16.msra.mxu0 %v1590
      %1636 = vmatpush.bf16.msra.mxu0 %v1589
      %1637 = vmatpush.bf16.msra.mxu0 %v1588
      %1638 = vmatpush.bf16.msra.mxu0 %v1587
      %1639 = vmatpush.bf16.msra.mxu0 %v1586
      %1640 = vmatpush.bf16.msra.mxu0 %v1585
      %1641 = vmatmul.bf16.gmra.mxu0 %v1008
      %v1642 = vpop.f32.mrf.mxu0
      %v1643 = vadd.f32 0.0, %v1642
      %v1644 = vpop.f32.mrf.mxu0
      %v1645 = vadd.f32 0.0, %v1644
      %1646 = vmatmul.bf16.gmra.mxu0 %v1007
      %v1647 = vpop.f32.mrf.mxu0
      %v1648 = vadd.f32 0.0, %v1647
      %v1649 = vpop.f32.mrf.mxu0
      %v1650 = vadd.f32 0.0, %v1649
      %1651 = vmatmul.bf16.gmra.mxu0 %v1009
      %v1652 = vpop.f32.mrf.mxu0
      %v1653 = vadd.f32 0.0, %v1652
      %v1654 = vpop.f32.mrf.mxu0
      %v1655 = vadd.f32 0.0, %v1654
      %1656 = vmatmul.bf16.gmra.mxu0 %v1010
      %v1657 = vpop.f32.mrf.mxu0
      %v1658 = vadd.f32 0.0, %v1657
      %v1659 = vpop.f32.mrf.mxu0
      %v1660 = vadd.f32 0.0, %v1659
      %1661 = vmatmul.bf16.gmra.mxu0 %v1011
      %v1662 = vpop.f32.mrf.mxu0
      %v1663 = vadd.f32 0.0, %v1662
      %v1664 = vpop.f32.mrf.mxu0
      %v1665 = vadd.f32 0.0, %v1664
      %1666 = vmatmul.bf16.gmra.mxu0 %v1012
      %v1667 = vpop.f32.mrf.mxu0
      %v1668 = vadd.f32 0.0, %v1667
      %v1669 = vpop.f32.mrf.mxu0
      %v1670 = vadd.f32 0.0, %v1669
      %1671 = vmatmul.bf16.gmra.mxu0 %v1013
      %v1672 = vpop.f32.mrf.mxu0
      %v1673 = vadd.f32 0.0, %v1672
      %v1674 = vpop.f32.mrf.mxu0
      %v1675 = vadd.f32 0.0, %v1674
      %1676 = vmatmul.bf16.gmra.mxu0 %v1014
      %v1677 = vpop.f32.mrf.mxu0
      %v1678 = vadd.f32 0.0, %v1677
      %v1679 = vpop.f32.mrf.mxu0
      %v1680 = vadd.f32 0.0, %v1679
      %1681 = vmatmul.bf16.gmra.mxu0 %v1015
      %v1682 = vpop.f32.mrf.mxu0
      %v1683 = vadd.f32 0.0, %v1682
      %v1684 = vpop.f32.mrf.mxu0
      %v1685 = vadd.f32 0.0, %v1684
      %1686 = vmatmul.bf16.gmra.mxu0 %v1016
      %v1687 = vpop.f32.mrf.mxu0
      %v1688 = vadd.f32 0.0, %v1687
      %v1689 = vpop.f32.mrf.mxu0
      %v1690 = vadd.f32 0.0, %v1689
      %1691 = vmatmul.bf16.gmra.mxu0 %v1017
      %v1692 = vpop.f32.mrf.mxu0
      %v1693 = vadd.f32 0.0, %v1692
      %v1694 = vpop.f32.mrf.mxu0
      %v1695 = vadd.f32 0.0, %v1694
      %1696 = vmatmul.bf16.gmra.mxu0 %v1018
      %v1697 = vpop.f32.mrf.mxu0
      %v1698 = vadd.f32 0.0, %v1697
      %v1699 = vpop.f32.mrf.mxu0
      %v1700 = vadd.f32 0.0, %v1699
      %1701 = vmatmul.bf16.gmra.mxu0 %v1019
      %v1702 = vpop.f32.mrf.mxu0
      %v1703 = vadd.f32 0.0, %v1702
      %v1704 = vpop.f32.mrf.mxu0
      %v1705 = vadd.f32 0.0, %v1704
      %1706 = vmatmul.bf16.gmra.mxu0 %v1020
      %v1707 = vpop.f32.mrf.mxu0
      %v1708 = vadd.f32 0.0, %v1707
      %v1709 = vpop.f32.mrf.mxu0
      %v1710 = vadd.f32 0.0, %v1709
      %1711 = vmatmul.bf16.gmra.mxu0 %v1021
      %v1712 = vpop.f32.mrf.mxu0
      %v1713 = vadd.f32 0.0, %v1712
      %v1714 = vpop.f32.mrf.mxu0
      %v1715 = vadd.f32 0.0, %v1714
      %1716 = vmatmul.bf16.gmra.mxu0 %v1022
      %v1717 = vpop.f32.mrf.mxu0
      %v1718 = vadd.f32 0.0, %v1717
      %v1719 = vpop.f32.mrf.mxu0
      %v1720 = vadd.f32 0.0, %v1719
      %1721 = vdwg.mxu0
      %1722 = vmatpush.bf16.msra.mxu0 %v1600
      %1723 = vmatpush.bf16.msra.mxu0 %v1599
      %1724 = vmatpush.bf16.msra.mxu0 %v1598
      %1725 = vmatpush.bf16.msra.mxu0 %v1597
      %1726 = vmatpush.bf16.msra.mxu0 %v1596
      %1727 = vmatpush.bf16.msra.mxu0 %v1595
      %1728 = vmatpush.bf16.msra.mxu0 %v1594
      %1729 = vmatpush.bf16.msra.mxu0 %v1593
      %1730 = vmatmul.bf16.gmra.mxu0 %v1207
      %v1731 = vpop.f32.mrf.mxu0
      %v1732 = vadd.f32 %v1643, %v1731
      %v1733 = vpop.f32.mrf.mxu0
      %v1734 = vadd.f32 %v1645, %v1733
      %1735 = vmatmul.bf16.gmra.mxu0 %v1195
      %v1736 = vpop.f32.mrf.mxu0
      %v1737 = vadd.f32 %v1648, %v1736
      %v1738 = vpop.f32.mrf.mxu0
      %v1739 = vadd.f32 %v1650, %v1738
      %1740 = vmatmul.bf16.gmra.mxu0 %v1219
      %v1741 = vpop.f32.mrf.mxu0
      %v1742 = vadd.f32 %v1653, %v1741
      %v1743 = vpop.f32.mrf.mxu0
      %v1744 = vadd.f32 %v1655, %v1743
      %1745 = vmatmul.bf16.gmra.mxu0 %v1231
      %v1746 = vpop.f32.mrf.mxu0
      %v1747 = vadd.f32 %v1658, %v1746
      %v1748 = vpop.f32.mrf.mxu0
      %v1749 = vadd.f32 %v1660, %v1748
      %1750 = vmatmul.bf16.gmra.mxu0 %v1243
      %v1751 = vpop.f32.mrf.mxu0
      %v1752 = vadd.f32 %v1663, %v1751
      %v1753 = vpop.f32.mrf.mxu0
      %v1754 = vadd.f32 %v1665, %v1753
      %1755 = vmatmul.bf16.gmra.mxu0 %v1255
      %v1756 = vpop.f32.mrf.mxu0
      %v1757 = vadd.f32 %v1668, %v1756
      %v1758 = vpop.f32.mrf.mxu0
      %v1759 = vadd.f32 %v1670, %v1758
      %1760 = vmatmul.bf16.gmra.mxu0 %v1267
      %v1761 = vpop.f32.mrf.mxu0
      %v1762 = vadd.f32 %v1673, %v1761
      %v1763 = vpop.f32.mrf.mxu0
      %v1764 = vadd.f32 %v1675, %v1763
      %1765 = vmatmul.bf16.gmra.mxu0 %v1279
      %v1766 = vpop.f32.mrf.mxu0
      %v1767 = vadd.f32 %v1678, %v1766
      %v1768 = vpop.f32.mrf.mxu0
      %v1769 = vadd.f32 %v1680, %v1768
      %1770 = vmatmul.bf16.gmra.mxu0 %v1291
      %v1771 = vpop.f32.mrf.mxu0
      %v1772 = vadd.f32 %v1683, %v1771
      %v1773 = vpop.f32.mrf.mxu0
      %v1774 = vadd.f32 %v1685, %v1773
      %1775 = vmatmul.bf16.gmra.mxu0 %v1303
      %v1776 = vpop.f32.mrf.mxu0
      %v1777 = vadd.f32 %v1688, %v1776
      %v1778 = vpop.f32.mrf.mxu0
      %v1779 = vadd.f32 %v1690, %v1778
      %1780 = vmatmul.bf16.gmra.mxu0 %v1315
      %v1781 = vpop.f32.mrf.mxu0
      %v1782 = vadd.f32 %v1693, %v1781
      %v1783 = vpop.f32.mrf.mxu0
      %v1784 = vadd.f32 %v1695, %v1783
      %1785 = vmatmul.bf16.gmra.mxu0 %v1327
      %v1786 = vpop.f32.mrf.mxu0
      %v1787 = vadd.f32 %v1698, %v1786
      %v1788 = vpop.f32.mrf.mxu0
      %v1789 = vadd.f32 %v1700, %v1788
      %1790 = vmatmul.bf16.gmra.mxu0 %v1339
      %v1791 = vpop.f32.mrf.mxu0
      %v1792 = vadd.f32 %v1703, %v1791
      %v1793 = vpop.f32.mrf.mxu0
      %v1794 = vadd.f32 %v1705, %v1793
      %1795 = vmatmul.bf16.gmra.mxu0 %v1351
      %v1796 = vpop.f32.mrf.mxu0
      %v1797 = vadd.f32 %v1708, %v1796
      %v1798 = vpop.f32.mrf.mxu0
      %v1799 = vadd.f32 %v1710, %v1798
      %1800 = vmatmul.bf16.gmra.mxu0 %v1363
      %v1801 = vpop.f32.mrf.mxu0
      %v1802 = vadd.f32 %v1713, %v1801
      %v1803 = vpop.f32.mrf.mxu0
      %v1804 = vadd.f32 %v1715, %v1803
      %1805 = vmatmul.bf16.gmra.mxu0 %v1375
      %v1806 = vpop.f32.mrf.mxu0
      %v1807 = vadd.f32 %v1718, %v1806
      %v1808 = vpop.f32.mrf.mxu0
      %v1809 = vadd.f32 %v1720, %v1808
      %1810 = vdwg.mxu0
      %1811 = vmatpush.bf16.msra.mxu0 %v1608
      %1812 = vmatpush.bf16.msra.mxu0 %v1607
      %1813 = vmatpush.bf16.msra.mxu0 %v1606
      %1814 = vmatpush.bf16.msra.mxu0 %v1605
      %1815 = vmatpush.bf16.msra.mxu0 %v1604
      %1816 = vmatpush.bf16.msra.mxu0 %v1603
      %1817 = vmatpush.bf16.msra.mxu0 %v1602
      %1818 = vmatpush.bf16.msra.mxu0 %v1601
      %1819 = vmatmul.bf16.gmra.mxu0 %v1430
      %v1820 = vpop.f32.mrf.mxu0
      %v1821 = vadd.f32 %v1732, %v1820
      %v1822 = vpop.f32.mrf.mxu0
      %v1823 = vadd.f32 %v1734, %v1822
      %1824 = vmatmul.bf16.gmra.mxu0 %v1427
      %v1825 = vpop.f32.mrf.mxu0
      %v1826 = vadd.f32 %v1737, %v1825
      %v1827 = vpop.f32.mrf.mxu0
      %v1828 = vadd.f32 %v1739, %v1827
      %1829 = vmatmul.bf16.gmra.mxu0 %v1433
      %v1830 = vpop.f32.mrf.mxu0
      %v1831 = vadd.f32 %v1742, %v1830
      %v1832 = vpop.f32.mrf.mxu0
      %v1833 = vadd.f32 %v1744, %v1832
      %1834 = vmatmul.bf16.gmra.mxu0 %v1436
      %v1835 = vpop.f32.mrf.mxu0
      %v1836 = vadd.f32 %v1747, %v1835
      %v1837 = vpop.f32.mrf.mxu0
      %v1838 = vadd.f32 %v1749, %v1837
      %1839 = vmatmul.bf16.gmra.mxu0 %v1439
      %v1840 = vpop.f32.mrf.mxu0
      %v1841 = vadd.f32 %v1752, %v1840
      %v1842 = vpop.f32.mrf.mxu0
      %v1843 = vadd.f32 %v1754, %v1842
      %1844 = vmatmul.bf16.gmra.mxu0 %v1442
      %v1845 = vpop.f32.mrf.mxu0
      %v1846 = vadd.f32 %v1757, %v1845
      %v1847 = vpop.f32.mrf.mxu0
      %v1848 = vadd.f32 %v1759, %v1847
      %1849 = vmatmul.bf16.gmra.mxu0 %v1445
      %v1850 = vpop.f32.mrf.mxu0
      %v1851 = vadd.f32 %v1762, %v1850
      %v1852 = vpop.f32.mrf.mxu0
      %v1853 = vadd.f32 %v1764, %v1852
      %1854 = vmatmul.bf16.gmra.mxu0 %v1448
      %v1855 = vpop.f32.mrf.mxu0
      %v1856 = vadd.f32 %v1767, %v1855
      %v1857 = vpop.f32.mrf.mxu0
      %v1858 = vadd.f32 %v1769, %v1857
      %1859 = vmatmul.bf16.gmra.mxu0 %v1451
      %v1860 = vpop.f32.mrf.mxu0
      %v1861 = vadd.f32 %v1772, %v1860
      %v1862 = vpop.f32.mrf.mxu0
      %v1863 = vadd.f32 %v1774, %v1862
      %1864 = vmatmul.bf16.gmra.mxu0 %v1454
      %v1865 = vpop.f32.mrf.mxu0
      %v1866 = vadd.f32 %v1777, %v1865
      %v1867 = vpop.f32.mrf.mxu0
      %v1868 = vadd.f32 %v1779, %v1867
      %1869 = vmatmul.bf16.gmra.mxu0 %v1457
      %v1870 = vpop.f32.mrf.mxu0
      %v1871 = vadd.f32 %v1782, %v1870
      %v1872 = vpop.f32.mrf.mxu0
      %v1873 = vadd.f32 %v1784, %v1872
      %1874 = vmatmul.bf16.gmra.mxu0 %v1460
      %v1875 = vpop.f32.mrf.mxu0
      %v1876 = vadd.f32 %v1787, %v1875
      %v1877 = vpop.f32.mrf.mxu0
      %v1878 = vadd.f32 %v1789, %v1877
      %1879 = vmatmul.bf16.gmra.mxu0 %v1463
      %v1880 = vpop.f32.mrf.mxu0
      %v1881 = vadd.f32 %v1792, %v1880
      %v1882 = vpop.f32.mrf.mxu0
      %v1883 = vadd.f32 %v1794, %v1882
      %1884 = vmatmul.bf16.gmra.mxu0 %v1466
      %v1885 = vpop.f32.mrf.mxu0
      %v1886 = vadd.f32 %v1797, %v1885
      %v1887 = vpop.f32.mrf.mxu0
      %v1888 = vadd.f32 %v1799, %v1887
      %1889 = vmatmul.bf16.gmra.mxu0 %v1469
      %v1890 = vpop.f32.mrf.mxu0
      %v1891 = vadd.f32 %v1802, %v1890
      %v1892 = vpop.f32.mrf.mxu0
      %v1893 = vadd.f32 %v1804, %v1892
      %1894 = vmatmul.bf16.gmra.mxu0 %v1472
      %v1895 = vpop.f32.mrf.mxu0
      %v1896 = vadd.f32 %v1807, %v1895
      %v1897 = vpop.f32.mrf.mxu0
      %v1898 = vadd.f32 %v1809, %v1897
      %1899 = vdwg.mxu0
      %v1948 = vunpack.c.l.b16 %v1039
      %v1949 = vunpack.c.l.b16 %v1040
      %v1950 = vunpack.c.l.b16 %v1041
      %v1951 = vunpack.c.l.b16 %v1042
      %v1952 = vunpack.c.l.b16 %v1043
      %v1953 = vunpack.c.l.b16 %v1044
      %v1954 = vunpack.c.l.b16 %v1045
      %v1955 = vunpack.c.l.b16 %v1046
      %v1956 = vunpack.c.l.b16 %v1047
      %v1957 = vunpack.c.l.b16 %v1048
      %v1958 = vunpack.c.l.b16 %v1049
      %v1959 = vunpack.c.l.b16 %v1050
      %v1960 = vunpack.c.l.b16 %v1051
      %v1961 = vunpack.c.l.b16 %v1052
      %v1962 = vunpack.c.l.b16 %v1053
      %v1963 = vunpack.c.l.b16 %v1054
      %v1964 = vunpack.c.l.b16 %v1055
      %v1965 = vunpack.c.l.b16 %v1056
      %v1966 = vunpack.c.l.b16 %v1057
      %v1967 = vunpack.c.l.b16 %v1058
      %v1968 = vunpack.c.l.b16 %v1059
      %v1969 = vunpack.c.l.b16 %v1060
      %v1970 = vunpack.c.l.b16 %v1061
      %v1971 = vunpack.c.l.b16 %v1062
      %v1972 = vunpack.c.l.b16 %v1063
      %v1973 = vunpack.c.l.b16 %v1064
      %v1974 = vunpack.c.l.b16 %v1065
      %v1975 = vunpack.c.l.b16 %v1066
      %v1976 = vunpack.c.l.b16 %v1067
      %v1977 = vunpack.c.l.b16 %v1068
      %v1978 = vunpack.c.l.b16 %v1069
      %v1979 = vunpack.c.l.b16 %v1070
      %v1980 = vunpack.c.l.b16 %v1071
      %v1981 = vunpack.c.l.b16 %v1072
      %v1982 = vunpack.c.l.b16 %v1073
      %v1983 = vunpack.c.l.b16 %v1074
      %v1984 = vunpack.c.l.b16 %v1075
      %v1985 = vunpack.c.l.b16 %v1076
      %v1986 = vunpack.c.l.b16 %v1077
      %v1987 = vunpack.c.l.b16 %v1078
      %v1988 = vunpack.c.l.b16 %v1079
      %v1989 = vunpack.c.l.b16 %v1080
      %v1990 = vunpack.c.l.b16 %v1081
      %v1991 = vunpack.c.l.b16 %v1082
      %v1992 = vunpack.c.l.b16 %v1083
      %v1993 = vunpack.c.l.b16 %v1084
      %v1994 = vunpack.c.l.b16 %v1085
      %v1995 = vunpack.c.l.b16 %v1086
      %v1996 = vpack.c.b16 %v1949, %v1948
      %v1997 = vpack.c.b16 %v1951, %v1950
      %v1998 = vpack.c.b16 %v1953, %v1952
      %v1999 = vpack.c.b16 %v1955, %v1954
      %v2000 = vpack.c.b16 %v1957, %v1956
      %v2001 = vpack.c.b16 %v1959, %v1958
      %v2002 = vpack.c.b16 %v1961, %v1960
      %v2003 = vpack.c.b16 %v1963, %v1962
      %v2004 = vpack.c.b16 %v1965, %v1964
      %v2005 = vpack.c.b16 %v1967, %v1966
      %v2006 = vpack.c.b16 %v1969, %v1968
      %v2007 = vpack.c.b16 %v1971, %v1970
      %v2008 = vpack.c.b16 %v1973, %v1972
      %v2009 = vpack.c.b16 %v1975, %v1974
      %v2010 = vpack.c.b16 %v1977, %v1976
      %v2011 = vpack.c.b16 %v1979, %v1978
      %v2012 = vpack.c.b16 %v1981, %v1980
      %v2013 = vpack.c.b16 %v1983, %v1982
      %v2014 = vpack.c.b16 %v1985, %v1984
      %v2015 = vpack.c.b16 %v1987, %v1986
      %v2016 = vpack.c.b16 %v1989, %v1988
      %v2017 = vpack.c.b16 %v1991, %v1990
      %v2018 = vpack.c.b16 %v1993, %v1992
      %v2019 = vpack.c.b16 %v1995, %v1994
      %2044 = vmatpush.bf16.msra.mxu0 %v2003
      %2045 = vmatpush.bf16.msra.mxu0 %v2002
      %2046 = vmatpush.bf16.msra.mxu0 %v2001
      %2047 = vmatpush.bf16.msra.mxu0 %v2000
      %2048 = vmatpush.bf16.msra.mxu0 %v1999
      %2049 = vmatpush.bf16.msra.mxu0 %v1998
      %2050 = vmatpush.bf16.msra.mxu0 %v1997
      %2051 = vmatpush.bf16.msra.mxu0 %v1996
      %2052 = vmatmul.bf16.gmra.mxu0 %v1007
      %v2053 = vpop.f32.mrf.mxu0
      %v2054 = vadd.f32 %v1821, %v2053
      %v2055 = vpop.f32.mrf.mxu0
      %v2056 = vadd.f32 %v1823, %v2055
      %2057 = vmatmul.bf16.gmra.mxu0 %v1008
      %v2058 = vpop.f32.mrf.mxu0
      %v2059 = vadd.f32 %v1826, %v2058
      %v2060 = vpop.f32.mrf.mxu0
      %v2061 = vadd.f32 %v1828, %v2060
      %2062 = vmatmul.bf16.gmra.mxu0 %v1007
      %v2063 = vpop.f32.mrf.mxu0
      %v2064 = vadd.f32 %v1831, %v2063
      %v2065 = vpop.f32.mrf.mxu0
      %v2066 = vadd.f32 %v1833, %v2065
      %2067 = vmatmul.bf16.gmra.mxu0 %v1009
      %v2068 = vpop.f32.mrf.mxu0
      %v2069 = vadd.f32 %v1836, %v2068
      %v2070 = vpop.f32.mrf.mxu0
      %v2071 = vadd.f32 %v1838, %v2070
      %2072 = vmatmul.bf16.gmra.mxu0 %v1010
      %v2073 = vpop.f32.mrf.mxu0
      %v2074 = vadd.f32 %v1841, %v2073
      %v2075 = vpop.f32.mrf.mxu0
      %v2076 = vadd.f32 %v1843, %v2075
      %2077 = vmatmul.bf16.gmra.mxu0 %v1011
      %v2078 = vpop.f32.mrf.mxu0
      %v2079 = vadd.f32 %v1846, %v2078
      %v2080 = vpop.f32.mrf.mxu0
      %v2081 = vadd.f32 %v1848, %v2080
      %2082 = vmatmul.bf16.gmra.mxu0 %v1012
      %v2083 = vpop.f32.mrf.mxu0
      %v2084 = vadd.f32 %v1851, %v2083
      %v2085 = vpop.f32.mrf.mxu0
      %v2086 = vadd.f32 %v1853, %v2085
      %2087 = vmatmul.bf16.gmra.mxu0 %v1013
      %v2088 = vpop.f32.mrf.mxu0
      %v2089 = vadd.f32 %v1856, %v2088
      %v2090 = vpop.f32.mrf.mxu0
      %v2091 = vadd.f32 %v1858, %v2090
      %2092 = vmatmul.bf16.gmra.mxu0 %v1014
      %v2093 = vpop.f32.mrf.mxu0
      %v2094 = vadd.f32 %v1861, %v2093
      %v2095 = vpop.f32.mrf.mxu0
      %v2096 = vadd.f32 %v1863, %v2095
      %2097 = vmatmul.bf16.gmra.mxu0 %v1015
      %v2098 = vpop.f32.mrf.mxu0
      %v2099 = vadd.f32 %v1866, %v2098
      %v2100 = vpop.f32.mrf.mxu0
      %v2101 = vadd.f32 %v1868, %v2100
      %2102 = vmatmul.bf16.gmra.mxu0 %v1016
      %v2103 = vpop.f32.mrf.mxu0
      %v2104 = vadd.f32 %v1871, %v2103
      %v2105 = vpop.f32.mrf.mxu0
      %v2106 = vadd.f32 %v1873, %v2105
      %2107 = vmatmul.bf16.gmra.mxu0 %v1017
      %v2108 = vpop.f32.mrf.mxu0
      %v2109 = vadd.f32 %v1876, %v2108
      %v2110 = vpop.f32.mrf.mxu0
      %v2111 = vadd.f32 %v1878, %v2110
      %2112 = vmatmul.bf16.gmra.mxu0 %v1018
      %v2113 = vpop.f32.mrf.mxu0
      %v2114 = vadd.f32 %v1881, %v2113
      %v2115 = vpop.f32.mrf.mxu0
      %v2116 = vadd.f32 %v1883, %v2115
      %2117 = vmatmul.bf16.gmra.mxu0 %v1019
      %v2118 = vpop.f32.mrf.mxu0
      %v2119 = vadd.f32 %v1886, %v2118
      %v2120 = vpop.f32.mrf.mxu0
      %v2121 = vadd.f32 %v1888, %v2120
      %2122 = vmatmul.bf16.gmra.mxu0 %v1020
      %v2123 = vpop.f32.mrf.mxu0
      %v2124 = vadd.f32 %v1891, %v2123
      %v2125 = vpop.f32.mrf.mxu0
      %v2126 = vadd.f32 %v1893, %v2125
      %2127 = vmatmul.bf16.gmra.mxu0 %v1021
      %v2128 = vpop.f32.mrf.mxu0
      %v2129 = vadd.f32 %v1896, %v2128
      %v2130 = vpop.f32.mrf.mxu0
      %v2131 = vadd.f32 %v1898, %v2130
      %2132 = vdwg.mxu0
      %2133 = vmatpush.bf16.msra.mxu0 %v2011
      %2134 = vmatpush.bf16.msra.mxu0 %v2010
      %2135 = vmatpush.bf16.msra.mxu0 %v2009
      %2136 = vmatpush.bf16.msra.mxu0 %v2008
      %2137 = vmatpush.bf16.msra.mxu0 %v2007
      %2138 = vmatpush.bf16.msra.mxu0 %v2006
      %2139 = vmatpush.bf16.msra.mxu0 %v2005
      %2140 = vmatpush.bf16.msra.mxu0 %v2004
      %2141 = vmatmul.bf16.gmra.mxu0 %v1195
      %v2142 = vpop.f32.mrf.mxu0
      %v2143 = vadd.f32 %v2054, %v2142
      %v2144 = vpop.f32.mrf.mxu0
      %v2145 = vadd.f32 %v2056, %v2144
      %2146 = vmatmul.bf16.gmra.mxu0 %v1207
      %v2147 = vpop.f32.mrf.mxu0
      %v2148 = vadd.f32 %v2059, %v2147
      %v2149 = vpop.f32.mrf.mxu0
      %v2150 = vadd.f32 %v2061, %v2149
      %2151 = vmatmul.bf16.gmra.mxu0 %v1195
      %v2152 = vpop.f32.mrf.mxu0
      %v2153 = vadd.f32 %v2064, %v2152
      %v2154 = vpop.f32.mrf.mxu0
      %v2155 = vadd.f32 %v2066, %v2154
      %2156 = vmatmul.bf16.gmra.mxu0 %v1219
      %v2157 = vpop.f32.mrf.mxu0
      %v2158 = vadd.f32 %v2069, %v2157
      %v2159 = vpop.f32.mrf.mxu0
      %v2160 = vadd.f32 %v2071, %v2159
      %2161 = vmatmul.bf16.gmra.mxu0 %v1231
      %v2162 = vpop.f32.mrf.mxu0
      %v2163 = vadd.f32 %v2074, %v2162
      %v2164 = vpop.f32.mrf.mxu0
      %v2165 = vadd.f32 %v2076, %v2164
      %2166 = vmatmul.bf16.gmra.mxu0 %v1243
      %v2167 = vpop.f32.mrf.mxu0
      %v2168 = vadd.f32 %v2079, %v2167
      %v2169 = vpop.f32.mrf.mxu0
      %v2170 = vadd.f32 %v2081, %v2169
      %2171 = vmatmul.bf16.gmra.mxu0 %v1255
      %v2172 = vpop.f32.mrf.mxu0
      %v2173 = vadd.f32 %v2084, %v2172
      %v2174 = vpop.f32.mrf.mxu0
      %v2175 = vadd.f32 %v2086, %v2174
      %2176 = vmatmul.bf16.gmra.mxu0 %v1267
      %v2177 = vpop.f32.mrf.mxu0
      %v2178 = vadd.f32 %v2089, %v2177
      %v2179 = vpop.f32.mrf.mxu0
      %v2180 = vadd.f32 %v2091, %v2179
      %2181 = vmatmul.bf16.gmra.mxu0 %v1279
      %v2182 = vpop.f32.mrf.mxu0
      %v2183 = vadd.f32 %v2094, %v2182
      %v2184 = vpop.f32.mrf.mxu0
      %v2185 = vadd.f32 %v2096, %v2184
      %2186 = vmatmul.bf16.gmra.mxu0 %v1291
      %v2187 = vpop.f32.mrf.mxu0
      %v2188 = vadd.f32 %v2099, %v2187
      %v2189 = vpop.f32.mrf.mxu0
      %v2190 = vadd.f32 %v2101, %v2189
      %2191 = vmatmul.bf16.gmra.mxu0 %v1303
      %v2192 = vpop.f32.mrf.mxu0
      %v2193 = vadd.f32 %v2104, %v2192
      %v2194 = vpop.f32.mrf.mxu0
      %v2195 = vadd.f32 %v2106, %v2194
      %2196 = vmatmul.bf16.gmra.mxu0 %v1315
      %v2197 = vpop.f32.mrf.mxu0
      %v2198 = vadd.f32 %v2109, %v2197
      %v2199 = vpop.f32.mrf.mxu0
      %v2200 = vadd.f32 %v2111, %v2199
      %2201 = vmatmul.bf16.gmra.mxu0 %v1327
      %v2202 = vpop.f32.mrf.mxu0
      %v2203 = vadd.f32 %v2114, %v2202
      %v2204 = vpop.f32.mrf.mxu0
      %v2205 = vadd.f32 %v2116, %v2204
      %2206 = vmatmul.bf16.gmra.mxu0 %v1339
      %v2207 = vpop.f32.mrf.mxu0
      %v2208 = vadd.f32 %v2119, %v2207
      %v2209 = vpop.f32.mrf.mxu0
      %v2210 = vadd.f32 %v2121, %v2209
      %2211 = vmatmul.bf16.gmra.mxu0 %v1351
      %v2212 = vpop.f32.mrf.mxu0
      %v2213 = vadd.f32 %v2124, %v2212
      %v2214 = vpop.f32.mrf.mxu0
      %v2215 = vadd.f32 %v2126, %v2214
      %2216 = vmatmul.bf16.gmra.mxu0 %v1363
      %v2217 = vpop.f32.mrf.mxu0
      %v2218 = vadd.f32 %v2129, %v2217
      %v2219 = vpop.f32.mrf.mxu0
      %v2220 = vadd.f32 %v2131, %v2219
      %2221 = vdwg.mxu0
      %2222 = vmatpush.bf16.msra.mxu0 %v2019
      %2223 = vmatpush.bf16.msra.mxu0 %v2018
      %2224 = vmatpush.bf16.msra.mxu0 %v2017
      %2225 = vmatpush.bf16.msra.mxu0 %v2016
      %2226 = vmatpush.bf16.msra.mxu0 %v2015
      %2227 = vmatpush.bf16.msra.mxu0 %v2014
      %2228 = vmatpush.bf16.msra.mxu0 %v2013
      %2229 = vmatpush.bf16.msra.mxu0 %v2012
      %2230 = vmatmul.bf16.gmra.mxu0 %v1427
      %v2231 = vpop.f32.mrf.mxu0
      %v2232 = vadd.f32 %v2143, %v2231
      %v2233 = vpop.f32.mrf.mxu0
      %v2234 = vadd.f32 %v2145, %v2233
      %2235 = vmatmul.bf16.gmra.mxu0 %v1430
      %v2236 = vpop.f32.mrf.mxu0
      %v2237 = vadd.f32 %v2148, %v2236
      %v2238 = vpop.f32.mrf.mxu0
      %v2239 = vadd.f32 %v2150, %v2238
      %2240 = vmatmul.bf16.gmra.mxu0 %v1427
      %v2241 = vpop.f32.mrf.mxu0
      %v2242 = vadd.f32 %v2153, %v2241
      %v2243 = vpop.f32.mrf.mxu0
      %v2244 = vadd.f32 %v2155, %v2243
      %2245 = vmatmul.bf16.gmra.mxu0 %v1433
      %v2246 = vpop.f32.mrf.mxu0
      %v2247 = vadd.f32 %v2158, %v2246
      %v2248 = vpop.f32.mrf.mxu0
      %v2249 = vadd.f32 %v2160, %v2248
      %2250 = vmatmul.bf16.gmra.mxu0 %v1436
      %v2251 = vpop.f32.mrf.mxu0
      %v2252 = vadd.f32 %v2163, %v2251
      %v2253 = vpop.f32.mrf.mxu0
      %v2254 = vadd.f32 %v2165, %v2253
      %2255 = vmatmul.bf16.gmra.mxu0 %v1439
      %v2256 = vpop.f32.mrf.mxu0
      %v2257 = vadd.f32 %v2168, %v2256
      %v2258 = vpop.f32.mrf.mxu0
      %v2259 = vadd.f32 %v2170, %v2258
      %2260 = vmatmul.bf16.gmra.mxu0 %v1442
      %v2261 = vpop.f32.mrf.mxu0
      %v2262 = vadd.f32 %v2173, %v2261
      %v2263 = vpop.f32.mrf.mxu0
      %v2264 = vadd.f32 %v2175, %v2263
      %2265 = vmatmul.bf16.gmra.mxu0 %v1445
      %v2266 = vpop.f32.mrf.mxu0
      %v2267 = vadd.f32 %v2178, %v2266
      %v2268 = vpop.f32.mrf.mxu0
      %v2269 = vadd.f32 %v2180, %v2268
      %2270 = vmatmul.bf16.gmra.mxu0 %v1448
      %v2271 = vpop.f32.mrf.mxu0
      %v2272 = vadd.f32 %v2183, %v2271
      %v2273 = vpop.f32.mrf.mxu0
      %v2274 = vadd.f32 %v2185, %v2273
      %2275 = vmatmul.bf16.gmra.mxu0 %v1451
      %v2276 = vpop.f32.mrf.mxu0
      %v2277 = vadd.f32 %v2188, %v2276
      %v2278 = vpop.f32.mrf.mxu0
      %v2279 = vadd.f32 %v2190, %v2278
      %2280 = vmatmul.bf16.gmra.mxu0 %v1454
      %v2281 = vpop.f32.mrf.mxu0
      %v2282 = vadd.f32 %v2193, %v2281
      %v2283 = vpop.f32.mrf.mxu0
      %v2284 = vadd.f32 %v2195, %v2283
      %2285 = vmatmul.bf16.gmra.mxu0 %v1457
      %v2286 = vpop.f32.mrf.mxu0
      %v2287 = vadd.f32 %v2198, %v2286
      %v2288 = vpop.f32.mrf.mxu0
      %v2289 = vadd.f32 %v2200, %v2288
      %2290 = vmatmul.bf16.gmra.mxu0 %v1460
      %v2291 = vpop.f32.mrf.mxu0
      %v2292 = vadd.f32 %v2203, %v2291
      %v2293 = vpop.f32.mrf.mxu0
      %v2294 = vadd.f32 %v2205, %v2293
      %2295 = vmatmul.bf16.gmra.mxu0 %v1463
      %v2296 = vpop.f32.mrf.mxu0
      %v2297 = vadd.f32 %v2208, %v2296
      %v2298 = vpop.f32.mrf.mxu0
      %v2299 = vadd.f32 %v2210, %v2298
      %2300 = vmatmul.bf16.gmra.mxu0 %v1466
      %v2301 = vpop.f32.mrf.mxu0
      %v2302 = vadd.f32 %v2213, %v2301
      %v2303 = vpop.f32.mrf.mxu0
      %v2304 = vadd.f32 %v2215, %v2303
      %2305 = vmatmul.bf16.gmra.mxu0 %v1469
      %v2306 = vpop.f32.mrf.mxu0
      %v2307 = vadd.f32 %v2218, %v2306
      %v2308 = vpop.f32.mrf.mxu0
      %v2309 = vadd.f32 %v2220, %v2308
      %2310 = vdwg.mxu0
      %v2359 = vunpack.c.l.b16 %v1135
      %v2360 = vunpack.c.l.b16 %v1136
      %v2361 = vunpack.c.l.b16 %v1137
      %v2362 = vunpack.c.l.b16 %v1138
      %v2363 = vunpack.c.l.b16 %v1139
      %v2364 = vunpack.c.l.b16 %v1140
      %v2365 = vunpack.c.l.b16 %v1141
      %v2366 = vunpack.c.l.b16 %v1142
      %v2367 = vunpack.c.l.b16 %v1143
      %v2368 = vunpack.c.l.b16 %v1144
      %v2369 = vunpack.c.l.b16 %v1145
      %v2370 = vunpack.c.l.b16 %v1146
      %v2371 = vunpack.c.l.b16 %v1147
      %v2372 = vunpack.c.l.b16 %v1148
      %v2373 = vunpack.c.l.b16 %v1149
      %v2374 = vunpack.c.l.b16 %v1150
      %v2375 = vunpack.c.l.b16 %v1151
      %v2376 = vunpack.c.l.b16 %v1152
      %v2377 = vunpack.c.l.b16 %v1153
      %v2378 = vunpack.c.l.b16 %v1154
      %v2379 = vunpack.c.l.b16 %v1155
      %v2380 = vunpack.c.l.b16 %v1156
      %v2381 = vunpack.c.l.b16 %v1157
      %v2382 = vunpack.c.l.b16 %v1158
      %v2383 = vunpack.c.l.b16 %v1159
      %v2384 = vunpack.c.l.b16 %v1160
      %v2385 = vunpack.c.l.b16 %v1161
      %v2386 = vunpack.c.l.b16 %v1162
      %v2387 = vunpack.c.l.b16 %v1163
      %v2388 = vunpack.c.l.b16 %v1164
      %v2389 = vunpack.c.l.b16 %v1165
      %v2390 = vunpack.c.l.b16 %v1166
      %v2391 = vunpack.c.l.b16 %v1167
      %v2392 = vunpack.c.l.b16 %v1168
      %v2393 = vunpack.c.l.b16 %v1169
      %v2394 = vunpack.c.l.b16 %v1170
      %v2395 = vunpack.c.l.b16 %v1171
      %v2396 = vunpack.c.l.b16 %v1172
      %v2397 = vunpack.c.l.b16 %v1173
      %v2398 = vunpack.c.l.b16 %v1174
      %v2399 = vunpack.c.l.b16 %v1175
      %v2400 = vunpack.c.l.b16 %v1176
      %v2401 = vunpack.c.l.b16 %v1177
      %v2402 = vunpack.c.l.b16 %v1178
      %v2403 = vunpack.c.l.b16 %v1179
      %v2404 = vunpack.c.l.b16 %v1180
      %v2405 = vunpack.c.l.b16 %v1181
      %v2406 = vunpack.c.l.b16 %v1182
      %v2407 = vpack.c.b16 %v2360, %v2359
      %v2408 = vpack.c.b16 %v2362, %v2361
      %v2409 = vpack.c.b16 %v2364, %v2363
      %v2410 = vpack.c.b16 %v2366, %v2365
      %v2411 = vpack.c.b16 %v2368, %v2367
      %v2412 = vpack.c.b16 %v2370, %v2369
      %v2413 = vpack.c.b16 %v2372, %v2371
      %v2414 = vpack.c.b16 %v2374, %v2373
      %v2415 = vpack.c.b16 %v2376, %v2375
      %v2416 = vpack.c.b16 %v2378, %v2377
      %v2417 = vpack.c.b16 %v2380, %v2379
      %v2418 = vpack.c.b16 %v2382, %v2381
      %v2419 = vpack.c.b16 %v2384, %v2383
      %v2420 = vpack.c.b16 %v2386, %v2385
      %v2421 = vpack.c.b16 %v2388, %v2387
      %v2422 = vpack.c.b16 %v2390, %v2389
      %v2423 = vpack.c.b16 %v2392, %v2391
      %v2424 = vpack.c.b16 %v2394, %v2393
      %v2425 = vpack.c.b16 %v2396, %v2395
      %v2426 = vpack.c.b16 %v2398, %v2397
      %v2427 = vpack.c.b16 %v2400, %v2399
      %v2428 = vpack.c.b16 %v2402, %v2401
      %v2429 = vpack.c.b16 %v2404, %v2403
      %v2430 = vpack.c.b16 %v2406, %v2405
      %2455 = vmatpush.bf16.msra.mxu0 %v2414
      %2456 = vmatpush.bf16.msra.mxu0 %v2413
      %2457 = vmatpush.bf16.msra.mxu0 %v2412
      %2458 = vmatpush.bf16.msra.mxu0 %v2411
      %2459 = vmatpush.bf16.msra.mxu0 %v2410
      %2460 = vmatpush.bf16.msra.mxu0 %v2409
      %2461 = vmatpush.bf16.msra.mxu0 %v2408
      %2462 = vmatpush.bf16.msra.mxu0 %v2407
      %2463 = vmatmul.bf16.gmra.mxu0 %v1007
      %v2464 = vpop.f32.mrf.mxu0
      %v2465 = vadd.f32 0.0, %v2464
      %v2466 = vpop.f32.mrf.mxu0
      %v2467 = vadd.f32 0.0, %v2466
      %2468 = vmatmul.bf16.gmra.mxu0 %v1009
      %v2469 = vpop.f32.mrf.mxu0
      %v2470 = vadd.f32 0.0, %v2469
      %v2471 = vpop.f32.mrf.mxu0
      %v2472 = vadd.f32 0.0, %v2471
      %2473 = vmatmul.bf16.gmra.mxu0 %v1010
      %v2474 = vpop.f32.mrf.mxu0
      %v2475 = vadd.f32 0.0, %v2474
      %v2476 = vpop.f32.mrf.mxu0
      %v2477 = vadd.f32 0.0, %v2476
      %2478 = vmatmul.bf16.gmra.mxu0 %v1011
      %v2479 = vpop.f32.mrf.mxu0
      %v2480 = vadd.f32 0.0, %v2479
      %v2481 = vpop.f32.mrf.mxu0
      %v2482 = vadd.f32 0.0, %v2481
      %2483 = vmatmul.bf16.gmra.mxu0 %v1012
      %v2484 = vpop.f32.mrf.mxu0
      %v2485 = vadd.f32 0.0, %v2484
      %v2486 = vpop.f32.mrf.mxu0
      %v2487 = vadd.f32 0.0, %v2486
      %2488 = vmatmul.bf16.gmra.mxu0 %v1013
      %v2489 = vpop.f32.mrf.mxu0
      %v2490 = vadd.f32 0.0, %v2489
      %v2491 = vpop.f32.mrf.mxu0
      %v2492 = vadd.f32 0.0, %v2491
      %2493 = vmatmul.bf16.gmra.mxu0 %v1014
      %v2494 = vpop.f32.mrf.mxu0
      %v2495 = vadd.f32 0.0, %v2494
      %v2496 = vpop.f32.mrf.mxu0
      %v2497 = vadd.f32 0.0, %v2496
      %2498 = vmatmul.bf16.gmra.mxu0 %v1015
      %v2499 = vpop.f32.mrf.mxu0
      %v2500 = vadd.f32 0.0, %v2499
      %v2501 = vpop.f32.mrf.mxu0
      %v2502 = vadd.f32 0.0, %v2501
      %2503 = vmatmul.bf16.gmra.mxu0 %v1016
      %v2504 = vpop.f32.mrf.mxu0
      %v2505 = vadd.f32 0.0, %v2504
      %v2506 = vpop.f32.mrf.mxu0
      %v2507 = vadd.f32 0.0, %v2506
      %2508 = vmatmul.bf16.gmra.mxu0 %v1017
      %v2509 = vpop.f32.mrf.mxu0
      %v2510 = vadd.f32 0.0, %v2509
      %v2511 = vpop.f32.mrf.mxu0
      %v2512 = vadd.f32 0.0, %v2511
      %2513 = vmatmul.bf16.gmra.mxu0 %v1018
      %v2514 = vpop.f32.mrf.mxu0
      %v2515 = vadd.f32 0.0, %v2514
      %v2516 = vpop.f32.mrf.mxu0
      %v2517 = vadd.f32 0.0, %v2516
      %2518 = vmatmul.bf16.gmra.mxu0 %v1019
      %v2519 = vpop.f32.mrf.mxu0
      %v2520 = vadd.f32 0.0, %v2519
      %v2521 = vpop.f32.mrf.mxu0
      %v2522 = vadd.f32 0.0, %v2521
      %2523 = vmatmul.bf16.gmra.mxu0 %v1020
      %v2524 = vpop.f32.mrf.mxu0
      %v2525 = vadd.f32 0.0, %v2524
      %v2526 = vpop.f32.mrf.mxu0
      %v2527 = vadd.f32 0.0, %v2526
      %2528 = vmatmul.bf16.gmra.mxu0 %v1021
      %v2529 = vpop.f32.mrf.mxu0
      %v2530 = vadd.f32 0.0, %v2529
      %v2531 = vpop.f32.mrf.mxu0
      %v2532 = vadd.f32 0.0, %v2531
      %2533 = vmatmul.bf16.gmra.mxu0 %v1022
      %v2534 = vpop.f32.mrf.mxu0
      %v2535 = vadd.f32 0.0, %v2534
      %v2536 = vpop.f32.mrf.mxu0
      %v2537 = vadd.f32 0.0, %v2536
      %2538 = vmatmul.bf16.gmra.mxu0 %v1021
      %v2539 = vpop.f32.mrf.mxu0
      %v2540 = vadd.f32 0.0, %v2539
      %v2541 = vpop.f32.mrf.mxu0
      %v2542 = vadd.f32 0.0, %v2541
      %2543 = vdwg.mxu0
      %2544 = vmatpush.bf16.msra.mxu0 %v2422
      %2545 = vmatpush.bf16.msra.mxu0 %v2421
      %2546 = vmatpush.bf16.msra.mxu0 %v2420
      %2547 = vmatpush.bf16.msra.mxu0 %v2419
      %2548 = vmatpush.bf16.msra.mxu0 %v2418
      %2549 = vmatpush.bf16.msra.mxu0 %v2417
      %2550 = vmatpush.bf16.msra.mxu0 %v2416
      %2551 = vmatpush.bf16.msra.mxu0 %v2415
      %2552 = vmatmul.bf16.gmra.mxu0 %v1195
      %v2553 = vpop.f32.mrf.mxu0
      %v2554 = vadd.f32 %v2465, %v2553
      %v2555 = vpop.f32.mrf.mxu0
      %v2556 = vadd.f32 %v2467, %v2555
      %2557 = vmatmul.bf16.gmra.mxu0 %v1219
      %v2558 = vpop.f32.mrf.mxu0
      %v2559 = vadd.f32 %v2470, %v2558
      %v2560 = vpop.f32.mrf.mxu0
      %v2561 = vadd.f32 %v2472, %v2560
      %2562 = vmatmul.bf16.gmra.mxu0 %v1231
      %v2563 = vpop.f32.mrf.mxu0
      %v2564 = vadd.f32 %v2475, %v2563
      %v2565 = vpop.f32.mrf.mxu0
      %v2566 = vadd.f32 %v2477, %v2565
      %2567 = vmatmul.bf16.gmra.mxu0 %v1243
      %v2568 = vpop.f32.mrf.mxu0
      %v2569 = vadd.f32 %v2480, %v2568
      %v2570 = vpop.f32.mrf.mxu0
      %v2571 = vadd.f32 %v2482, %v2570
      %2572 = vmatmul.bf16.gmra.mxu0 %v1255
      %v2573 = vpop.f32.mrf.mxu0
      %v2574 = vadd.f32 %v2485, %v2573
      %v2575 = vpop.f32.mrf.mxu0
      %v2576 = vadd.f32 %v2487, %v2575
      %2577 = vmatmul.bf16.gmra.mxu0 %v1267
      %v2578 = vpop.f32.mrf.mxu0
      %v2579 = vadd.f32 %v2490, %v2578
      %v2580 = vpop.f32.mrf.mxu0
      %v2581 = vadd.f32 %v2492, %v2580
      %2582 = vmatmul.bf16.gmra.mxu0 %v1279
      %v2583 = vpop.f32.mrf.mxu0
      %v2584 = vadd.f32 %v2495, %v2583
      %v2585 = vpop.f32.mrf.mxu0
      %v2586 = vadd.f32 %v2497, %v2585
      %2587 = vmatmul.bf16.gmra.mxu0 %v1291
      %v2588 = vpop.f32.mrf.mxu0
      %v2589 = vadd.f32 %v2500, %v2588
      %v2590 = vpop.f32.mrf.mxu0
      %v2591 = vadd.f32 %v2502, %v2590
      %2592 = vmatmul.bf16.gmra.mxu0 %v1303
      %v2593 = vpop.f32.mrf.mxu0
      %v2594 = vadd.f32 %v2505, %v2593
      %v2595 = vpop.f32.mrf.mxu0
      %v2596 = vadd.f32 %v2507, %v2595
      %2597 = vmatmul.bf16.gmra.mxu0 %v1315
      %v2598 = vpop.f32.mrf.mxu0
      %v2599 = vadd.f32 %v2510, %v2598
      %v2600 = vpop.f32.mrf.mxu0
      %v2601 = vadd.f32 %v2512, %v2600
      %2602 = vmatmul.bf16.gmra.mxu0 %v1327
      %v2603 = vpop.f32.mrf.mxu0
      %v2604 = vadd.f32 %v2515, %v2603
      %v2605 = vpop.f32.mrf.mxu0
      %v2606 = vadd.f32 %v2517, %v2605
      %2607 = vmatmul.bf16.gmra.mxu0 %v1339
      %v2608 = vpop.f32.mrf.mxu0
      %v2609 = vadd.f32 %v2520, %v2608
      %v2610 = vpop.f32.mrf.mxu0
      %v2611 = vadd.f32 %v2522, %v2610
      %2612 = vmatmul.bf16.gmra.mxu0 %v1351
      %v2613 = vpop.f32.mrf.mxu0
      %v2614 = vadd.f32 %v2525, %v2613
      %v2615 = vpop.f32.mrf.mxu0
      %v2616 = vadd.f32 %v2527, %v2615
      %2617 = vmatmul.bf16.gmra.mxu0 %v1363
      %v2618 = vpop.f32.mrf.mxu0
      %v2619 = vadd.f32 %v2530, %v2618
      %v2620 = vpop.f32.mrf.mxu0
      %v2621 = vadd.f32 %v2532, %v2620
      %2622 = vmatmul.bf16.gmra.mxu0 %v1375
      %v2623 = vpop.f32.mrf.mxu0
      %v2624 = vadd.f32 %v2535, %v2623
      %v2625 = vpop.f32.mrf.mxu0
      %v2626 = vadd.f32 %v2537, %v2625
      %2627 = vmatmul.bf16.gmra.mxu0 %v1363
      %v2628 = vpop.f32.mrf.mxu0
      %v2629 = vadd.f32 %v2540, %v2628
      %v2630 = vpop.f32.mrf.mxu0
      %v2631 = vadd.f32 %v2542, %v2630
      %2632 = vdwg.mxu0
      %2633 = vmatpush.bf16.msra.mxu0 %v2430
      %2634 = vmatpush.bf16.msra.mxu0 %v2429
      %2635 = vmatpush.bf16.msra.mxu0 %v2428
      %2636 = vmatpush.bf16.msra.mxu0 %v2427
      %2637 = vmatpush.bf16.msra.mxu0 %v2426
      %2638 = vmatpush.bf16.msra.mxu0 %v2425
      %2639 = vmatpush.bf16.msra.mxu0 %v2424
      %2640 = vmatpush.bf16.msra.mxu0 %v2423
      %2641 = vmatmul.bf16.gmra.mxu0 %v1427
      %v2642 = vpop.f32.mrf.mxu0
      %v2643 = vadd.f32 %v2554, %v2642
      %v2644 = vpop.f32.mrf.mxu0
      %v2645 = vadd.f32 %v2556, %v2644
      %2646 = vmatmul.bf16.gmra.mxu0 %v1433
      %v2647 = vpop.f32.mrf.mxu0
      %v2648 = vadd.f32 %v2559, %v2647
      %v2649 = vpop.f32.mrf.mxu0
      %v2650 = vadd.f32 %v2561, %v2649
      %2651 = vmatmul.bf16.gmra.mxu0 %v1436
      %v2652 = vpop.f32.mrf.mxu0
      %v2653 = vadd.f32 %v2564, %v2652
      %v2654 = vpop.f32.mrf.mxu0
      %v2655 = vadd.f32 %v2566, %v2654
      %2656 = vmatmul.bf16.gmra.mxu0 %v1439
      %v2657 = vpop.f32.mrf.mxu0
      %v2658 = vadd.f32 %v2569, %v2657
      %v2659 = vpop.f32.mrf.mxu0
      %v2660 = vadd.f32 %v2571, %v2659
      %2661 = vmatmul.bf16.gmra.mxu0 %v1442
      %v2662 = vpop.f32.mrf.mxu0
      %v2663 = vadd.f32 %v2574, %v2662
      %v2664 = vpop.f32.mrf.mxu0
      %v2665 = vadd.f32 %v2576, %v2664
      %2666 = vmatmul.bf16.gmra.mxu0 %v1445
      %v2667 = vpop.f32.mrf.mxu0
      %v2668 = vadd.f32 %v2579, %v2667
      %v2669 = vpop.f32.mrf.mxu0
      %v2670 = vadd.f32 %v2581, %v2669
      %2671 = vmatmul.bf16.gmra.mxu0 %v1448
      %v2672 = vpop.f32.mrf.mxu0
      %v2673 = vadd.f32 %v2584, %v2672
      %v2674 = vpop.f32.mrf.mxu0
      %v2675 = vadd.f32 %v2586, %v2674
      %2676 = vmatmul.bf16.gmra.mxu0 %v1451
      %v2677 = vpop.f32.mrf.mxu0
      %v2678 = vadd.f32 %v2589, %v2677
      %v2679 = vpop.f32.mrf.mxu0
      %v2680 = vadd.f32 %v2591, %v2679
      %2681 = vmatmul.bf16.gmra.mxu0 %v1454
      %v2682 = vpop.f32.mrf.mxu0
      %v2683 = vadd.f32 %v2594, %v2682
      %v2684 = vpop.f32.mrf.mxu0
      %v2685 = vadd.f32 %v2596, %v2684
      %2686 = vmatmul.bf16.gmra.mxu0 %v1457
      %v2687 = vpop.f32.mrf.mxu0
      %v2688 = vadd.f32 %v2599, %v2687
      %v2689 = vpop.f32.mrf.mxu0
      %v2690 = vadd.f32 %v2601, %v2689
      %2691 = vmatmul.bf16.gmra.mxu0 %v1460
      %v2692 = vpop.f32.mrf.mxu0
      %v2693 = vadd.f32 %v2604, %v2692
      %v2694 = vpop.f32.mrf.mxu0
      %v2695 = vadd.f32 %v2606, %v2694
      %2696 = vmatmul.bf16.gmra.mxu0 %v1463
      %v2697 = vpop.f32.mrf.mxu0
      %v2698 = vadd.f32 %v2609, %v2697
      %v2699 = vpop.f32.mrf.mxu0
      %v2700 = vadd.f32 %v2611, %v2699
      %2701 = vmatmul.bf16.gmra.mxu0 %v1466
      %v2702 = vpop.f32.mrf.mxu0
      %v2703 = vadd.f32 %v2614, %v2702
      %v2704 = vpop.f32.mrf.mxu0
      %v2705 = vadd.f32 %v2616, %v2704
      %2706 = vmatmul.bf16.gmra.mxu0 %v1469
      %v2707 = vpop.f32.mrf.mxu0
      %v2708 = vadd.f32 %v2619, %v2707
      %v2709 = vpop.f32.mrf.mxu0
      %v2710 = vadd.f32 %v2621, %v2709
      %2711 = vmatmul.bf16.gmra.mxu0 %v1472
      %v2712 = vpop.f32.mrf.mxu0
      %v2713 = vadd.f32 %v2624, %v2712
      %v2714 = vpop.f32.mrf.mxu0
      %v2715 = vadd.f32 %v2626, %v2714
      %2716 = vmatmul.bf16.gmra.mxu0 %v1469
      %v2717 = vpop.f32.mrf.mxu0
      %v2718 = vadd.f32 %v2629, %v2717
      %v2719 = vpop.f32.mrf.mxu0
      %v2720 = vadd.f32 %v2631, %v2719
      %2721 = vdwg.mxu0
      %v2722 = vadd.f32 %v2232, %v2643
      %v2723 = vadd.f32 %v2234, %v2645
      %v2724 = vadd.f32 %v2237, %v2648
      %v2725 = vadd.f32 %v2239, %v2650
      %v2726 = vadd.f32 %v2242, %v2653
      %v2727 = vadd.f32 %v2244, %v2655
      %v2728 = vadd.f32 %v2247, %v2658
      %v2729 = vadd.f32 %v2249, %v2660
      %v2730 = vadd.f32 %v2252, %v2663
      %v2731 = vadd.f32 %v2254, %v2665
      %v2732 = vadd.f32 %v2257, %v2668
      %v2733 = vadd.f32 %v2259, %v2670
      %v2734 = vadd.f32 %v2262, %v2673
      %v2735 = vadd.f32 %v2264, %v2675
      %v2736 = vadd.f32 %v2267, %v2678
      %v2737 = vadd.f32 %v2269, %v2680
      %v2738 = vadd.f32 %v2272, %v2683
      %v2739 = vadd.f32 %v2274, %v2685
      %v2740 = vadd.f32 %v2277, %v2688
      %v2741 = vadd.f32 %v2279, %v2690
      %v2742 = vadd.f32 %v2282, %v2693
      %v2743 = vadd.f32 %v2284, %v2695
      %v2744 = vadd.f32 %v2287, %v2698
      %v2745 = vadd.f32 %v2289, %v2700
      %v2746 = vadd.f32 %v2292, %v2703
      %v2747 = vadd.f32 %v2294, %v2705
      %v2748 = vadd.f32 %v2297, %v2708
      %v2749 = vadd.f32 %v2299, %v2710
      %v2750 = vadd.f32 %v2302, %v2713
      %v2751 = vadd.f32 %v2304, %v2715
      %v2752 = vadd.f32 %v2307, %v2718
      %v2753 = vadd.f32 %v2309, %v2720
      %v2754 = vld [vmem:[%s266] sm:$0xf]
      %v2755 = vld [vmem:[%s266 + $0x4] sm:$0xf]
      %v2756 = vld [vmem:[%s266 + $0x8] sm:$0xf]
      %v2757 = vld [vmem:[%s266 + $0xc] sm:$0xf]
      %v2758 = vld [vmem:[%s266 + $0x10] sm:$0xf]
      %v2759 = vld [vmem:[%s266 + $0x14] sm:$0xf]
      %v2760 = vld [vmem:[%s266 + $0x18] sm:$0xf]
      %v2761 = vld [vmem:[%s266 + $0x1c] sm:$0xf]
      %v2762 = vld [vmem:[%s266 + $0x20] sm:$0xf]
      %v2763 = vld [vmem:[%s266 + $0x24] sm:$0xf]
      %v2764 = vld [vmem:[%s266 + $0x28] sm:$0xf]
      %v2765 = vld [vmem:[%s266 + $0x2c] sm:$0xf]
      %v2766 = vld [vmem:[%s266 + $0x30] sm:$0xf]
      %v2767 = vld [vmem:[%s266 + $0x34] sm:$0xf]
      %v2768 = vld [vmem:[%s266 + $0x38] sm:$0xf]
      %v2769 = vld [vmem:[%s266 + $0x3c] sm:$0xf]
      %v2770 = vld [vmem:[%s266 + $0x40] sm:$0xf]
      %v2771 = vld [vmem:[%s266 + $0x44] sm:$0xf]
      %v2772 = vld [vmem:[%s266 + $0x48] sm:$0xf]
      %v2773 = vld [vmem:[%s266 + $0x4c] sm:$0xf]
      %v2774 = vld [vmem:[%s266 + $0x50] sm:$0xf]
      %v2775 = vld [vmem:[%s266 + $0x54] sm:$0xf]
      %v2776 = vld [vmem:[%s266 + $0x58] sm:$0xf]
      %v2777 = vld [vmem:[%s266 + $0x5c] sm:$0xf]
      %v2778 = vld [vmem:[%s266 + $0x60] sm:$0xf]
      %v2779 = vld [vmem:[%s266 + $0x64] sm:$0xf]
      %v2780 = vld [vmem:[%s266 + $0x68] sm:$0xf]
      %v2781 = vld [vmem:[%s266 + $0x6c] sm:$0xf]
      %v2782 = vld [vmem:[%s266 + $0x70] sm:$0xf]
      %v2783 = vld [vmem:[%s266 + $0x74] sm:$0xf]
      %v2784 = vld [vmem:[%s266 + $0x78] sm:$0xf]
      %v2785 = vld [vmem:[%s266 + $0x7c] sm:$0xf]
      %v2786 = vunpack.c.l.bf16 %v2754
      %v2787 = vunpack.c.l.bf16 %v2755
      %v2788 = vunpack.c.l.bf16 %v2756
      %v2789 = vunpack.c.l.bf16 %v2757
      %v2790 = vunpack.c.l.bf16 %v2758
      %v2791 = vunpack.c.l.bf16 %v2759
      %v2792 = vunpack.c.l.bf16 %v2760
      %v2793 = vunpack.c.l.bf16 %v2761
      %v2794 = vunpack.c.l.bf16 %v2762
      %v2795 = vunpack.c.l.bf16 %v2763
      %v2796 = vunpack.c.l.bf16 %v2764
      %v2797 = vunpack.c.l.bf16 %v2765
      %v2798 = vunpack.c.l.bf16 %v2766
      %v2799 = vunpack.c.l.bf16 %v2767
      %v2800 = vunpack.c.l.bf16 %v2768
      %v2801 = vunpack.c.l.bf16 %v2769
      %v2802 = vunpack.c.l.bf16 %v2770
      %v2803 = vunpack.c.l.bf16 %v2771
      %v2804 = vunpack.c.l.bf16 %v2772
      %v2805 = vunpack.c.l.bf16 %v2773
      %v2806 = vunpack.c.l.bf16 %v2774
      %v2807 = vunpack.c.l.bf16 %v2775
      %v2808 = vunpack.c.l.bf16 %v2776
      %v2809 = vunpack.c.l.bf16 %v2777
      %v2810 = vunpack.c.l.bf16 %v2778
      %v2811 = vunpack.c.l.bf16 %v2779
      %v2812 = vunpack.c.l.bf16 %v2780
      %v2813 = vunpack.c.l.bf16 %v2781
      %v2814 = vunpack.c.l.bf16 %v2782
      %v2815 = vunpack.c.l.bf16 %v2783
      %v2816 = vunpack.c.l.bf16 %v2784
      %v2817 = vunpack.c.l.bf16 %v2785
      %v2818 = vadd.f32 %v2786, %v2722
      %v2819 = vadd.f32 %v2787, %v2723
      %v2820 = vadd.f32 %v2788, %v2724
      %v2821 = vadd.f32 %v2789, %v2725
      %v2822 = vadd.f32 %v2790, %v2726
      %v2823 = vadd.f32 %v2791, %v2727
      %v2824 = vadd.f32 %v2792, %v2728
      %v2825 = vadd.f32 %v2793, %v2729
      %v2826 = vadd.f32 %v2794, %v2730
      %v2827 = vadd.f32 %v2795, %v2731
      %v2828 = vadd.f32 %v2796, %v2732
      %v2829 = vadd.f32 %v2797, %v2733
      %v2830 = vadd.f32 %v2798, %v2734
      %v2831 = vadd.f32 %v2799, %v2735
      %v2832 = vadd.f32 %v2800, %v2736
      %v2833 = vadd.f32 %v2801, %v2737
      %v2834 = vadd.f32 %v2802, %v2738
      %v2835 = vadd.f32 %v2803, %v2739
      %v2836 = vadd.f32 %v2804, %v2740
      %v2837 = vadd.f32 %v2805, %v2741
      %v2838 = vadd.f32 %v2806, %v2742
      %v2839 = vadd.f32 %v2807, %v2743
      %v2840 = vadd.f32 %v2808, %v2744
      %v2841 = vadd.f32 %v2809, %v2745
      %v2842 = vadd.f32 %v2810, %v2746
      %v2843 = vadd.f32 %v2811, %v2747
      %v2844 = vadd.f32 %v2812, %v2748
      %v2845 = vadd.f32 %v2813, %v2749
      %v2846 = vadd.f32 %v2814, %v2750
      %v2847 = vadd.f32 %v2815, %v2751
      %v2848 = vadd.f32 %v2816, %v2752
      %v2849 = vadd.f32 %v2817, %v2753
      %v2850 = vld [vmem:[%s4] sm:$0x1]
      %v2852 = vperm.slane %v2850, 0
      %v2854 = vadd.f32 %v2818, %v2852
      %v2855 = vadd.f32 %v2819, %v2852
      %v2856 = vadd.f32 %v2820, %v2852
      %v2857 = vadd.f32 %v2821, %v2852
      %v2858 = vadd.f32 %v2822, %v2852
      %v2859 = vadd.f32 %v2823, %v2852
      %v2860 = vadd.f32 %v2824, %v2852
      %v2861 = vadd.f32 %v2825, %v2852
      %v2862 = vadd.f32 %v2826, %v2852
      %v2863 = vadd.f32 %v2827, %v2852
      %v2864 = vadd.f32 %v2828, %v2852
      %v2865 = vadd.f32 %v2829, %v2852
      %v2866 = vadd.f32 %v2830, %v2852
      %v2867 = vadd.f32 %v2831, %v2852
      %v2868 = vadd.f32 %v2832, %v2852
      %v2869 = vadd.f32 %v2833, %v2852
      %v2870 = vadd.f32 %v2834, %v2852
      %v2871 = vadd.f32 %v2835, %v2852
      %v2872 = vadd.f32 %v2836, %v2852
      %v2873 = vadd.f32 %v2837, %v2852
      %v2874 = vadd.f32 %v2838, %v2852
      %v2875 = vadd.f32 %v2839, %v2852
      %v2876 = vadd.f32 %v2840, %v2852
      %v2877 = vadd.f32 %v2841, %v2852
      %v2878 = vadd.f32 %v2842, %v2852
      %v2879 = vadd.f32 %v2843, %v2852
      %v2880 = vadd.f32 %v2844, %v2852
      %v2881 = vadd.f32 %v2845, %v2852
      %v2882 = vadd.f32 %v2846, %v2852
      %v2883 = vadd.f32 %v2847, %v2852
      %v2884 = vadd.f32 %v2848, %v2852
      %v2885 = vadd.f32 %v2849, %v2852
      %2886 = vst [vmem:[%s271] sm:$0xff] %v2854
      %2887 = vst [vmem:[%s271 + $0x8] sm:$0xff] %v2855
      %2888 = vst [vmem:[%s271 + $0x10] sm:$0xff] %v2856
      %2889 = vst [vmem:[%s271 + $0x18] sm:$0xff] %v2857
      %2890 = vst [vmem:[%s271 + $0x20] sm:$0xff] %v2858
      %2891 = vst [vmem:[%s271 + $0x28] sm:$0xff] %v2859
      %2892 = vst [vmem:[%s271 + $0x30] sm:$0xff] %v2860
      %2893 = vst [vmem:[%s271 + $0x38] sm:$0xff] %v2861
      %2894 = vst [vmem:[%s271 + $0x40] sm:$0xff] %v2862
      %2895 = vst [vmem:[%s271 + $0x48] sm:$0xff] %v2863
      %2896 = vst [vmem:[%s271 + $0x50] sm:$0xff] %v2864
      %2897 = vst [vmem:[%s271 + $0x58] sm:$0xff] %v2865
      %2898 = vst [vmem:[%s271 + $0x60] sm:$0xff] %v2866
      %2899 = vst [vmem:[%s271 + $0x68] sm:$0xff] %v2867
      %2900 = vst [vmem:[%s271 + $0x70] sm:$0xff] %v2868
      %2901 = vst [vmem:[%s271 + $0x78] sm:$0xff] %v2869
      %2902 = vst [vmem:[%s271 + $0x80] sm:$0xff] %v2870
      %2903 = vst [vmem:[%s271 + $0x88] sm:$0xff] %v2871
      %2904 = vst [vmem:[%s271 + $0x90] sm:$0xff] %v2872
      %2905 = vst [vmem:[%s271 + $0x98] sm:$0xff] %v2873
      %2906 = vst [vmem:[%s271 + $0xa0] sm:$0xff] %v2874
      %2907 = vst [vmem:[%s271 + $0xa8] sm:$0xff] %v2875
      %2908 = vst [vmem:[%s271 + $0xb0] sm:$0xff] %v2876
      %2909 = vst [vmem:[%s271 + $0xb8] sm:$0xff] %v2877
      %2910 = vst [vmem:[%s271 + $0xc0] sm:$0xff] %v2878
      %2911 = vst [vmem:[%s271 + $0xc8] sm:$0xff] %v2879
      %2912 = vst [vmem:[%s271 + $0xd0] sm:$0xff] %v2880
      %2913 = vst [vmem:[%s271 + $0xd8] sm:$0xff] %v2881
      %2914 = vst [vmem:[%s271 + $0xe0] sm:$0xff] %v2882
      %2915 = vst [vmem:[%s271 + $0xe8] sm:$0xff] %v2883
      %2916 = vst [vmem:[%s271 + $0xf0] sm:$0xff] %v2884
      %2917 = vst [vmem:[%s271 + $0xf8] sm:$0xff] %v2885
      %p2918 = scmp.lt.s32.totalorder %s17, 1
      %s2919 = scalar_select %p2918, %s17, 1
      %s2920 = smul.addr %s2919, 32
      %s2921 = smul.addr %s2920, 8
      %s2922 = scalar_lea.vmem %s6, %s2921
      // Predicated region
      $region45: #{resnet_block.3} parent=43 // pred_check
        %p2923 = pneg %p171
      $region46: #{resnet_block.3} parent=43 // pred_check_branch
        %2925 = sbr.rel (%p2923) target = $region48
      $region47: #{resnet_block.3} parent=43 // pred_region
        _
      $region48: #{resnet_block.3} parent=43 // pred_fallthru
        _
    $region44: #{resnet_block.3} parent=5 // pred_fallthru
      _
    %p2926 = scmp.le.s32.totalorder 2, %s12
    // Predicated region
    $region49: #{resnet_block.3} parent=5 // pred_check
      %p2927 = pneg %p2926
    $region50: #{resnet_block.3} parent=5 // pred_check_branch
      %2929 = sbr.rel (%p2927) target = $region52
    $region51: #{resnet_block.3} parent=5 // pred_region
      %s2930 = ssub.s32 %s12, 2
      // Predicated region
      $region53: #{resnet_block.3} parent=51 // pred_check
        %p2931 = pneg %p177
      $region54: #{resnet_block.3} parent=51 // pred_check_branch
        %2933 = sbr.rel (%p2931) target = $region56
      $region55: #{resnet_block.3} parent=51 // pred_region
        %p2934 = scmp.lt.s32.totalorder %s18, 1
        %s2935 = scalar_select %p2934, %s18, 1
        %s2936 = smul.addr %s2935, 32
        %s2937 = smul.addr %s2936, 8
        %s2938 = scalar_lea.vmem %s6, %s2937
      $region56: #{resnet_block.3} parent=51 // pred_fallthru
        _
    $region52: #{resnet_block.3} parent=5 // pred_fallthru
      _
  $region6: #{resnet_block.3} parent=0 // loop_footer
    %s16 = sadd.s32 1, %s12
  $region7: #{resnet_block.3} parent=0 // loop_footer_branch
    %11 = sbr.rel target = $region3
  $region8: #{resnet_block.3} parent=0 // loop_exit
    _

</llo_original>
